<compile_context>
chip_gen: v6e
topology: v6e:2x2x1
jax: 0.10.0
libtpu: 0.0.40
codegen_flags: <defaults>
</compile_context>

<pallas_src>
import math

import jax
import jax.numpy as jnp
from jax.experimental import pallas as pl
from jax.experimental.pallas import tpu as pltpu
from jax.scipy.special import erf

# ---------------- small synthetic ViT config ----------------
B_SZ = 2          # batch
C_IN = 3          # input channels (RGB, like the PyTorch model)
IMG = 16          # image height / width
PATCH = 8         # patch size
HIDDEN = 32       # hidden size
HEADS = 4         # attention heads
HEAD_DIM = HIDDEN // HEADS
LAYERS = 2        # encoder layers
MLP = 64          # intermediate (4x hidden)
N_PATCHES = (IMG // PATCH) ** 2
SEQ = N_PATCHES + 1          # +1 for CLS token
LN_EPS = 1e-12               # HF ViT layer_norm_eps


# ---------------- single fused Pallas kernel ----------------
def _vit_fused_kernel(
    patches_ref, patch_w_ref, patch_b_ref, cls_ref, pos_ref,
    ln1_g_ref, ln1_b_ref, wqkv_ref, bqkv_ref, wo_ref, bo_ref,
    ln2_g_ref, ln2_b_ref, w1_ref, b1_ref, w2_ref, b2_ref,
    lnf_g_ref, lnf_b_ref, o_ref):
    """One grid step == one batch element; full token stream stays in VMEM."""
    f32 = jnp.float32
    inv_sqrt2 = 1.0 / math.sqrt(2.0)
    scale = 1.0 / math.sqrt(HEAD_DIM)

    def layer_norm(x, g, b):
        mean = jnp.mean(x, axis=-1, keepdims=True)
        xc = x - mean
        var = jnp.mean(xc * xc, axis=-1, keepdims=True)   # biased, like torch LN
        return xc * jax.lax.rsqrt(var + LN_EPS) * g + b

    def gelu(x):   # exact erf form == HF hidden_act="gelu"
        return 0.5 * x * (1.0 + erf(x * inv_sqrt2))

    # ---- patch embedding + [CLS] + position embeddings (fused epilogue) ----
    patches = patches_ref[0].astype(f32)                                  # (N, C*P*P)
    emb = jnp.dot(patches, patch_w_ref[...].astype(f32),
                  preferred_element_type=f32) + patch_b_ref[...]          # (N, D)
    x = jnp.concatenate([cls_ref[...].astype(f32), emb], axis=0)          # (T, D)
    x = x + pos_ref[...].astype(f32)
    # TODO(synk): dropout layers are identity at inference and are omitted.

    # ---- encoder layers (statically unrolled; all weights VMEM-resident) ----
    for l in range(LAYERS):
        # --- multi-head self-attention block (pre-LN) ---
        h_ln = layer_norm(x, ln1_g_ref[l], ln1_b_ref[l])
        qkv = jnp.dot(h_ln, wqkv_ref[l].astype(f32),
                      preferred_element_type=f32) + bqkv_ref[l]           # (T, 3D)
        wo_full = wo_ref[l].astype(f32)                                   # (D, D)
        # ctx @ Wo == sum_h ctx_h @ Wo[h*Dh:(h+1)*Dh, :]
        attn_out = jnp.zeros((SEQ, HIDDEN), f32)
        for h in range(HEADS):
            lo = h * HEAD_DIM
            q = qkv[:, lo:lo + HEAD_DIM] * scale                          # (T, Dh)
            k = qkv[:, HIDDEN + lo:HIDDEN + lo + HEAD_DIM]
            v = qkv[:, 2 * HIDDEN + lo:2 * HIDDEN + lo + HEAD_DIM]
            s = jnp.einsum("qd,kd->qk", q, k, preferred_element_type=f32)  # (T, T)
            s = s - jnp.max(s, axis=-1, keepdims=True)
            p = jnp.exp(s)
            # approx reciprocal runs on the EUP slot (free next to VPU/MXU work)
            p = p * pl.reciprocal(jnp.sum(p, axis=-1, keepdims=True), approx=True)
            ctx_h = jnp.dot(p, v, preferred_element_type=f32)             # (T, Dh)
            attn_out = attn_out + jnp.dot(ctx_h, wo_full[lo:lo + HEAD_DIM, :],
                                          preferred_element_type=f32)
        x = x + attn_out + bo_ref[l]                                      # residual

        # --- MLP block (pre-LN) ---
        h_ln2 = layer_norm(x, ln2_g_ref[l], ln2_b_ref[l])
        mid = gelu(jnp.dot(h_ln2, w1_ref[l].astype(f32),
                           preferred_element_type=f32) + b1_ref[l])       # (T, MLP)
        x = x + jnp.dot(mid, w2_ref[l].astype(f32),
                        preferred_element_type=f32) + b2_ref[l]           # residual

    # ---- final LayerNorm -> last_hidden_state for this batch element ----
    y = layer_norm(x, lnf_g_ref[...].astype(f32), lnf_b_ref[...].astype(f32))
    o_ref[0] = y.astype(o_ref.dtype)


# ---------------- glue (plain JAX) ----------------
def extract_patches(x, patch):
    """NCHW -> (B, num_patches, C*P*P), flattened in (c, p, q) order to match
    the Conv2d(kernel=P, stride=P) weight flattening used by ViT patch embedding."""
    B, C, H, W = x.shape
    x = x.reshape(B, C, H // patch, patch, W // patch, patch)
    x = jnp.transpose(x, (0, 2, 4, 1, 3, 5))          # B, H/P, W/P, C, P, P
    return x.reshape(B, (H // patch) * (W // patch), C * patch * patch)


def vit_backbone_forward(params, x):
    """Equivalent of ViTBackbone.forward: returns last_hidden_state (B, T, D).
    One pallas_call for the whole model; grid = (batch,), marked parallel."""
    B = x.shape[0]
    cpp = C_IN * PATCH * PATCH
    patches = extract_patches(x, PATCH)               # (B, N, C*P*P) — cheap layout glue

    def rep(shape):
        """Full-array block replicated across the batch grid (weights)."""
        z = (0,) * len(shape)
        return pl.BlockSpec(shape, lambda b, _z=z: _z)

    out = pl.pallas_call(
        _vit_fused_kernel,
        out_shape=jax.ShapeDtypeStruct((B, SEQ, HIDDEN), x.dtype),
        grid=(B,),
        in_specs=[
            pl.BlockSpec((1, N_PATCHES, cpp), lambda b: (b, 0, 0)),   # patches
            rep(params["patch_w"].shape), rep(params["patch_b"].shape),
            rep(params["cls"].shape), rep(params["pos"].shape),
            rep(params["ln1_g"].shape), rep(params["ln1_b"].shape),
            rep(params["wqkv"].shape), rep(params["bqkv"].shape),
            rep(params["wo"].shape), rep(params["bo"].shape),
            rep(params["ln2_g"].shape), rep(params["ln2_b"].shape),
            rep(params["w1"].shape), rep(params["b1"].shape),
            rep(params["w2"].shape), rep(params["b2"].shape),
            rep(params["lnf_g"].shape), rep(params["lnf_b"].shape),
        ],
        out_specs=pl.BlockSpec((1, SEQ, HIDDEN), lambda b: (b, 0, 0)),
        compiler_params=pltpu.CompilerParams(dimension_semantics=("parallel",)),
    )(patches,
      params["patch_w"], params["patch_b"], params["cls"], params["pos"],
      params["ln1_g"], params["ln1_b"], params["wqkv"], params["bqkv"],
      params["wo"], params["bo"], params["ln2_g"], params["ln2_b"],
      params["w1"], params["b1"], params["w2"], params["b2"],
      params["lnf_g"], params["lnf_b"])
    return out


# ---------------- deterministic parameter init (pre-fused layout) ----------------
def init_params(key):
    keys = jax.random.split(key, 64)
    it = iter(keys)

    def rnd(shape, scale=0.02):
        return (scale * jax.random.normal(next(it), shape)).astype(jnp.float32)

    p = {
        "patch_w": rnd((C_IN * PATCH * PATCH, HIDDEN)),
        "patch_b": rnd((HIDDEN,)).reshape(1, HIDDEN),
        "cls": rnd((HIDDEN,)).reshape(1, HIDDEN),
        "pos": rnd((SEQ, HIDDEN)),
        "lnf_g": jnp.ones((1, HIDDEN), jnp.float32),
        "lnf_b": jnp.zeros((1, HIDDEN), jnp.float32),
    }

    ln1_g, ln1_b, wqkv, bqkv, wo, bo = [], [], [], [], [], []
    ln2_g, ln2_b, w1, b1, w2, b2 = [], [], [], [], [], []
    for _ in range(LAYERS):
        wq, wk, wv = rnd((HIDDEN, HIDDEN)), rnd((HIDDEN, HIDDEN)), rnd((HIDDEN, HIDDEN))
        bq, bk, bv = rnd((HIDDEN,)), rnd((HIDDEN,)), rnd((HIDDEN,))
        ln1_g.append(jnp.ones((1, HIDDEN), jnp.float32))
        ln1_b.append(jnp.zeros((1, HIDDEN), jnp.float32))
        wqkv.append(jnp.concatenate([wq, wk, wv], axis=1))                # (D, 3D) fused QKV
        bqkv.append(jnp.concatenate([bq, bk, bv]).reshape(1, 3 * HIDDEN))
        wo.append(rnd((HIDDEN, HIDDEN)))
        bo.append(rnd((HIDDEN,)).reshape(1, HIDDEN))
        ln2_g.append(jnp.ones((1, HIDDEN), jnp.float32))
        ln2_b.append(jnp.zeros((1, HIDDEN), jnp.float32))
        w1.append(rnd((HIDDEN, MLP)))
        b1.append(rnd((MLP,)).reshape(1, MLP))
        w2.append(rnd((MLP, HIDDEN)))
        b2.append(rnd((HIDDEN,)).reshape(1, HIDDEN))

    p.update({
        "ln1_g": jnp.stack(ln1_g), "ln1_b": jnp.stack(ln1_b),
        "wqkv": jnp.stack(wqkv), "bqkv": jnp.stack(bqkv),
        "wo": jnp.stack(wo), "bo": jnp.stack(bo),
        "ln2_g": jnp.stack(ln2_g), "ln2_b": jnp.stack(ln2_b),
        "w1": jnp.stack(w1), "b1": jnp.stack(b1),
        "w2": jnp.stack(w2), "b2": jnp.stack(b2),
    })
    return p


if __name__ == "__main__":
    root = jax.random.PRNGKey(0)
    k_params, k_x = jax.random.split(root)
    params = init_params(k_params)
    x = jax.random.normal(k_x, (B_SZ, C_IN, IMG, IMG), dtype=jnp.float32)  # NCHW like PyTorch

    fwd = jax.jit(vit_backbone_forward)
    feature_map = fwd(params, x)
    jax.block_until_ready(feature_map)

    assert feature_map.shape == (B_SZ, SEQ, HIDDEN)
    assert feature_map.dtype == jnp.float32
    assert bool(jnp.all(jnp.isfinite(feature_map)))
    print("KERNEL_OK")
</pallas_src>

<mosaic_0001>
module attributes {stable_mosaic.version = 11 : i64} {
  func.func @_vit_fused_kernel(%arg0: i32, %arg1: memref<1x4x192xf32, #tpu.memory_space<vmem>>, %arg2: memref<192x32xf32, #tpu.memory_space<vmem>>, %arg3: memref<1x32xf32, #tpu.memory_space<vmem>>, %arg4: memref<1x32xf32, #tpu.memory_space<vmem>>, %arg5: memref<5x32xf32, #tpu.memory_space<vmem>>, %arg6: memref<2x1x32xf32, #tpu.memory_space<vmem>>, %arg7: memref<2x1x32xf32, #tpu.memory_space<vmem>>, %arg8: memref<2x32x96xf32, #tpu.memory_space<vmem>>, %arg9: memref<2x1x96xf32, #tpu.memory_space<vmem>>, %arg10: memref<2x32x32xf32, #tpu.memory_space<vmem>>, %arg11: memref<2x1x32xf32, #tpu.memory_space<vmem>>, %arg12: memref<2x1x32xf32, #tpu.memory_space<vmem>>, %arg13: memref<2x1x32xf32, #tpu.memory_space<vmem>>, %arg14: memref<2x32x64xf32, #tpu.memory_space<vmem>>, %arg15: memref<2x1x64xf32, #tpu.memory_space<vmem>>, %arg16: memref<2x64x32xf32, #tpu.memory_space<vmem>>, %arg17: memref<2x1x32xf32, #tpu.memory_space<vmem>>, %arg18: memref<1x32xf32, #tpu.memory_space<vmem>>, %arg19: memref<1x32xf32, #tpu.memory_space<vmem>>, %arg20: memref<1x5x32xf32, #tpu.memory_space<vmem>>) attributes {dimension_semantics = [#tpu.dimension_semantics<parallel>], iteration_bounds = array<i64: 2>, scalar_prefetch = 0 : i64, scratch_operands = 0 : i64, tpu.core_type = #tpu.core_type<tc>, window_params = [{transform_indices = @transform_0, window_bounds = array<i64: 1, 4, 192>}, {pipeline_mode = #tpu.pipeline_mode<synchronous>, transform_indices = @transform_1, window_bounds = array<i64: 192, 32>}, {pipeline_mode = #tpu.pipeline_mode<synchronous>, transform_indices = @transform_2, window_bounds = array<i64: 1, 32>}, {pipeline_mode = #tpu.pipeline_mode<synchronous>, transform_indices = @transform_3, window_bounds = array<i64: 1, 32>}, {pipeline_mode = #tpu.pipeline_mode<synchronous>, transform_indices = @transform_4, window_bounds = array<i64: 5, 32>}, {pipeline_mode = #tpu.pipeline_mode<synchronous>, transform_indices = @transform_5, window_bounds = array<i64: 2, 1, 32>}, {pipeline_mode = #tpu.pipeline_mode<synchronous>, transform_indices = @transform_6, window_bounds = array<i64: 2, 1, 32>}, {pipeline_mode = #tpu.pipeline_mode<synchronous>, transform_indices = @transform_7, window_bounds = array<i64: 2, 32, 96>}, {pipeline_mode = #tpu.pipeline_mode<synchronous>, transform_indices = @transform_8, window_bounds = array<i64: 2, 1, 96>}, {pipeline_mode = #tpu.pipeline_mode<synchronous>, transform_indices = @transform_9, window_bounds = array<i64: 2, 32, 32>}, {pipeline_mode = #tpu.pipeline_mode<synchronous>, transform_indices = @transform_10, window_bounds = array<i64: 2, 1, 32>}, {pipeline_mode = #tpu.pipeline_mode<synchronous>, transform_indices = @transform_11, window_bounds = array<i64: 2, 1, 32>}, {pipeline_mode = #tpu.pipeline_mode<synchronous>, transform_indices = @transform_12, window_bounds = array<i64: 2, 1, 32>}, {pipeline_mode = #tpu.pipeline_mode<synchronous>, transform_indices = @transform_13, window_bounds = array<i64: 2, 32, 64>}, {pipeline_mode = #tpu.pipeline_mode<synchronous>, transform_indices = @transform_14, window_bounds = array<i64: 2, 1, 64>}, {pipeline_mode = #tpu.pipeline_mode<synchronous>, transform_indices = @transform_15, window_bounds = array<i64: 2, 64, 32>}, {pipeline_mode = #tpu.pipeline_mode<synchronous>, transform_indices = @transform_16, window_bounds = array<i64: 2, 1, 32>}, {pipeline_mode = #tpu.pipeline_mode<synchronous>, transform_indices = @transform_17, window_bounds = array<i64: 1, 32>}, {pipeline_mode = #tpu.pipeline_mode<synchronous>, transform_indices = @transform_18, window_bounds = array<i64: 1, 32>}, {transform_indices = @transform_19, window_bounds = array<i64: 1, 5, 32>}]} {
    %c0 = arith.constant 0 : index
    %c0_0 = arith.constant 0 : index
    %c0_1 = arith.constant 0 : index
    %0 = vector.load %arg1[%c0, %c0_0, %c0_1] : memref<1x4x192xf32, #tpu.memory_space<vmem>>, vector<1x4x192xf32>
    %1 = vector.shape_cast %0 : vector<1x4x192xf32> to vector<4x192xf32>
    %c0_2 = arith.constant 0 : index
    %c0_3 = arith.constant 0 : index
    %2 = vector.load %arg2[%c0_2, %c0_3] : memref<192x32xf32, #tpu.memory_space<vmem>>, vector<192x32xf32>
    %cst = arith.constant dense<0.000000e+00> : vector<4x32xf32>
    %3 = tpu.matmul %1, %2, %cst {dimension_numbers = #tpu.dot_dimension_numbers<[1], [0], [0], [1], [0, 0, 1, 1], [], []>} : vector<4x192xf32>, vector<192x32xf32>, vector<4x32xf32> -> vector<4x32xf32>
    %c0_4 = arith.constant 0 : index
    %c0_5 = arith.constant 0 : index
    %4 = vector.load %arg3[%c0_4, %c0_5] : memref<1x32xf32, #tpu.memory_space<vmem>>, vector<1x32xf32>
    %5 = vector.broadcast %4 : vector<1x32xf32> to vector<4x32xf32>
    %6 = arith.addf %3, %5 : vector<4x32xf32>
    %c0_6 = arith.constant 0 : index
    %c0_7 = arith.constant 0 : index
    %7 = vector.load %arg4[%c0_6, %c0_7] : memref<1x32xf32, #tpu.memory_space<vmem>>, vector<1x32xf32>
    %8 = tpu.concatenate %7, %6 in 0 : vector<1x32xf32>, vector<4x32xf32> -> vector<5x32xf32>
    %c0_8 = arith.constant 0 : index
    %c0_9 = arith.constant 0 : index
    %9 = vector.load %arg5[%c0_8, %c0_9] : memref<5x32xf32, #tpu.memory_space<vmem>>, vector<5x32xf32>
    %10 = arith.addf %8, %9 : vector<5x32xf32>
    %c0_10 = arith.constant 0 : index
    %c0_11 = arith.constant 0 : index
    %c0_12 = arith.constant 0 : index
    %11 = vector.load %arg6[%c0_10, %c0_11, %c0_12] : memref<2x1x32xf32, #tpu.memory_space<vmem>>, vector<1x1x32xf32>
    %12 = vector.shape_cast %11 : vector<1x1x32xf32> to vector<1x32xf32>
    %c0_13 = arith.constant 0 : index
    %c0_14 = arith.constant 0 : index
    %c0_15 = arith.constant 0 : index
    %13 = vector.load %arg7[%c0_13, %c0_14, %c0_15] : memref<2x1x32xf32, #tpu.memory_space<vmem>>, vector<1x1x32xf32>
    %14 = vector.shape_cast %13 : vector<1x1x32xf32> to vector<1x32xf32>
    %cst_16 = arith.constant dense<0.000000e+00> : vector<5xf32>
    %15 = vector.multi_reduction <add>, %10, %cst_16 [1] : vector<5x32xf32> to vector<5xf32>
    %16 = vector.shape_cast %15 : vector<5xf32> to vector<5x1xf32>
    %cst_17 = arith.constant 3.200000e+01 : f32
    %17 = vector.broadcast %cst_17 : f32 to vector<5x1xf32>
    %18 = arith.divf %16, %17 : vector<5x1xf32>
    %19 = vector.broadcast %18 : vector<5x1xf32> to vector<5x32xf32>
    %20 = arith.subf %10, %19 : vector<5x32xf32>
    %21 = arith.mulf %20, %20 : vector<5x32xf32>
    %cst_18 = arith.constant dense<0.000000e+00> : vector<5xf32>
    %22 = vector.multi_reduction <add>, %21, %cst_18 [1] : vector<5x32xf32> to vector<5xf32>
    %23 = vector.shape_cast %22 : vector<5xf32> to vector<5x1xf32>
    %cst_19 = arith.constant 3.200000e+01 : f32
    %24 = vector.broadcast %cst_19 : f32 to vector<5x1xf32>
    %25 = arith.divf %23, %24 : vector<5x1xf32>
    %cst_20 = arith.constant 9.99999996E-13 : f32
    %26 = vector.broadcast %cst_20 : f32 to vector<5x1xf32>
    %27 = arith.addf %25, %26 : vector<5x1xf32>
    %28 = math.rsqrt %27 : vector<5x1xf32>
    %29 = vector.broadcast %28 : vector<5x1xf32> to vector<5x32xf32>
    %30 = arith.mulf %20, %29 : vector<5x32xf32>
    %31 = vector.broadcast %12 : vector<1x32xf32> to vector<5x32xf32>
    %32 = arith.mulf %30, %31 : vector<5x32xf32>
    %33 = vector.broadcast %14 : vector<1x32xf32> to vector<5x32xf32>
    %34 = arith.addf %32, %33 : vector<5x32xf32>
    %c0_21 = arith.constant 0 : index
    %c0_22 = arith.constant 0 : index
    %c0_23 = arith.constant 0 : index
    %35 = vector.load %arg8[%c0_21, %c0_22, %c0_23] : memref<2x32x96xf32, #tpu.memory_space<vmem>>, vector<1x32x96xf32>
    %36 = vector.shape_cast %35 : vector<1x32x96xf32> to vector<32x96xf32>
    %cst_24 = arith.constant dense<0.000000e+00> : vector<5x96xf32>
    %37 = tpu.matmul %34, %36, %cst_24 {dimension_numbers = #tpu.dot_dimension_numbers<[1], [0], [0], [1], [0, 0, 1, 1], [], []>} : vector<5x32xf32>, vector<32x96xf32>, vector<5x96xf32> -> vector<5x96xf32>
    %c0_25 = arith.constant 0 : index
    %c0_26 = arith.constant 0 : index
    %c0_27 = arith.constant 0 : index
    %38 = vector.load %arg9[%c0_25, %c0_26, %c0_27] : memref<2x1x96xf32, #tpu.memory_space<vmem>>, vector<1x1x96xf32>
    %39 = vector.shape_cast %38 : vector<1x1x96xf32> to vector<1x96xf32>
    %40 = vector.broadcast %39 : vector<1x96xf32> to vector<5x96xf32>
    %41 = arith.addf %37, %40 : vector<5x96xf32>
    %c0_28 = arith.constant 0 : index
    %c0_29 = arith.constant 0 : index
    %c0_30 = arith.constant 0 : index
    %42 = vector.load %arg10[%c0_28, %c0_29, %c0_30] : memref<2x32x32xf32, #tpu.memory_space<vmem>>, vector<1x32x32xf32>
    %43 = vector.shape_cast %42 : vector<1x32x32xf32> to vector<32x32xf32>
    %cst_31 = arith.constant 0.000000e+00 : f32
    %44 = vector.broadcast %cst_31 : f32 to vector<5x32xf32>
    %45 = vector.extract_strided_slice %41 {offsets = [0, 0], sizes = [5, 8], strides = [1, 1]} : vector<5x96xf32> to vector<5x8xf32>
    %cst_32 = arith.constant 0.353553385 : f32
    %46 = vector.broadcast %cst_32 : f32 to vector<5x8xf32>
    %47 = arith.mulf %45, %46 : vector<5x8xf32>
    %48 = vector.extract_strided_slice %41 {offsets = [0, 32], sizes = [5, 8], strides = [1, 1]} : vector<5x96xf32> to vector<5x8xf32>
    %49 = vector.extract_strided_slice %41 {offsets = [0, 64], sizes = [5, 8], strides = [1, 1]} : vector<5x96xf32> to vector<5x8xf32>
    "tpu.trace_start"() <{level = 10 : i32, message = "qd,kd->qk"}> : () -> ()
    %cst_33 = arith.constant dense<0.000000e+00> : vector<5x5xf32>
    %50 = tpu.matmul %47, %48, %cst_33 {dimension_numbers = #tpu.dot_dimension_numbers<[1], [1], [0], [0], [0, 0, 1, 0], [], []>} : vector<5x8xf32>, vector<5x8xf32>, vector<5x5xf32> -> vector<5x5xf32>
    "tpu.trace_stop"() : () -> ()
    %cst_34 = arith.constant dense<0xFF800000> : vector<5xf32>
    %51 = vector.multi_reduction <maximumf>, %50, %cst_34 [1] : vector<5x5xf32> to vector<5xf32>
    %52 = vector.shape_cast %51 : vector<5xf32> to vector<5x1xf32>
    %53 = vector.broadcast %52 : vector<5x1xf32> to vector<5x5xf32>
    %54 = arith.subf %50, %53 : vector<5x5xf32>
    %55 = math.exp %54 : vector<5x5xf32>
    %cst_35 = arith.constant dense<0.000000e+00> : vector<5xf32>
    %56 = vector.multi_reduction <add>, %55, %cst_35 [1] : vector<5x5xf32> to vector<5xf32>
    %57 = vector.shape_cast %56 : vector<5xf32> to vector<5x1xf32>
    %58 = tpu.reciprocal %57 {approx = true} : vector<5x1xf32> -> vector<5x1xf32>
    %59 = vector.broadcast %58 : vector<5x1xf32> to vector<5x5xf32>
    %60 = arith.mulf %55, %59 : vector<5x5xf32>
    %cst_36 = arith.constant dense<0.000000e+00> : vector<5x8xf32>
    %61 = tpu.matmul %60, %49, %cst_36 {dimension_numbers = #tpu.dot_dimension_numbers<[1], [0], [0], [1], [0, 0, 1, 1], [], []>} : vector<5x5xf32>, vector<5x8xf32>, vector<5x8xf32> -> vector<5x8xf32>
    %62 = vector.extract_strided_slice %43 {offsets = [0, 0], sizes = [8, 32], strides = [1, 1]} : vector<32x32xf32> to vector<8x32xf32>
    %cst_37 = arith.constant dense<0.000000e+00> : vector<5x32xf32>
    %63 = tpu.matmul %61, %62, %cst_37 {dimension_numbers = #tpu.dot_dimension_numbers<[1], [0], [0], [1], [0, 0, 1, 1], [], []>} : vector<5x8xf32>, vector<8x32xf32>, vector<5x32xf32> -> vector<5x32xf32>
    %64 = arith.addf %44, %63 : vector<5x32xf32>
    %65 = vector.extract_strided_slice %41 {offsets = [0, 8], sizes = [5, 8], strides = [1, 1]} : vector<5x96xf32> to vector<5x8xf32>
    %cst_38 = arith.constant 0.353553385 : f32
    %66 = vector.broadcast %cst_38 : f32 to vector<5x8xf32>
    %67 = arith.mulf %65, %66 : vector<5x8xf32>
    %68 = vector.extract_strided_slice %41 {offsets = [0, 40], sizes = [5, 8], strides = [1, 1]} : vector<5x96xf32> to vector<5x8xf32>
    %69 = vector.extract_strided_slice %41 {offsets = [0, 72], sizes = [5, 8], strides = [1, 1]} : vector<5x96xf32> to vector<5x8xf32>
    "tpu.trace_start"() <{level = 10 : i32, message = "qd,kd->qk"}> : () -> ()
    %cst_39 = arith.constant dense<0.000000e+00> : vector<5x5xf32>
    %70 = tpu.matmul %67, %68, %cst_39 {dimension_numbers = #tpu.dot_dimension_numbers<[1], [1], [0], [0], [0, 0, 1, 0], [], []>} : vector<5x8xf32>, vector<5x8xf32>, vector<5x5xf32> -> vector<5x5xf32>
    "tpu.trace_stop"() : () -> ()
    %cst_40 = arith.constant dense<0xFF800000> : vector<5xf32>
    %71 = vector.multi_reduction <maximumf>, %70, %cst_40 [1] : vector<5x5xf32> to vector<5xf32>
    %72 = vector.shape_cast %71 : vector<5xf32> to vector<5x1xf32>
    %73 = vector.broadcast %72 : vector<5x1xf32> to vector<5x5xf32>
    %74 = arith.subf %70, %73 : vector<5x5xf32>
    %75 = math.exp %74 : vector<5x5xf32>
    %cst_41 = arith.constant dense<0.000000e+00> : vector<5xf32>
    %76 = vector.multi_reduction <add>, %75, %cst_41 [1] : vector<5x5xf32> to vector<5xf32>
    %77 = vector.shape_cast %76 : vector<5xf32> to vector<5x1xf32>
    %78 = tpu.reciprocal %77 {approx = true} : vector<5x1xf32> -> vector<5x1xf32>
    %79 = vector.broadcast %78 : vector<5x1xf32> to vector<5x5xf32>
    %80 = arith.mulf %75, %79 : vector<5x5xf32>
    %cst_42 = arith.constant dense<0.000000e+00> : vector<5x8xf32>
    %81 = tpu.matmul %80, %69, %cst_42 {dimension_numbers = #tpu.dot_dimension_numbers<[1], [0], [0], [1], [0, 0, 1, 1], [], []>} : vector<5x5xf32>, vector<5x8xf32>, vector<5x8xf32> -> vector<5x8xf32>
    %82 = vector.extract_strided_slice %43 {offsets = [8, 0], sizes = [8, 32], strides = [1, 1]} : vector<32x32xf32> to vector<8x32xf32>
    %cst_43 = arith.constant dense<0.000000e+00> : vector<5x32xf32>
    %83 = tpu.matmul %81, %82, %cst_43 {dimension_numbers = #tpu.dot_dimension_numbers<[1], [0], [0], [1], [0, 0, 1, 1], [], []>} : vector<5x8xf32>, vector<8x32xf32>, vector<5x32xf32> -> vector<5x32xf32>
    %84 = arith.addf %64, %83 : vector<5x32xf32>
    %85 = vector.extract_strided_slice %41 {offsets = [0, 16], sizes = [5, 8], strides = [1, 1]} : vector<5x96xf32> to vector<5x8xf32>
    %cst_44 = arith.constant 0.353553385 : f32
    %86 = vector.broadcast %cst_44 : f32 to vector<5x8xf32>
    %87 = arith.mulf %85, %86 : vector<5x8xf32>
    %88 = vector.extract_strided_slice %41 {offsets = [0, 48], sizes = [5, 8], strides = [1, 1]} : vector<5x96xf32> to vector<5x8xf32>
    %89 = vector.extract_strided_slice %41 {offsets = [0, 80], sizes = [5, 8], strides = [1, 1]} : vector<5x96xf32> to vector<5x8xf32>
    "tpu.trace_start"() <{level = 10 : i32, message = "qd,kd->qk"}> : () -> ()
    %cst_45 = arith.constant dense<0.000000e+00> : vector<5x5xf32>
    %90 = tpu.matmul %87, %88, %cst_45 {dimension_numbers = #tpu.dot_dimension_numbers<[1], [1], [0], [0], [0, 0, 1, 0], [], []>} : vector<5x8xf32>, vector<5x8xf32>, vector<5x5xf32> -> vector<5x5xf32>
    "tpu.trace_stop"() : () -> ()
    %cst_46 = arith.constant dense<0xFF800000> : vector<5xf32>
    %91 = vector.multi_reduction <maximumf>, %90, %cst_46 [1] : vector<5x5xf32> to vector<5xf32>
    %92 = vector.shape_cast %91 : vector<5xf32> to vector<5x1xf32>
    %93 = vector.broadcast %92 : vector<5x1xf32> to vector<5x5xf32>
    %94 = arith.subf %90, %93 : vector<5x5xf32>
    %95 = math.exp %94 : vector<5x5xf32>
    %cst_47 = arith.constant dense<0.000000e+00> : vector<5xf32>
    %96 = vector.multi_reduction <add>, %95, %cst_47 [1] : vector<5x5xf32> to vector<5xf32>
    %97 = vector.shape_cast %96 : vector<5xf32> to vector<5x1xf32>
    %98 = tpu.reciprocal %97 {approx = true} : vector<5x1xf32> -> vector<5x1xf32>
    %99 = vector.broadcast %98 : vector<5x1xf32> to vector<5x5xf32>
    %100 = arith.mulf %95, %99 : vector<5x5xf32>
    %cst_48 = arith.constant dense<0.000000e+00> : vector<5x8xf32>
    %101 = tpu.matmul %100, %89, %cst_48 {dimension_numbers = #tpu.dot_dimension_numbers<[1], [0], [0], [1], [0, 0, 1, 1], [], []>} : vector<5x5xf32>, vector<5x8xf32>, vector<5x8xf32> -> vector<5x8xf32>
    %102 = vector.extract_strided_slice %43 {offsets = [16, 0], sizes = [8, 32], strides = [1, 1]} : vector<32x32xf32> to vector<8x32xf32>
    %cst_49 = arith.constant dense<0.000000e+00> : vector<5x32xf32>
    %103 = tpu.matmul %101, %102, %cst_49 {dimension_numbers = #tpu.dot_dimension_numbers<[1], [0], [0], [1], [0, 0, 1, 1], [], []>} : vector<5x8xf32>, vector<8x32xf32>, vector<5x32xf32> -> vector<5x32xf32>
    %104 = arith.addf %84, %103 : vector<5x32xf32>
    %105 = vector.extract_strided_slice %41 {offsets = [0, 24], sizes = [5, 8], strides = [1, 1]} : vector<5x96xf32> to vector<5x8xf32>
    %cst_50 = arith.constant 0.353553385 : f32
    %106 = vector.broadcast %cst_50 : f32 to vector<5x8xf32>
    %107 = arith.mulf %105, %106 : vector<5x8xf32>
    %108 = vector.extract_strided_slice %41 {offsets = [0, 56], sizes = [5, 8], strides = [1, 1]} : vector<5x96xf32> to vector<5x8xf32>
    %109 = vector.extract_strided_slice %41 {offsets = [0, 88], sizes = [5, 8], strides = [1, 1]} : vector<5x96xf32> to vector<5x8xf32>
    "tpu.trace_start"() <{level = 10 : i32, message = "qd,kd->qk"}> : () -> ()
    %cst_51 = arith.constant dense<0.000000e+00> : vector<5x5xf32>
    %110 = tpu.matmul %107, %108, %cst_51 {dimension_numbers = #tpu.dot_dimension_numbers<[1], [1], [0], [0], [0, 0, 1, 0], [], []>} : vector<5x8xf32>, vector<5x8xf32>, vector<5x5xf32> -> vector<5x5xf32>
    "tpu.trace_stop"() : () -> ()
    %cst_52 = arith.constant dense<0xFF800000> : vector<5xf32>
    %111 = vector.multi_reduction <maximumf>, %110, %cst_52 [1] : vector<5x5xf32> to vector<5xf32>
    %112 = vector.shape_cast %111 : vector<5xf32> to vector<5x1xf32>
    %113 = vector.broadcast %112 : vector<5x1xf32> to vector<5x5xf32>
    %114 = arith.subf %110, %113 : vector<5x5xf32>
    %115 = math.exp %114 : vector<5x5xf32>
    %cst_53 = arith.constant dense<0.000000e+00> : vector<5xf32>
    %116 = vector.multi_reduction <add>, %115, %cst_53 [1] : vector<5x5xf32> to vector<5xf32>
    %117 = vector.shape_cast %116 : vector<5xf32> to vector<5x1xf32>
    %118 = tpu.reciprocal %117 {approx = true} : vector<5x1xf32> -> vector<5x1xf32>
    %119 = vector.broadcast %118 : vector<5x1xf32> to vector<5x5xf32>
    %120 = arith.mulf %115, %119 : vector<5x5xf32>
    %cst_54 = arith.constant dense<0.000000e+00> : vector<5x8xf32>
    %121 = tpu.matmul %120, %109, %cst_54 {dimension_numbers = #tpu.dot_dimension_numbers<[1], [0], [0], [1], [0, 0, 1, 1], [], []>} : vector<5x5xf32>, vector<5x8xf32>, vector<5x8xf32> -> vector<5x8xf32>
    %122 = vector.extract_strided_slice %43 {offsets = [24, 0], sizes = [8, 32], strides = [1, 1]} : vector<32x32xf32> to vector<8x32xf32>
    %cst_55 = arith.constant dense<0.000000e+00> : vector<5x32xf32>
    %123 = tpu.matmul %121, %122, %cst_55 {dimension_numbers = #tpu.dot_dimension_numbers<[1], [0], [0], [1], [0, 0, 1, 1], [], []>} : vector<5x8xf32>, vector<8x32xf32>, vector<5x32xf32> -> vector<5x32xf32>
    %124 = arith.addf %104, %123 : vector<5x32xf32>
    %125 = arith.addf %10, %124 : vector<5x32xf32>
    %c0_56 = arith.constant 0 : index
    %c0_57 = arith.constant 0 : index
    %c0_58 = arith.constant 0 : index
    %126 = vector.load %arg11[%c0_56, %c0_57, %c0_58] : memref<2x1x32xf32, #tpu.memory_space<vmem>>, vector<1x1x32xf32>
    %127 = vector.shape_cast %126 : vector<1x1x32xf32> to vector<1x32xf32>
    %128 = vector.broadcast %127 : vector<1x32xf32> to vector<5x32xf32>
    %129 = arith.addf %125, %128 : vector<5x32xf32>
    %c0_59 = arith.constant 0 : index
    %c0_60 = arith.constant 0 : index
    %c0_61 = arith.constant 0 : index
    %130 = vector.load %arg12[%c0_59, %c0_60, %c0_61] : memref<2x1x32xf32, #tpu.memory_space<vmem>>, vector<1x1x32xf32>
    %131 = vector.shape_cast %130 : vector<1x1x32xf32> to vector<1x32xf32>
    %c0_62 = arith.constant 0 : index
    %c0_63 = arith.constant 0 : index
    %c0_64 = arith.constant 0 : index
    %132 = vector.load %arg13[%c0_62, %c0_63, %c0_64] : memref<2x1x32xf32, #tpu.memory_space<vmem>>, vector<1x1x32xf32>
    %133 = vector.shape_cast %132 : vector<1x1x32xf32> to vector<1x32xf32>
    %cst_65 = arith.constant dense<0.000000e+00> : vector<5xf32>
    %134 = vector.multi_reduction <add>, %129, %cst_65 [1] : vector<5x32xf32> to vector<5xf32>
    %135 = vector.shape_cast %134 : vector<5xf32> to vector<5x1xf32>
    %cst_66 = arith.constant 3.200000e+01 : f32
    %136 = vector.broadcast %cst_66 : f32 to vector<5x1xf32>
    %137 = arith.divf %135, %136 : vector<5x1xf32>
    %138 = vector.broadcast %137 : vector<5x1xf32> to vector<5x32xf32>
    %139 = arith.subf %129, %138 : vector<5x32xf32>
    %140 = arith.mulf %139, %139 : vector<5x32xf32>
    %cst_67 = arith.constant dense<0.000000e+00> : vector<5xf32>
    %141 = vector.multi_reduction <add>, %140, %cst_67 [1] : vector<5x32xf32> to vector<5xf32>
    %142 = vector.shape_cast %141 : vector<5xf32> to vector<5x1xf32>
    %cst_68 = arith.constant 3.200000e+01 : f32
    %143 = vector.broadcast %cst_68 : f32 to vector<5x1xf32>
    %144 = arith.divf %142, %143 : vector<5x1xf32>
    %cst_69 = arith.constant 9.99999996E-13 : f32
    %145 = vector.broadcast %cst_69 : f32 to vector<5x1xf32>
    %146 = arith.addf %144, %145 : vector<5x1xf32>
    %147 = math.rsqrt %146 : vector<5x1xf32>
    %148 = vector.broadcast %147 : vector<5x1xf32> to vector<5x32xf32>
    %149 = arith.mulf %139, %148 : vector<5x32xf32>
    %150 = vector.broadcast %131 : vector<1x32xf32> to vector<5x32xf32>
    %151 = arith.mulf %149, %150 : vector<5x32xf32>
    %152 = vector.broadcast %133 : vector<1x32xf32> to vector<5x32xf32>
    %153 = arith.addf %151, %152 : vector<5x32xf32>
    %c0_70 = arith.constant 0 : index
    %c0_71 = arith.constant 0 : index
    %c0_72 = arith.constant 0 : index
    %154 = vector.load %arg14[%c0_70, %c0_71, %c0_72] : memref<2x32x64xf32, #tpu.memory_space<vmem>>, vector<1x32x64xf32>
    %155 = vector.shape_cast %154 : vector<1x32x64xf32> to vector<32x64xf32>
    %cst_73 = arith.constant dense<0.000000e+00> : vector<5x64xf32>
    %156 = tpu.matmul %153, %155, %cst_73 {dimension_numbers = #tpu.dot_dimension_numbers<[1], [0], [0], [1], [0, 0, 1, 1], [], []>} : vector<5x32xf32>, vector<32x64xf32>, vector<5x64xf32> -> vector<5x64xf32>
    %c0_74 = arith.constant 0 : index
    %c0_75 = arith.constant 0 : index
    %c0_76 = arith.constant 0 : index
    %157 = vector.load %arg15[%c0_74, %c0_75, %c0_76] : memref<2x1x64xf32, #tpu.memory_space<vmem>>, vector<1x1x64xf32>
    %158 = vector.shape_cast %157 : vector<1x1x64xf32> to vector<1x64xf32>
    %159 = vector.broadcast %158 : vector<1x64xf32> to vector<5x64xf32>
    %160 = arith.addf %156, %159 : vector<5x64xf32>
    %cst_77 = arith.constant 5.000000e-01 : f32
    %161 = vector.broadcast %cst_77 : f32 to vector<5x64xf32>
    %162 = arith.mulf %161, %160 : vector<5x64xf32>
    %cst_78 = arith.constant 0.707106769 : f32
    %163 = vector.broadcast %cst_78 : f32 to vector<5x64xf32>
    %164 = arith.mulf %160, %163 : vector<5x64xf32>
    %165 = math.erf %164 : vector<5x64xf32>
    %cst_79 = arith.constant 1.000000e+00 : f32
    %166 = vector.broadcast %cst_79 : f32 to vector<5x64xf32>
    %167 = arith.addf %166, %165 : vector<5x64xf32>
    %168 = arith.mulf %162, %167 : vector<5x64xf32>
    %c0_80 = arith.constant 0 : index
    %c0_81 = arith.constant 0 : index
    %c0_82 = arith.constant 0 : index
    %169 = vector.load %arg16[%c0_80, %c0_81, %c0_82] : memref<2x64x32xf32, #tpu.memory_space<vmem>>, vector<1x64x32xf32>
    %170 = vector.shape_cast %169 : vector<1x64x32xf32> to vector<64x32xf32>
    %cst_83 = arith.constant dense<0.000000e+00> : vector<5x32xf32>
    %171 = tpu.matmul %168, %170, %cst_83 {dimension_numbers = #tpu.dot_dimension_numbers<[1], [0], [0], [1], [0, 0, 1, 1], [], []>} : vector<5x64xf32>, vector<64x32xf32>, vector<5x32xf32> -> vector<5x32xf32>
    %172 = arith.addf %129, %171 : vector<5x32xf32>
    %c0_84 = arith.constant 0 : index
    %c0_85 = arith.constant 0 : index
    %c0_86 = arith.constant 0 : index
    %173 = vector.load %arg17[%c0_84, %c0_85, %c0_86] : memref<2x1x32xf32, #tpu.memory_space<vmem>>, vector<1x1x32xf32>
    %174 = vector.shape_cast %173 : vector<1x1x32xf32> to vector<1x32xf32>
    %175 = vector.broadcast %174 : vector<1x32xf32> to vector<5x32xf32>
    %176 = arith.addf %172, %175 : vector<5x32xf32>
    %c1 = arith.constant 1 : index
    %c0_87 = arith.constant 0 : index
    %c0_88 = arith.constant 0 : index
    %177 = vector.load %arg6[%c1, %c0_87, %c0_88] : memref<2x1x32xf32, #tpu.memory_space<vmem>>, vector<1x1x32xf32>
    %178 = vector.shape_cast %177 : vector<1x1x32xf32> to vector<1x32xf32>
    %c1_89 = arith.constant 1 : index
    %c0_90 = arith.constant 0 : index
    %c0_91 = arith.constant 0 : index
    %179 = vector.load %arg7[%c1_89, %c0_90, %c0_91] : memref<2x1x32xf32, #tpu.memory_space<vmem>>, vector<1x1x32xf32>
    %180 = vector.shape_cast %179 : vector<1x1x32xf32> to vector<1x32xf32>
    %cst_92 = arith.constant dense<0.000000e+00> : vector<5xf32>
    %181 = vector.multi_reduction <add>, %176, %cst_92 [1] : vector<5x32xf32> to vector<5xf32>
    %182 = vector.shape_cast %181 : vector<5xf32> to vector<5x1xf32>
    %cst_93 = arith.constant 3.200000e+01 : f32
    %183 = vector.broadcast %cst_93 : f32 to vector<5x1xf32>
    %184 = arith.divf %182, %183 : vector<5x1xf32>
    %185 = vector.broadcast %184 : vector<5x1xf32> to vector<5x32xf32>
    %186 = arith.subf %176, %185 : vector<5x32xf32>
    %187 = arith.mulf %186, %186 : vector<5x32xf32>
    %cst_94 = arith.constant dense<0.000000e+00> : vector<5xf32>
    %188 = vector.multi_reduction <add>, %187, %cst_94 [1] : vector<5x32xf32> to vector<5xf32>
    %189 = vector.shape_cast %188 : vector<5xf32> to vector<5x1xf32>
    %cst_95 = arith.constant 3.200000e+01 : f32
    %190 = vector.broadcast %cst_95 : f32 to vector<5x1xf32>
    %191 = arith.divf %189, %190 : vector<5x1xf32>
    %cst_96 = arith.constant 9.99999996E-13 : f32
    %192 = vector.broadcast %cst_96 : f32 to vector<5x1xf32>
    %193 = arith.addf %191, %192 : vector<5x1xf32>
    %194 = math.rsqrt %193 : vector<5x1xf32>
    %195 = vector.broadcast %194 : vector<5x1xf32> to vector<5x32xf32>
    %196 = arith.mulf %186, %195 : vector<5x32xf32>
    %197 = vector.broadcast %178 : vector<1x32xf32> to vector<5x32xf32>
    %198 = arith.mulf %196, %197 : vector<5x32xf32>
    %199 = vector.broadcast %180 : vector<1x32xf32> to vector<5x32xf32>
    %200 = arith.addf %198, %199 : vector<5x32xf32>
    %c1_97 = arith.constant 1 : index
    %c0_98 = arith.constant 0 : index
    %c0_99 = arith.constant 0 : index
    %201 = vector.load %arg8[%c1_97, %c0_98, %c0_99] : memref<2x32x96xf32, #tpu.memory_space<vmem>>, vector<1x32x96xf32>
    %202 = vector.shape_cast %201 : vector<1x32x96xf32> to vector<32x96xf32>
    %cst_100 = arith.constant dense<0.000000e+00> : vector<5x96xf32>
    %203 = tpu.matmul %200, %202, %cst_100 {dimension_numbers = #tpu.dot_dimension_numbers<[1], [0], [0], [1], [0, 0, 1, 1], [], []>} : vector<5x32xf32>, vector<32x96xf32>, vector<5x96xf32> -> vector<5x96xf32>
    %c1_101 = arith.constant 1 : index
    %c0_102 = arith.constant 0 : index
    %c0_103 = arith.constant 0 : index
    %204 = vector.load %arg9[%c1_101, %c0_102, %c0_103] : memref<2x1x96xf32, #tpu.memory_space<vmem>>, vector<1x1x96xf32>
    %205 = vector.shape_cast %204 : vector<1x1x96xf32> to vector<1x96xf32>
    %206 = vector.broadcast %205 : vector<1x96xf32> to vector<5x96xf32>
    %207 = arith.addf %203, %206 : vector<5x96xf32>
    %c1_104 = arith.constant 1 : index
    %c0_105 = arith.constant 0 : index
    %c0_106 = arith.constant 0 : index
    %208 = vector.load %arg10[%c1_104, %c0_105, %c0_106] : memref<2x32x32xf32, #tpu.memory_space<vmem>>, vector<1x32x32xf32>
    %209 = vector.shape_cast %208 : vector<1x32x32xf32> to vector<32x32xf32>
    %cst_107 = arith.constant 0.000000e+00 : f32
    %210 = vector.broadcast %cst_107 : f32 to vector<5x32xf32>
    %211 = vector.extract_strided_slice %207 {offsets = [0, 0], sizes = [5, 8], strides = [1, 1]} : vector<5x96xf32> to vector<5x8xf32>
    %cst_108 = arith.constant 0.353553385 : f32
    %212 = vector.broadcast %cst_108 : f32 to vector<5x8xf32>
    %213 = arith.mulf %211, %212 : vector<5x8xf32>
    %214 = vector.extract_strided_slice %207 {offsets = [0, 32], sizes = [5, 8], strides = [1, 1]} : vector<5x96xf32> to vector<5x8xf32>
    %215 = vector.extract_strided_slice %207 {offsets = [0, 64], sizes = [5, 8], strides = [1, 1]} : vector<5x96xf32> to vector<5x8xf32>
    "tpu.trace_start"() <{level = 10 : i32, message = "qd,kd->qk"}> : () -> ()
    %cst_109 = arith.constant dense<0.000000e+00> : vector<5x5xf32>
    %216 = tpu.matmul %213, %214, %cst_109 {dimension_numbers = #tpu.dot_dimension_numbers<[1], [1], [0], [0], [0, 0, 1, 0], [], []>} : vector<5x8xf32>, vector<5x8xf32>, vector<5x5xf32> -> vector<5x5xf32>
    "tpu.trace_stop"() : () -> ()
    %cst_110 = arith.constant dense<0xFF800000> : vector<5xf32>
    %217 = vector.multi_reduction <maximumf>, %216, %cst_110 [1] : vector<5x5xf32> to vector<5xf32>
    %218 = vector.shape_cast %217 : vector<5xf32> to vector<5x1xf32>
    %219 = vector.broadcast %218 : vector<5x1xf32> to vector<5x5xf32>
    %220 = arith.subf %216, %219 : vector<5x5xf32>
    %221 = math.exp %220 : vector<5x5xf32>
    %cst_111 = arith.constant dense<0.000000e+00> : vector<5xf32>
    %222 = vector.multi_reduction <add>, %221, %cst_111 [1] : vector<5x5xf32> to vector<5xf32>
    %223 = vector.shape_cast %222 : vector<5xf32> to vector<5x1xf32>
    %224 = tpu.reciprocal %223 {approx = true} : vector<5x1xf32> -> vector<5x1xf32>
    %225 = vector.broadcast %224 : vector<5x1xf32> to vector<5x5xf32>
    %226 = arith.mulf %221, %225 : vector<5x5xf32>
    %cst_112 = arith.constant dense<0.000000e+00> : vector<5x8xf32>
    %227 = tpu.matmul %226, %215, %cst_112 {dimension_numbers = #tpu.dot_dimension_numbers<[1], [0], [0], [1], [0, 0, 1, 1], [], []>} : vector<5x5xf32>, vector<5x8xf32>, vector<5x8xf32> -> vector<5x8xf32>
    %228 = vector.extract_strided_slice %209 {offsets = [0, 0], sizes = [8, 32], strides = [1, 1]} : vector<32x32xf32> to vector<8x32xf32>
    %cst_113 = arith.constant dense<0.000000e+00> : vector<5x32xf32>
    %229 = tpu.matmul %227, %228, %cst_113 {dimension_numbers = #tpu.dot_dimension_numbers<[1], [0], [0], [1], [0, 0, 1, 1], [], []>} : vector<5x8xf32>, vector<8x32xf32>, vector<5x32xf32> -> vector<5x32xf32>
    %230 = arith.addf %210, %229 : vector<5x32xf32>
    %231 = vector.extract_strided_slice %207 {offsets = [0, 8], sizes = [5, 8], strides = [1, 1]} : vector<5x96xf32> to vector<5x8xf32>
    %cst_114 = arith.constant 0.353553385 : f32
    %232 = vector.broadcast %cst_114 : f32 to vector<5x8xf32>
    %233 = arith.mulf %231, %232 : vector<5x8xf32>
    %234 = vector.extract_strided_slice %207 {offsets = [0, 40], sizes = [5, 8], strides = [1, 1]} : vector<5x96xf32> to vector<5x8xf32>
    %235 = vector.extract_strided_slice %207 {offsets = [0, 72], sizes = [5, 8], strides = [1, 1]} : vector<5x96xf32> to vector<5x8xf32>
    "tpu.trace_start"() <{level = 10 : i32, message = "qd,kd->qk"}> : () -> ()
    %cst_115 = arith.constant dense<0.000000e+00> : vector<5x5xf32>
    %236 = tpu.matmul %233, %234, %cst_115 {dimension_numbers = #tpu.dot_dimension_numbers<[1], [1], [0], [0], [0, 0, 1, 0], [], []>} : vector<5x8xf32>, vector<5x8xf32>, vector<5x5xf32> -> vector<5x5xf32>
    "tpu.trace_stop"() : () -> ()
    %cst_116 = arith.constant dense<0xFF800000> : vector<5xf32>
    %237 = vector.multi_reduction <maximumf>, %236, %cst_116 [1] : vector<5x5xf32> to vector<5xf32>
    %238 = vector.shape_cast %237 : vector<5xf32> to vector<5x1xf32>
    %239 = vector.broadcast %238 : vector<5x1xf32> to vector<5x5xf32>
    %240 = arith.subf %236, %239 : vector<5x5xf32>
    %241 = math.exp %240 : vector<5x5xf32>
    %cst_117 = arith.constant dense<0.000000e+00> : vector<5xf32>
    %242 = vector.multi_reduction <add>, %241, %cst_117 [1] : vector<5x5xf32> to vector<5xf32>
    %243 = vector.shape_cast %242 : vector<5xf32> to vector<5x1xf32>
    %244 = tpu.reciprocal %243 {approx = true} : vector<5x1xf32> -> vector<5x1xf32>
    %245 = vector.broadcast %244 : vector<5x1xf32> to vector<5x5xf32>
    %246 = arith.mulf %241, %245 : vector<5x5xf32>
    %cst_118 = arith.constant dense<0.000000e+00> : vector<5x8xf32>
    %247 = tpu.matmul %246, %235, %cst_118 {dimension_numbers = #tpu.dot_dimension_numbers<[1], [0], [0], [1], [0, 0, 1, 1], [], []>} : vector<5x5xf32>, vector<5x8xf32>, vector<5x8xf32> -> vector<5x8xf32>
    %248 = vector.extract_strided_slice %209 {offsets = [8, 0], sizes = [8, 32], strides = [1, 1]} : vector<32x32xf32> to vector<8x32xf32>
    %cst_119 = arith.constant dense<0.000000e+00> : vector<5x32xf32>
    %249 = tpu.matmul %247, %248, %cst_119 {dimension_numbers = #tpu.dot_dimension_numbers<[1], [0], [0], [1], [0, 0, 1, 1], [], []>} : vector<5x8xf32>, vector<8x32xf32>, vector<5x32xf32> -> vector<5x32xf32>
    %250 = arith.addf %230, %249 : vector<5x32xf32>
    %251 = vector.extract_strided_slice %207 {offsets = [0, 16], sizes = [5, 8], strides = [1, 1]} : vector<5x96xf32> to vector<5x8xf32>
    %cst_120 = arith.constant 0.353553385 : f32
    %252 = vector.broadcast %cst_120 : f32 to vector<5x8xf32>
    %253 = arith.mulf %251, %252 : vector<5x8xf32>
    %254 = vector.extract_strided_slice %207 {offsets = [0, 48], sizes = [5, 8], strides = [1, 1]} : vector<5x96xf32> to vector<5x8xf32>
    %255 = vector.extract_strided_slice %207 {offsets = [0, 80], sizes = [5, 8], strides = [1, 1]} : vector<5x96xf32> to vector<5x8xf32>
    "tpu.trace_start"() <{level = 10 : i32, message = "qd,kd->qk"}> : () -> ()
    %cst_121 = arith.constant dense<0.000000e+00> : vector<5x5xf32>
    %256 = tpu.matmul %253, %254, %cst_121 {dimension_numbers = #tpu.dot_dimension_numbers<[1], [1], [0], [0], [0, 0, 1, 0], [], []>} : vector<5x8xf32>, vector<5x8xf32>, vector<5x5xf32> -> vector<5x5xf32>
    "tpu.trace_stop"() : () -> ()
    %cst_122 = arith.constant dense<0xFF800000> : vector<5xf32>
    %257 = vector.multi_reduction <maximumf>, %256, %cst_122 [1] : vector<5x5xf32> to vector<5xf32>
    %258 = vector.shape_cast %257 : vector<5xf32> to vector<5x1xf32>
    %259 = vector.broadcast %258 : vector<5x1xf32> to vector<5x5xf32>
    %260 = arith.subf %256, %259 : vector<5x5xf32>
    %261 = math.exp %260 : vector<5x5xf32>
    %cst_123 = arith.constant dense<0.000000e+00> : vector<5xf32>
    %262 = vector.multi_reduction <add>, %261, %cst_123 [1] : vector<5x5xf32> to vector<5xf32>
    %263 = vector.shape_cast %262 : vector<5xf32> to vector<5x1xf32>
    %264 = tpu.reciprocal %263 {approx = true} : vector<5x1xf32> -> vector<5x1xf32>
    %265 = vector.broadcast %264 : vector<5x1xf32> to vector<5x5xf32>
    %266 = arith.mulf %261, %265 : vector<5x5xf32>
    %cst_124 = arith.constant dense<0.000000e+00> : vector<5x8xf32>
    %267 = tpu.matmul %266, %255, %cst_124 {dimension_numbers = #tpu.dot_dimension_numbers<[1], [0], [0], [1], [0, 0, 1, 1], [], []>} : vector<5x5xf32>, vector<5x8xf32>, vector<5x8xf32> -> vector<5x8xf32>
    %268 = vector.extract_strided_slice %209 {offsets = [16, 0], sizes = [8, 32], strides = [1, 1]} : vector<32x32xf32> to vector<8x32xf32>
    %cst_125 = arith.constant dense<0.000000e+00> : vector<5x32xf32>
    %269 = tpu.matmul %267, %268, %cst_125 {dimension_numbers = #tpu.dot_dimension_numbers<[1], [0], [0], [1], [0, 0, 1, 1], [], []>} : vector<5x8xf32>, vector<8x32xf32>, vector<5x32xf32> -> vector<5x32xf32>
    %270 = arith.addf %250, %269 : vector<5x32xf32>
    %271 = vector.extract_strided_slice %207 {offsets = [0, 24], sizes = [5, 8], strides = [1, 1]} : vector<5x96xf32> to vector<5x8xf32>
    %cst_126 = arith.constant 0.353553385 : f32
    %272 = vector.broadcast %cst_126 : f32 to vector<5x8xf32>
    %273 = arith.mulf %271, %272 : vector<5x8xf32>
    %274 = vector.extract_strided_slice %207 {offsets = [0, 56], sizes = [5, 8], strides = [1, 1]} : vector<5x96xf32> to vector<5x8xf32>
    %275 = vector.extract_strided_slice %207 {offsets = [0, 88], sizes = [5, 8], strides = [1, 1]} : vector<5x96xf32> to vector<5x8xf32>
    "tpu.trace_start"() <{level = 10 : i32, message = "qd,kd->qk"}> : () -> ()
    %cst_127 = arith.constant dense<0.000000e+00> : vector<5x5xf32>
    %276 = tpu.matmul %273, %274, %cst_127 {dimension_numbers = #tpu.dot_dimension_numbers<[1], [1], [0], [0], [0, 0, 1, 0], [], []>} : vector<5x8xf32>, vector<5x8xf32>, vector<5x5xf32> -> vector<5x5xf32>
    "tpu.trace_stop"() : () -> ()
    %cst_128 = arith.constant dense<0xFF800000> : vector<5xf32>
    %277 = vector.multi_reduction <maximumf>, %276, %cst_128 [1] : vector<5x5xf32> to vector<5xf32>
    %278 = vector.shape_cast %277 : vector<5xf32> to vector<5x1xf32>
    %279 = vector.broadcast %278 : vector<5x1xf32> to vector<5x5xf32>
    %280 = arith.subf %276, %279 : vector<5x5xf32>
    %281 = math.exp %280 : vector<5x5xf32>
    %cst_129 = arith.constant dense<0.000000e+00> : vector<5xf32>
    %282 = vector.multi_reduction <add>, %281, %cst_129 [1] : vector<5x5xf32> to vector<5xf32>
    %283 = vector.shape_cast %282 : vector<5xf32> to vector<5x1xf32>
    %284 = tpu.reciprocal %283 {approx = true} : vector<5x1xf32> -> vector<5x1xf32>
    %285 = vector.broadcast %284 : vector<5x1xf32> to vector<5x5xf32>
    %286 = arith.mulf %281, %285 : vector<5x5xf32>
    %cst_130 = arith.constant dense<0.000000e+00> : vector<5x8xf32>
    %287 = tpu.matmul %286, %275, %cst_130 {dimension_numbers = #tpu.dot_dimension_numbers<[1], [0], [0], [1], [0, 0, 1, 1], [], []>} : vector<5x5xf32>, vector<5x8xf32>, vector<5x8xf32> -> vector<5x8xf32>
    %288 = vector.extract_strided_slice %209 {offsets = [24, 0], sizes = [8, 32], strides = [1, 1]} : vector<32x32xf32> to vector<8x32xf32>
    %cst_131 = arith.constant dense<0.000000e+00> : vector<5x32xf32>
    %289 = tpu.matmul %287, %288, %cst_131 {dimension_numbers = #tpu.dot_dimension_numbers<[1], [0], [0], [1], [0, 0, 1, 1], [], []>} : vector<5x8xf32>, vector<8x32xf32>, vector<5x32xf32> -> vector<5x32xf32>
    %290 = arith.addf %270, %289 : vector<5x32xf32>
    %291 = arith.addf %176, %290 : vector<5x32xf32>
    %c1_132 = arith.constant 1 : index
    %c0_133 = arith.constant 0 : index
    %c0_134 = arith.constant 0 : index
    %292 = vector.load %arg11[%c1_132, %c0_133, %c0_134] : memref<2x1x32xf32, #tpu.memory_space<vmem>>, vector<1x1x32xf32>
    %293 = vector.shape_cast %292 : vector<1x1x32xf32> to vector<1x32xf32>
    %294 = vector.broadcast %293 : vector<1x32xf32> to vector<5x32xf32>
    %295 = arith.addf %291, %294 : vector<5x32xf32>
    %c1_135 = arith.constant 1 : index
    %c0_136 = arith.constant 0 : index
    %c0_137 = arith.constant 0 : index
    %296 = vector.load %arg12[%c1_135, %c0_136, %c0_137] : memref<2x1x32xf32, #tpu.memory_space<vmem>>, vector<1x1x32xf32>
    %297 = vector.shape_cast %296 : vector<1x1x32xf32> to vector<1x32xf32>
    %c1_138 = arith.constant 1 : index
    %c0_139 = arith.constant 0 : index
    %c0_140 = arith.constant 0 : index
    %298 = vector.load %arg13[%c1_138, %c0_139, %c0_140] : memref<2x1x32xf32, #tpu.memory_space<vmem>>, vector<1x1x32xf32>
    %299 = vector.shape_cast %298 : vector<1x1x32xf32> to vector<1x32xf32>
    %cst_141 = arith.constant dense<0.000000e+00> : vector<5xf32>
    %300 = vector.multi_reduction <add>, %295, %cst_141 [1] : vector<5x32xf32> to vector<5xf32>
    %301 = vector.shape_cast %300 : vector<5xf32> to vector<5x1xf32>
    %cst_142 = arith.constant 3.200000e+01 : f32
    %302 = vector.broadcast %cst_142 : f32 to vector<5x1xf32>
    %303 = arith.divf %301, %302 : vector<5x1xf32>
    %304 = vector.broadcast %303 : vector<5x1xf32> to vector<5x32xf32>
    %305 = arith.subf %295, %304 : vector<5x32xf32>
    %306 = arith.mulf %305, %305 : vector<5x32xf32>
    %cst_143 = arith.constant dense<0.000000e+00> : vector<5xf32>
    %307 = vector.multi_reduction <add>, %306, %cst_143 [1] : vector<5x32xf32> to vector<5xf32>
    %308 = vector.shape_cast %307 : vector<5xf32> to vector<5x1xf32>
    %cst_144 = arith.constant 3.200000e+01 : f32
    %309 = vector.broadcast %cst_144 : f32 to vector<5x1xf32>
    %310 = arith.divf %308, %309 : vector<5x1xf32>
    %cst_145 = arith.constant 9.99999996E-13 : f32
    %311 = vector.broadcast %cst_145 : f32 to vector<5x1xf32>
    %312 = arith.addf %310, %311 : vector<5x1xf32>
    %313 = math.rsqrt %312 : vector<5x1xf32>
    %314 = vector.broadcast %313 : vector<5x1xf32> to vector<5x32xf32>
    %315 = arith.mulf %305, %314 : vector<5x32xf32>
    %316 = vector.broadcast %297 : vector<1x32xf32> to vector<5x32xf32>
    %317 = arith.mulf %315, %316 : vector<5x32xf32>
    %318 = vector.broadcast %299 : vector<1x32xf32> to vector<5x32xf32>
    %319 = arith.addf %317, %318 : vector<5x32xf32>
    %c1_146 = arith.constant 1 : index
    %c0_147 = arith.constant 0 : index
    %c0_148 = arith.constant 0 : index
    %320 = vector.load %arg14[%c1_146, %c0_147, %c0_148] : memref<2x32x64xf32, #tpu.memory_space<vmem>>, vector<1x32x64xf32>
    %321 = vector.shape_cast %320 : vector<1x32x64xf32> to vector<32x64xf32>
    %cst_149 = arith.constant dense<0.000000e+00> : vector<5x64xf32>
    %322 = tpu.matmul %319, %321, %cst_149 {dimension_numbers = #tpu.dot_dimension_numbers<[1], [0], [0], [1], [0, 0, 1, 1], [], []>} : vector<5x32xf32>, vector<32x64xf32>, vector<5x64xf32> -> vector<5x64xf32>
    %c1_150 = arith.constant 1 : index
    %c0_151 = arith.constant 0 : index
    %c0_152 = arith.constant 0 : index
    %323 = vector.load %arg15[%c1_150, %c0_151, %c0_152] : memref<2x1x64xf32, #tpu.memory_space<vmem>>, vector<1x1x64xf32>
    %324 = vector.shape_cast %323 : vector<1x1x64xf32> to vector<1x64xf32>
    %325 = vector.broadcast %324 : vector<1x64xf32> to vector<5x64xf32>
    %326 = arith.addf %322, %325 : vector<5x64xf32>
    %cst_153 = arith.constant 5.000000e-01 : f32
    %327 = vector.broadcast %cst_153 : f32 to vector<5x64xf32>
    %328 = arith.mulf %327, %326 : vector<5x64xf32>
    %cst_154 = arith.constant 0.707106769 : f32
    %329 = vector.broadcast %cst_154 : f32 to vector<5x64xf32>
    %330 = arith.mulf %326, %329 : vector<5x64xf32>
    %331 = math.erf %330 : vector<5x64xf32>
    %cst_155 = arith.constant 1.000000e+00 : f32
    %332 = vector.broadcast %cst_155 : f32 to vector<5x64xf32>
    %333 = arith.addf %332, %331 : vector<5x64xf32>
    %334 = arith.mulf %328, %333 : vector<5x64xf32>
    %c1_156 = arith.constant 1 : index
    %c0_157 = arith.constant 0 : index
    %c0_158 = arith.constant 0 : index
    %335 = vector.load %arg16[%c1_156, %c0_157, %c0_158] : memref<2x64x32xf32, #tpu.memory_space<vmem>>, vector<1x64x32xf32>
    %336 = vector.shape_cast %335 : vector<1x64x32xf32> to vector<64x32xf32>
    %cst_159 = arith.constant dense<0.000000e+00> : vector<5x32xf32>
    %337 = tpu.matmul %334, %336, %cst_159 {dimension_numbers = #tpu.dot_dimension_numbers<[1], [0], [0], [1], [0, 0, 1, 1], [], []>} : vector<5x64xf32>, vector<64x32xf32>, vector<5x32xf32> -> vector<5x32xf32>
    %338 = arith.addf %295, %337 : vector<5x32xf32>
    %c1_160 = arith.constant 1 : index
    %c0_161 = arith.constant 0 : index
    %c0_162 = arith.constant 0 : index
    %339 = vector.load %arg17[%c1_160, %c0_161, %c0_162] : memref<2x1x32xf32, #tpu.memory_space<vmem>>, vector<1x1x32xf32>
    %340 = vector.shape_cast %339 : vector<1x1x32xf32> to vector<1x32xf32>
    %341 = vector.broadcast %340 : vector<1x32xf32> to vector<5x32xf32>
    %342 = arith.addf %338, %341 : vector<5x32xf32>
    %c0_163 = arith.constant 0 : index
    %c0_164 = arith.constant 0 : index
    %343 = vector.load %arg18[%c0_163, %c0_164] : memref<1x32xf32, #tpu.memory_space<vmem>>, vector<1x32xf32>
    %c0_165 = arith.constant 0 : index
    %c0_166 = arith.constant 0 : index
    %344 = vector.load %arg19[%c0_165, %c0_166] : memref<1x32xf32, #tpu.memory_space<vmem>>, vector<1x32xf32>
    %cst_167 = arith.constant dense<0.000000e+00> : vector<5xf32>
    %345 = vector.multi_reduction <add>, %342, %cst_167 [1] : vector<5x32xf32> to vector<5xf32>
    %346 = vector.shape_cast %345 : vector<5xf32> to vector<5x1xf32>
    %cst_168 = arith.constant 3.200000e+01 : f32
    %347 = vector.broadcast %cst_168 : f32 to vector<5x1xf32>
    %348 = arith.divf %346, %347 : vector<5x1xf32>
    %349 = vector.broadcast %348 : vector<5x1xf32> to vector<5x32xf32>
    %350 = arith.subf %342, %349 : vector<5x32xf32>
    %351 = arith.mulf %350, %350 : vector<5x32xf32>
    %cst_169 = arith.constant dense<0.000000e+00> : vector<5xf32>
    %352 = vector.multi_reduction <add>, %351, %cst_169 [1] : vector<5x32xf32> to vector<5xf32>
    %353 = vector.shape_cast %352 : vector<5xf32> to vector<5x1xf32>
    %cst_170 = arith.constant 3.200000e+01 : f32
    %354 = vector.broadcast %cst_170 : f32 to vector<5x1xf32>
    %355 = arith.divf %353, %354 : vector<5x1xf32>
    %cst_171 = arith.constant 9.99999996E-13 : f32
    %356 = vector.broadcast %cst_171 : f32 to vector<5x1xf32>
    %357 = arith.addf %355, %356 : vector<5x1xf32>
    %358 = math.rsqrt %357 : vector<5x1xf32>
    %359 = vector.broadcast %358 : vector<5x1xf32> to vector<5x32xf32>
    %360 = arith.mulf %350, %359 : vector<5x32xf32>
    %361 = vector.broadcast %343 : vector<1x32xf32> to vector<5x32xf32>
    %362 = arith.mulf %360, %361 : vector<5x32xf32>
    %363 = vector.broadcast %344 : vector<1x32xf32> to vector<5x32xf32>
    %364 = arith.addf %362, %363 : vector<5x32xf32>
    %c0_172 = arith.constant 0 : index
    %c0_173 = arith.constant 0 : index
    %c0_174 = arith.constant 0 : index
    %365 = vector.load %arg20[%c0_172, %c0_173, %c0_174] : memref<1x5x32xf32, #tpu.memory_space<vmem>>, vector<1x5x32xf32>
    %366 = vector.shape_cast %365 : vector<1x5x32xf32> to vector<5x32xf32>
    %367 = vector.shape_cast %364 : vector<5x32xf32> to vector<1x5x32xf32>
    tpu.vector_store %arg20[%c0_172, %c0_173, %c0_174], %367 {strides = array<i32>} : memref<1x5x32xf32, #tpu.memory_space<vmem>>, vector<1x5x32xf32>,
    return
  }
  func.func @transform_0(%arg0: i32) -> (i32, i32, i32) {
    %c0_i32 = arith.constant 0 : i32
    %c0_i32_0 = arith.constant 0 : i32
    %c0_i32_1 = arith.constant 0 : i32
    return %arg0, %c0_i32, %c0_i32_0 : i32, i32, i32
  }
  func.func @transform_1(%arg0: i32) -> (i32, i32) {
    %c0_i32 = arith.constant 0 : i32
    %c0_i32_0 = arith.constant 0 : i32
    %c0_i32_1 = arith.constant 0 : i32
    return %c0_i32, %c0_i32_0 : i32, i32
  }
  func.func @transform_2(%arg0: i32) -> (i32, i32) {
    %c0_i32 = arith.constant 0 : i32
    %c0_i32_0 = arith.constant 0 : i32
    %c0_i32_1 = arith.constant 0 : i32
    return %c0_i32, %c0_i32_0 : i32, i32
  }
  func.func @transform_3(%arg0: i32) -> (i32, i32) {
    %c0_i32 = arith.constant 0 : i32
    %c0_i32_0 = arith.constant 0 : i32
    %c0_i32_1 = arith.constant 0 : i32
    return %c0_i32, %c0_i32_0 : i32, i32
  }
  func.func @transform_4(%arg0: i32) -> (i32, i32) {
    %c0_i32 = arith.constant 0 : i32
    %c0_i32_0 = arith.constant 0 : i32
    %c0_i32_1 = arith.constant 0 : i32
    return %c0_i32, %c0_i32_0 : i32, i32
  }
  func.func @transform_5(%arg0: i32) -> (i32, i32, i32) {
    %c0_i32 = arith.constant 0 : i32
    %c0_i32_0 = arith.constant 0 : i32
    %c0_i32_1 = arith.constant 0 : i32
    %c0_i32_2 = arith.constant 0 : i32
    return %c0_i32, %c0_i32_0, %c0_i32_1 : i32, i32, i32
  }
  func.func @transform_6(%arg0: i32) -> (i32, i32, i32) {
    %c0_i32 = arith.constant 0 : i32
    %c0_i32_0 = arith.constant 0 : i32
    %c0_i32_1 = arith.constant 0 : i32
    %c0_i32_2 = arith.constant 0 : i32
    return %c0_i32, %c0_i32_0, %c0_i32_1 : i32, i32, i32
  }
  func.func @transform_7(%arg0: i32) -> (i32, i32, i32) {
    %c0_i32 = arith.constant 0 : i32
    %c0_i32_0 = arith.constant 0 : i32
    %c0_i32_1 = arith.constant 0 : i32
    %c0_i32_2 = arith.constant 0 : i32
    return %c0_i32, %c0_i32_0, %c0_i32_1 : i32, i32, i32
  }
  func.func @transform_8(%arg0: i32) -> (i32, i32, i32) {
    %c0_i32 = arith.constant 0 : i32
    %c0_i32_0 = arith.constant 0 : i32
    %c0_i32_1 = arith.constant 0 : i32
    %c0_i32_2 = arith.constant 0 : i32
    return %c0_i32, %c0_i32_0, %c0_i32_1 : i32, i32, i32
  }
  func.func @transform_9(%arg0: i32) -> (i32, i32, i32) {
    %c0_i32 = arith.constant 0 : i32
    %c0_i32_0 = arith.constant 0 : i32
    %c0_i32_1 = arith.constant 0 : i32
    %c0_i32_2 = arith.constant 0 : i32
    return %c0_i32, %c0_i32_0, %c0_i32_1 : i32, i32, i32
  }
  func.func @transform_10(%arg0: i32) -> (i32, i32, i32) {
    %c0_i32 = arith.constant 0 : i32
    %c0_i32_0 = arith.constant 0 : i32
    %c0_i32_1 = arith.constant 0 : i32
    %c0_i32_2 = arith.constant 0 : i32
    return %c0_i32, %c0_i32_0, %c0_i32_1 : i32, i32, i32
  }
  func.func @transform_11(%arg0: i32) -> (i32, i32, i32) {
    %c0_i32 = arith.constant 0 : i32
    %c0_i32_0 = arith.constant 0 : i32
    %c0_i32_1 = arith.constant 0 : i32
    %c0_i32_2 = arith.constant 0 : i32
    return %c0_i32, %c0_i32_0, %c0_i32_1 : i32, i32, i32
  }
  func.func @transform_12(%arg0: i32) -> (i32, i32, i32) {
    %c0_i32 = arith.constant 0 : i32
    %c0_i32_0 = arith.constant 0 : i32
    %c0_i32_1 = arith.constant 0 : i32
    %c0_i32_2 = arith.constant 0 : i32
    return %c0_i32, %c0_i32_0, %c0_i32_1 : i32, i32, i32
  }
  func.func @transform_13(%arg0: i32) -> (i32, i32, i32) {
    %c0_i32 = arith.constant 0 : i32
    %c0_i32_0 = arith.constant 0 : i32
    %c0_i32_1 = arith.constant 0 : i32
    %c0_i32_2 = arith.constant 0 : i32
    return %c0_i32, %c0_i32_0, %c0_i32_1 : i32, i32, i32
  }
  func.func @transform_14(%arg0: i32) -> (i32, i32, i32) {
    %c0_i32 = arith.constant 0 : i32
    %c0_i32_0 = arith.constant 0 : i32
    %c0_i32_1 = arith.constant 0 : i32
    %c0_i32_2 = arith.constant 0 : i32
    return %c0_i32, %c0_i32_0, %c0_i32_1 : i32, i32, i32
  }
  func.func @transform_15(%arg0: i32) -> (i32, i32, i32) {
    %c0_i32 = arith.constant 0 : i32
    %c0_i32_0 = arith.constant 0 : i32
    %c0_i32_1 = arith.constant 0 : i32
    %c0_i32_2 = arith.constant 0 : i32
    return %c0_i32, %c0_i32_0, %c0_i32_1 : i32, i32, i32
  }
  func.func @transform_16(%arg0: i32) -> (i32, i32, i32) {
    %c0_i32 = arith.constant 0 : i32
    %c0_i32_0 = arith.constant 0 : i32
    %c0_i32_1 = arith.constant 0 : i32
    %c0_i32_2 = arith.constant 0 : i32
    return %c0_i32, %c0_i32_0, %c0_i32_1 : i32, i32, i32
  }
  func.func @transform_17(%arg0: i32) -> (i32, i32) {
    %c0_i32 = arith.constant 0 : i32
    %c0_i32_0 = arith.constant 0 : i32
    %c0_i32_1 = arith.constant 0 : i32
    return %c0_i32, %c0_i32_0 : i32, i32
  }
  func.func @transform_18(%arg0: i32) -> (i32, i32) {
    %c0_i32 = arith.constant 0 : i32
    %c0_i32_0 = arith.constant 0 : i32
    %c0_i32_1 = arith.constant 0 : i32
    return %c0_i32, %c0_i32_0 : i32, i32
  }
  func.func @transform_19(%arg0: i32) -> (i32, i32, i32) {
    %c0_i32 = arith.constant 0 : i32
    %c0_i32_0 = arith.constant 0 : i32
    %c0_i32_1 = arith.constant 0 : i32
    return %arg0, %c0_i32, %c0_i32_0 : i32, i32, i32
  }
}

</mosaic_0001>

<llo_original>
// kernel: vit_backbone_forward.1
$region0: #{vit_backbone_forward.1}
  #allocation0 [shape = 'u32[]', space=smem, size = 0x4, offset = 0x4, fixed_abs, tag = 'smem constant byte address 0x4 - core index']
  #allocation1 [shape = 'u32[144,128]{1,0:T(1,128)}', space=vmem, size = 0x12000, scoped, tag = 'internal scratch']
  %s0 = inlined_call_operand.vmem [shape: f32[2,4,192], index: 0, kind: input, shape index: {}]
  %s1 = inlined_call_operand.vmem [shape: f32[192,32], index: 1, kind: input, shape index: {}]
  %s2 = inlined_call_operand.vmem [shape: f32[1,32], index: 2, kind: input, shape index: {}]
  %s3 = inlined_call_operand.vmem [shape: f32[1,32], index: 3, kind: input, shape index: {}]
  %s4 = inlined_call_operand.vmem [shape: f32[5,32], index: 4, kind: input, shape index: {}]
  %s5 = inlined_call_operand.vmem [shape: f32[2,1,32], index: 5, kind: input, shape index: {}]
  %s6 = inlined_call_operand.vmem [shape: f32[2,1,32], index: 6, kind: input, shape index: {}]
  %s7 = inlined_call_operand.vmem [shape: f32[2,32,96], index: 7, kind: input, shape index: {}]
  %s8 = inlined_call_operand.vmem [shape: f32[2,1,96], index: 8, kind: input, shape index: {}]
  %s9 = inlined_call_operand.vmem [shape: f32[2,32,32], index: 9, kind: input, shape index: {}]
  %s10 = inlined_call_operand.vmem [shape: f32[2,1,32], index: 10, kind: input, shape index: {}]
  %s11 = inlined_call_operand.vmem [shape: f32[2,1,32], index: 11, kind: input, shape index: {}]
  %s12 = inlined_call_operand.vmem [shape: f32[2,1,32], index: 12, kind: input, shape index: {}]
  %s13 = inlined_call_operand.vmem [shape: f32[2,32,64], index: 13, kind: input, shape index: {}]
  %s14 = inlined_call_operand.vmem [shape: f32[2,1,64], index: 14, kind: input, shape index: {}]
  %s15 = inlined_call_operand.vmem [shape: f32[2,64,32], index: 15, kind: input, shape index: {}]
  %s16 = inlined_call_operand.vmem [shape: f32[2,1,32], index: 16, kind: input, shape index: {}]
  %s17 = inlined_call_operand.vmem [shape: f32[1,32], index: 17, kind: input, shape index: {}]
  %s18 = inlined_call_operand.vmem [shape: f32[1,32], index: 18, kind: input, shape index: {}]
  %s19 = inlined_call_operand.vmem [shape: f32[2,5,32], index: 19, kind: output, shape index: {}]
  %s20 = sld [smem:[#allocation0]]
  $region109: #{vit_backbone_forward.1} parent=0
    _
  %s22 = ssub.s32 1, %s20
  %s23 = scalar_select 0, %s22, %s20
  loop: start=0, step=1, limit=4
  $region2: #{vit_backbone_forward.1} parent=0 // loop_pre_header
    _
  $region3: #{vit_backbone_forward.1} parent=0 // loop_header
    %s25 = sphi 0, %s29
    %p26 = scmp.ge.s32.totalorder %s25, 4
    %s35 = sphi 0, %s37
    %s38 = sphi 0, %s35
    %s39 = sphi 0, %s38
    %s55 = sphi 0, %s39
    %s59 = sphi 0, %s59
    %s61 = sphi 0, %s59
    %s62 = sphi 0, %s61
    %s76 = sphi 0, %s62
    %s80 = sphi 0, %s80
    %s82 = sphi 0, %s80
    %s83 = sphi 0, %s82
    %s97 = sphi 0, %s83
    %s101 = sphi 0, %s101
    %s103 = sphi 0, %s101
    %s104 = sphi 0, %s103
    %s118 = sphi 0, %s104
    %s122 = sphi 0, %s122
    %s124 = sphi 0, %s122
    %s125 = sphi 0, %s124
    %s139 = sphi 0, %s125
    %s143 = sphi 0, %s143
    %s145 = sphi 0, %s143
    %s146 = sphi 0, %s145
    %s160 = sphi 0, %s146
    %s164 = sphi 0, %s164
    %s166 = sphi 0, %s164
    %s167 = sphi 0, %s166
    %s181 = sphi 0, %s167
    %s185 = sphi 0, %s185
    %s187 = sphi 0, %s185
    %s188 = sphi 0, %s187
    %s202 = sphi 0, %s188
    %s206 = sphi 0, %s206
    %s208 = sphi 0, %s206
    %s209 = sphi 0, %s208
    %s223 = sphi 0, %s209
    %s227 = sphi 0, %s227
    %s229 = sphi 0, %s227
    %s230 = sphi 0, %s229
    %s244 = sphi 0, %s230
    %s248 = sphi 0, %s248
    %s250 = sphi 0, %s248
    %s251 = sphi 0, %s250
    %s265 = sphi 0, %s251
    %s269 = sphi 0, %s269
    %s271 = sphi 0, %s269
    %s272 = sphi 0, %s271
    %s286 = sphi 0, %s272
    %s290 = sphi 0, %s290
    %s292 = sphi 0, %s290
    %s293 = sphi 0, %s292
    %s307 = sphi 0, %s293
    %s311 = sphi 0, %s311
    %s313 = sphi 0, %s311
    %s314 = sphi 0, %s313
    %s328 = sphi 0, %s314
    %s332 = sphi 0, %s332
    %s334 = sphi 0, %s332
    %s335 = sphi 0, %s334
    %s349 = sphi 0, %s335
    %s353 = sphi 0, %s353
    %s355 = sphi 0, %s353
    %s356 = sphi 0, %s355
    %s370 = sphi 0, %s356
    %s374 = sphi 0, %s374
    %s376 = sphi 0, %s374
    %s377 = sphi 0, %s376
    %s391 = sphi 0, %s377
    %s395 = sphi 0, %s395
    %s397 = sphi 0, %s395
    %s398 = sphi 0, %s397
    %s412 = sphi 0, %s398
    %s416 = sphi 0, %s416
    %s418 = sphi 0, %s416
    %s419 = sphi 0, %s418
    %s433 = sphi 0, %s419
    %s439 = sphi 0, %s441
    %s442 = sphi 0, %s439
    %s443 = sphi 0, %s442
    %s459 = sphi 0, %s443
  $region4: #{vit_backbone_forward.1} parent=0 // loop_header_branch
    %28 = sbr.rel (%p26) target = $region8
  $region5: #{vit_backbone_forward.1} parent=0 // loop_body
    %s30 = ssub.s32 %s25, 1
    %s31 = ssub.s32 %s25, 2
    %s32 = sadd.s32 %s25, 1
    %s33 = ssub.s32 %s25, %s32
    %p34 = scmp.eq.s32.totalorder %s33, 0
    %s36 = sadd.s32 %s35, 1
    %s37 = scalar_select %p34, %s35, %s36
    %p40 = pneg %p34
    %p41 = scmp.eq.s32.totalorder %s25, 1
    %p42 = por %p40, %p41
    %p43 = scmp.ne.s32.totalorder %s35, %s38
    %p44 = scmp.eq.s32.totalorder %s25, 0
    %p45 = por %p43, %p44
    %p46 = scmp.ne.s32.totalorder %s35, %s38
    %p47 = scmp.eq.s32.totalorder %s30, 1
    %p48 = por %p46, %p47
    %p49 = scmp.ne.s32.totalorder %s38, %s39
    %p50 = scmp.eq.s32.totalorder %s30, 0
    %p51 = por %p49, %p50
    %p52 = scmp.ne.s32.totalorder %s38, %s39
    %p53 = scmp.eq.s32.totalorder %s31, 1
    %p54 = por %p52, %p53
    %p56 = scmp.ne.s32.totalorder %s39, %s55
    %p57 = scmp.eq.s32.totalorder %s31, 0
    %p58 = por %p56, %p57
    %s60 = sadd.s32 %s59, 1
    %p63 = scmp.eq.s32.totalorder %s25, 1
    %p64 = scmp.ne.s32.totalorder %s59, %s61
    %p65 = scmp.eq.s32.totalorder %s25, 0
    %p66 = por %p64, %p65
    %p67 = scmp.ne.s32.totalorder %s59, %s61
    %p68 = scmp.eq.s32.totalorder %s30, 1
    %p69 = por %p67, %p68
    %p70 = scmp.ne.s32.totalorder %s61, %s62
    %p71 = scmp.eq.s32.totalorder %s30, 0
    %p72 = por %p70, %p71
    %p73 = scmp.ne.s32.totalorder %s61, %s62
    %p74 = scmp.eq.s32.totalorder %s31, 1
    %p75 = por %p73, %p74
    %p77 = scmp.ne.s32.totalorder %s62, %s76
    %p78 = scmp.eq.s32.totalorder %s31, 0
    %p79 = por %p77, %p78
    %s81 = sadd.s32 %s80, 1
    %p84 = scmp.eq.s32.totalorder %s25, 1
    %p85 = scmp.ne.s32.totalorder %s80, %s82
    %p86 = scmp.eq.s32.totalorder %s25, 0
    %p87 = por %p85, %p86
    %p88 = scmp.ne.s32.totalorder %s80, %s82
    %p89 = scmp.eq.s32.totalorder %s30, 1
    %p90 = por %p88, %p89
    %p91 = scmp.ne.s32.totalorder %s82, %s83
    %p92 = scmp.eq.s32.totalorder %s30, 0
    %p93 = por %p91, %p92
    %p94 = scmp.ne.s32.totalorder %s82, %s83
    %p95 = scmp.eq.s32.totalorder %s31, 1
    %p96 = por %p94, %p95
    %p98 = scmp.ne.s32.totalorder %s83, %s97
    %p99 = scmp.eq.s32.totalorder %s31, 0
    %p100 = por %p98, %p99
    %s102 = sadd.s32 %s101, 1
    %p105 = scmp.eq.s32.totalorder %s25, 1
    %p106 = scmp.ne.s32.totalorder %s101, %s103
    %p107 = scmp.eq.s32.totalorder %s25, 0
    %p108 = por %p106, %p107
    %p109 = scmp.ne.s32.totalorder %s101, %s103
    %p110 = scmp.eq.s32.totalorder %s30, 1
    %p111 = por %p109, %p110
    %p112 = scmp.ne.s32.totalorder %s103, %s104
    %p113 = scmp.eq.s32.totalorder %s30, 0
    %p114 = por %p112, %p113
    %p115 = scmp.ne.s32.totalorder %s103, %s104
    %p116 = scmp.eq.s32.totalorder %s31, 1
    %p117 = por %p115, %p116
    %p119 = scmp.ne.s32.totalorder %s104, %s118
    %p120 = scmp.eq.s32.totalorder %s31, 0
    %p121 = por %p119, %p120
    %s123 = sadd.s32 %s122, 1
    %p126 = scmp.eq.s32.totalorder %s25, 1
    %p127 = scmp.ne.s32.totalorder %s122, %s124
    %p128 = scmp.eq.s32.totalorder %s25, 0
    %p129 = por %p127, %p128
    %p130 = scmp.ne.s32.totalorder %s122, %s124
    %p131 = scmp.eq.s32.totalorder %s30, 1
    %p132 = por %p130, %p131
    %p133 = scmp.ne.s32.totalorder %s124, %s125
    %p134 = scmp.eq.s32.totalorder %s30, 0
    %p135 = por %p133, %p134
    %p136 = scmp.ne.s32.totalorder %s124, %s125
    %p137 = scmp.eq.s32.totalorder %s31, 1
    %p138 = por %p136, %p137
    %p140 = scmp.ne.s32.totalorder %s125, %s139
    %p141 = scmp.eq.s32.totalorder %s31, 0
    %p142 = por %p140, %p141
    %s144 = sadd.s32 %s143, 1
    %p147 = scmp.eq.s32.totalorder %s25, 1
    %p148 = scmp.ne.s32.totalorder %s143, %s145
    %p149 = scmp.eq.s32.totalorder %s25, 0
    %p150 = por %p148, %p149
    %p151 = scmp.ne.s32.totalorder %s143, %s145
    %p152 = scmp.eq.s32.totalorder %s30, 1
    %p153 = por %p151, %p152
    %p154 = scmp.ne.s32.totalorder %s145, %s146
    %p155 = scmp.eq.s32.totalorder %s30, 0
    %p156 = por %p154, %p155
    %p157 = scmp.ne.s32.totalorder %s145, %s146
    %p158 = scmp.eq.s32.totalorder %s31, 1
    %p159 = por %p157, %p158
    %p161 = scmp.ne.s32.totalorder %s146, %s160
    %p162 = scmp.eq.s32.totalorder %s31, 0
    %p163 = por %p161, %p162
    %s165 = sadd.s32 %s164, 1
    %p168 = scmp.eq.s32.totalorder %s25, 1
    %p169 = scmp.ne.s32.totalorder %s164, %s166
    %p170 = scmp.eq.s32.totalorder %s25, 0
    %p171 = por %p169, %p170
    %p172 = scmp.ne.s32.totalorder %s164, %s166
    %p173 = scmp.eq.s32.totalorder %s30, 1
    %p174 = por %p172, %p173
    %p175 = scmp.ne.s32.totalorder %s166, %s167
    %p176 = scmp.eq.s32.totalorder %s30, 0
    %p177 = por %p175, %p176
    %p178 = scmp.ne.s32.totalorder %s166, %s167
    %p179 = scmp.eq.s32.totalorder %s31, 1
    %p180 = por %p178, %p179
    %p182 = scmp.ne.s32.totalorder %s167, %s181
    %p183 = scmp.eq.s32.totalorder %s31, 0
    %p184 = por %p182, %p183
    %s186 = sadd.s32 %s185, 1
    %p189 = scmp.eq.s32.totalorder %s25, 1
    %p190 = scmp.ne.s32.totalorder %s185, %s187
    %p191 = scmp.eq.s32.totalorder %s25, 0
    %p192 = por %p190, %p191
    %p193 = scmp.ne.s32.totalorder %s185, %s187
    %p194 = scmp.eq.s32.totalorder %s30, 1
    %p195 = por %p193, %p194
    %p196 = scmp.ne.s32.totalorder %s187, %s188
    %p197 = scmp.eq.s32.totalorder %s30, 0
    %p198 = por %p196, %p197
    %p199 = scmp.ne.s32.totalorder %s187, %s188
    %p200 = scmp.eq.s32.totalorder %s31, 1
    %p201 = por %p199, %p200
    %p203 = scmp.ne.s32.totalorder %s188, %s202
    %p204 = scmp.eq.s32.totalorder %s31, 0
    %p205 = por %p203, %p204
    %s207 = sadd.s32 %s206, 1
    %p210 = scmp.eq.s32.totalorder %s25, 1
    %p211 = scmp.ne.s32.totalorder %s206, %s208
    %p212 = scmp.eq.s32.totalorder %s25, 0
    %p213 = por %p211, %p212
    %p214 = scmp.ne.s32.totalorder %s206, %s208
    %p215 = scmp.eq.s32.totalorder %s30, 1
    %p216 = por %p214, %p215
    %p217 = scmp.ne.s32.totalorder %s208, %s209
    %p218 = scmp.eq.s32.totalorder %s30, 0
    %p219 = por %p217, %p218
    %p220 = scmp.ne.s32.totalorder %s208, %s209
    %p221 = scmp.eq.s32.totalorder %s31, 1
    %p222 = por %p220, %p221
    %p224 = scmp.ne.s32.totalorder %s209, %s223
    %p225 = scmp.eq.s32.totalorder %s31, 0
    %p226 = por %p224, %p225
    %s228 = sadd.s32 %s227, 1
    %p231 = scmp.eq.s32.totalorder %s25, 1
    %p232 = scmp.ne.s32.totalorder %s227, %s229
    %p233 = scmp.eq.s32.totalorder %s25, 0
    %p234 = por %p232, %p233
    %p235 = scmp.ne.s32.totalorder %s227, %s229
    %p236 = scmp.eq.s32.totalorder %s30, 1
    %p237 = por %p235, %p236
    %p238 = scmp.ne.s32.totalorder %s229, %s230
    %p239 = scmp.eq.s32.totalorder %s30, 0
    %p240 = por %p238, %p239
    %p241 = scmp.ne.s32.totalorder %s229, %s230
    %p242 = scmp.eq.s32.totalorder %s31, 1
    %p243 = por %p241, %p242
    %p245 = scmp.ne.s32.totalorder %s230, %s244
    %p246 = scmp.eq.s32.totalorder %s31, 0
    %p247 = por %p245, %p246
    %s249 = sadd.s32 %s248, 1
    %p252 = scmp.eq.s32.totalorder %s25, 1
    %p253 = scmp.ne.s32.totalorder %s248, %s250
    %p254 = scmp.eq.s32.totalorder %s25, 0
    %p255 = por %p253, %p254
    %p256 = scmp.ne.s32.totalorder %s248, %s250
    %p257 = scmp.eq.s32.totalorder %s30, 1
    %p258 = por %p256, %p257
    %p259 = scmp.ne.s32.totalorder %s250, %s251
    %p260 = scmp.eq.s32.totalorder %s30, 0
    %p261 = por %p259, %p260
    %p262 = scmp.ne.s32.totalorder %s250, %s251
    %p263 = scmp.eq.s32.totalorder %s31, 1
    %p264 = por %p262, %p263
    %p266 = scmp.ne.s32.totalorder %s251, %s265
    %p267 = scmp.eq.s32.totalorder %s31, 0
    %p268 = por %p266, %p267
    %s270 = sadd.s32 %s269, 1
    %p273 = scmp.eq.s32.totalorder %s25, 1
    %p274 = scmp.ne.s32.totalorder %s269, %s271
    %p275 = scmp.eq.s32.totalorder %s25, 0
    %p276 = por %p274, %p275
    %p277 = scmp.ne.s32.totalorder %s269, %s271
    %p278 = scmp.eq.s32.totalorder %s30, 1
    %p279 = por %p277, %p278
    %p280 = scmp.ne.s32.totalorder %s271, %s272
    %p281 = scmp.eq.s32.totalorder %s30, 0
    %p282 = por %p280, %p281
    %p283 = scmp.ne.s32.totalorder %s271, %s272
    %p284 = scmp.eq.s32.totalorder %s31, 1
    %p285 = por %p283, %p284
    %p287 = scmp.ne.s32.totalorder %s272, %s286
    %p288 = scmp.eq.s32.totalorder %s31, 0
    %p289 = por %p287, %p288
    %s291 = sadd.s32 %s290, 1
    %p294 = scmp.eq.s32.totalorder %s25, 1
    %p295 = scmp.ne.s32.totalorder %s290, %s292
    %p296 = scmp.eq.s32.totalorder %s25, 0
    %p297 = por %p295, %p296
    %p298 = scmp.ne.s32.totalorder %s290, %s292
    %p299 = scmp.eq.s32.totalorder %s30, 1
    %p300 = por %p298, %p299
    %p301 = scmp.ne.s32.totalorder %s292, %s293
    %p302 = scmp.eq.s32.totalorder %s30, 0
    %p303 = por %p301, %p302
    %p304 = scmp.ne.s32.totalorder %s292, %s293
    %p305 = scmp.eq.s32.totalorder %s31, 1
    %p306 = por %p304, %p305
    %p308 = scmp.ne.s32.totalorder %s293, %s307
    %p309 = scmp.eq.s32.totalorder %s31, 0
    %p310 = por %p308, %p309
    %s312 = sadd.s32 %s311, 1
    %p315 = scmp.eq.s32.totalorder %s25, 1
    %p316 = scmp.ne.s32.totalorder %s311, %s313
    %p317 = scmp.eq.s32.totalorder %s25, 0
    %p318 = por %p316, %p317
    %p319 = scmp.ne.s32.totalorder %s311, %s313
    %p320 = scmp.eq.s32.totalorder %s30, 1
    %p321 = por %p319, %p320
    %p322 = scmp.ne.s32.totalorder %s313, %s314
    %p323 = scmp.eq.s32.totalorder %s30, 0
    %p324 = por %p322, %p323
    %p325 = scmp.ne.s32.totalorder %s313, %s314
    %p326 = scmp.eq.s32.totalorder %s31, 1
    %p327 = por %p325, %p326
    %p329 = scmp.ne.s32.totalorder %s314, %s328
    %p330 = scmp.eq.s32.totalorder %s31, 0
    %p331 = por %p329, %p330
    %s333 = sadd.s32 %s332, 1
    %p336 = scmp.eq.s32.totalorder %s25, 1
    %p337 = scmp.ne.s32.totalorder %s332, %s334
    %p338 = scmp.eq.s32.totalorder %s25, 0
    %p339 = por %p337, %p338
    %p340 = scmp.ne.s32.totalorder %s332, %s334
    %p341 = scmp.eq.s32.totalorder %s30, 1
    %p342 = por %p340, %p341
    %p343 = scmp.ne.s32.totalorder %s334, %s335
    %p344 = scmp.eq.s32.totalorder %s30, 0
    %p345 = por %p343, %p344
    %p346 = scmp.ne.s32.totalorder %s334, %s335
    %p347 = scmp.eq.s32.totalorder %s31, 1
    %p348 = por %p346, %p347
    %p350 = scmp.ne.s32.totalorder %s335, %s349
    %p351 = scmp.eq.s32.totalorder %s31, 0
    %p352 = por %p350, %p351
    %s354 = sadd.s32 %s353, 1
    %p357 = scmp.eq.s32.totalorder %s25, 1
    %p358 = scmp.ne.s32.totalorder %s353, %s355
    %p359 = scmp.eq.s32.totalorder %s25, 0
    %p360 = por %p358, %p359
    %p361 = scmp.ne.s32.totalorder %s353, %s355
    %p362 = scmp.eq.s32.totalorder %s30, 1
    %p363 = por %p361, %p362
    %p364 = scmp.ne.s32.totalorder %s355, %s356
    %p365 = scmp.eq.s32.totalorder %s30, 0
    %p366 = por %p364, %p365
    %p367 = scmp.ne.s32.totalorder %s355, %s356
    %p368 = scmp.eq.s32.totalorder %s31, 1
    %p369 = por %p367, %p368
    %p371 = scmp.ne.s32.totalorder %s356, %s370
    %p372 = scmp.eq.s32.totalorder %s31, 0
    %p373 = por %p371, %p372
    %s375 = sadd.s32 %s374, 1
    %p378 = scmp.eq.s32.totalorder %s25, 1
    %p379 = scmp.ne.s32.totalorder %s374, %s376
    %p380 = scmp.eq.s32.totalorder %s25, 0
    %p381 = por %p379, %p380
    %p382 = scmp.ne.s32.totalorder %s374, %s376
    %p383 = scmp.eq.s32.totalorder %s30, 1
    %p384 = por %p382, %p383
    %p385 = scmp.ne.s32.totalorder %s376, %s377
    %p386 = scmp.eq.s32.totalorder %s30, 0
    %p387 = por %p385, %p386
    %p388 = scmp.ne.s32.totalorder %s376, %s377
    %p389 = scmp.eq.s32.totalorder %s31, 1
    %p390 = por %p388, %p389
    %p392 = scmp.ne.s32.totalorder %s377, %s391
    %p393 = scmp.eq.s32.totalorder %s31, 0
    %p394 = por %p392, %p393
    %s396 = sadd.s32 %s395, 1
    %p399 = scmp.eq.s32.totalorder %s25, 1
    %p400 = scmp.ne.s32.totalorder %s395, %s397
    %p401 = scmp.eq.s32.totalorder %s25, 0
    %p402 = por %p400, %p401
    %p403 = scmp.ne.s32.totalorder %s395, %s397
    %p404 = scmp.eq.s32.totalorder %s30, 1
    %p405 = por %p403, %p404
    %p406 = scmp.ne.s32.totalorder %s397, %s398
    %p407 = scmp.eq.s32.totalorder %s30, 0
    %p408 = por %p406, %p407
    %p409 = scmp.ne.s32.totalorder %s397, %s398
    %p410 = scmp.eq.s32.totalorder %s31, 1
    %p411 = por %p409, %p410
    %p413 = scmp.ne.s32.totalorder %s398, %s412
    %p414 = scmp.eq.s32.totalorder %s31, 0
    %p415 = por %p413, %p414
    %s417 = sadd.s32 %s416, 1
    %p420 = scmp.eq.s32.totalorder %s25, 1
    %p421 = scmp.ne.s32.totalorder %s416, %s418
    %p422 = scmp.eq.s32.totalorder %s25, 0
    %p423 = por %p421, %p422
    %p424 = scmp.ne.s32.totalorder %s416, %s418
    %p425 = scmp.eq.s32.totalorder %s30, 1
    %p426 = por %p424, %p425
    %p427 = scmp.ne.s32.totalorder %s418, %s419
    %p428 = scmp.eq.s32.totalorder %s30, 0
    %p429 = por %p427, %p428
    %p430 = scmp.ne.s32.totalorder %s418, %s419
    %p431 = scmp.eq.s32.totalorder %s31, 1
    %p432 = por %p430, %p431
    %p434 = scmp.ne.s32.totalorder %s419, %s433
    %p435 = scmp.eq.s32.totalorder %s31, 0
    %p436 = por %p434, %p435
    %s437 = ssub.s32 %s25, %s32
    %p438 = scmp.eq.s32.totalorder %s437, 0
    %s440 = sadd.s32 %s439, 1
    %s441 = scalar_select %p438, %s439, %s440
    %p444 = pneg %p438
    %p445 = scmp.eq.s32.totalorder %s25, 1
    %p446 = por %p444, %p445
    %p447 = scmp.ne.s32.totalorder %s439, %s442
    %p448 = scmp.eq.s32.totalorder %s25, 0
    %p449 = por %p447, %p448
    %p450 = scmp.ne.s32.totalorder %s439, %s442
    %p451 = scmp.eq.s32.totalorder %s30, 1
    %p452 = por %p450, %p451
    %p453 = scmp.ne.s32.totalorder %s442, %s443
    %p454 = scmp.eq.s32.totalorder %s30, 0
    %p455 = por %p453, %p454
    %p456 = scmp.ne.s32.totalorder %s442, %s443
    %p457 = scmp.eq.s32.totalorder %s31, 1
    %p458 = por %p456, %p457
    %p460 = scmp.ne.s32.totalorder %s443, %s459
    %p461 = scmp.eq.s32.totalorder %s31, 0
    %p462 = por %p460, %p461
    %p463 = scmp.le.s32.totalorder 1, %s25
    %p464 = scmp.lt.s32.totalorder %s25, 3
    %p465 = pnand %p463, %p464
    %p466 = pneg %p465
    // Predicated region
    $region9: #{vit_backbone_forward.1} parent=5 // pred_check
      _
    $region10: #{vit_backbone_forward.1} parent=5 // pred_check_branch
      %468 = sbr.rel (%p465) target = $region12
    $region11: #{vit_backbone_forward.1} parent=5 // pred_region
      %s469 = ssub.s32 %s25, 1
      // Predicated region
      $region13: #{vit_backbone_forward.1} parent=11 // pred_check
        %p470 = pneg %p72
      $region14: #{vit_backbone_forward.1} parent=11 // pred_check_branch
        %472 = sbr.rel (%p470) target = $region16
      $region15: #{vit_backbone_forward.1} parent=11 // pred_region
        _
      $region16: #{vit_backbone_forward.1} parent=11 // pred_fallthru
        _
      // Predicated region
      $region17: #{vit_backbone_forward.1} parent=11 // pred_check
        %p473 = pneg %p93
      $region18: #{vit_backbone_forward.1} parent=11 // pred_check_branch
        %475 = sbr.rel (%p473) target = $region20
      $region19: #{vit_backbone_forward.1} parent=11 // pred_region
        _
      $region20: #{vit_backbone_forward.1} parent=11 // pred_fallthru
        _
      // Predicated region
      $region21: #{vit_backbone_forward.1} parent=11 // pred_check
        %p476 = pneg %p114
      $region22: #{vit_backbone_forward.1} parent=11 // pred_check_branch
        %478 = sbr.rel (%p476) target = $region24
      $region23: #{vit_backbone_forward.1} parent=11 // pred_region
        _
      $region24: #{vit_backbone_forward.1} parent=11 // pred_fallthru
        _
      // Predicated region
      $region25: #{vit_backbone_forward.1} parent=11 // pred_check
        %p479 = pneg %p135
      $region26: #{vit_backbone_forward.1} parent=11 // pred_check_branch
        %481 = sbr.rel (%p479) target = $region28
      $region27: #{vit_backbone_forward.1} parent=11 // pred_region
        _
      $region28: #{vit_backbone_forward.1} parent=11 // pred_fallthru
        _
      // Predicated region
      $region29: #{vit_backbone_forward.1} parent=11 // pred_check
        %p482 = pneg %p156
      $region30: #{vit_backbone_forward.1} parent=11 // pred_check_branch
        %484 = sbr.rel (%p482) target = $region32
      $region31: #{vit_backbone_forward.1} parent=11 // pred_region
        _
      $region32: #{vit_backbone_forward.1} parent=11 // pred_fallthru
        _
      // Predicated region
      $region33: #{vit_backbone_forward.1} parent=11 // pred_check
        %p485 = pneg %p177
      $region34: #{vit_backbone_forward.1} parent=11 // pred_check_branch
        %487 = sbr.rel (%p485) target = $region36
      $region35: #{vit_backbone_forward.1} parent=11 // pred_region
        _
      $region36: #{vit_backbone_forward.1} parent=11 // pred_fallthru
        _
      // Predicated region
      $region37: #{vit_backbone_forward.1} parent=11 // pred_check
        %p488 = pneg %p198
      $region38: #{vit_backbone_forward.1} parent=11 // pred_check_branch
        %490 = sbr.rel (%p488) target = $region40
      $region39: #{vit_backbone_forward.1} parent=11 // pred_region
        _
      $region40: #{vit_backbone_forward.1} parent=11 // pred_fallthru
        _
      // Predicated region
      $region41: #{vit_backbone_forward.1} parent=11 // pred_check
        %p491 = pneg %p219
      $region42: #{vit_backbone_forward.1} parent=11 // pred_check_branch
        %493 = sbr.rel (%p491) target = $region44
      $region43: #{vit_backbone_forward.1} parent=11 // pred_region
        _
      $region44: #{vit_backbone_forward.1} parent=11 // pred_fallthru
        _
      // Predicated region
      $region45: #{vit_backbone_forward.1} parent=11 // pred_check
        %p494 = pneg %p240
      $region46: #{vit_backbone_forward.1} parent=11 // pred_check_branch
        %496 = sbr.rel (%p494) target = $region48
      $region47: #{vit_backbone_forward.1} parent=11 // pred_region
        _
      $region48: #{vit_backbone_forward.1} parent=11 // pred_fallthru
        _
      // Predicated region
      $region49: #{vit_backbone_forward.1} parent=11 // pred_check
        %p497 = pneg %p261
      $region50: #{vit_backbone_forward.1} parent=11 // pred_check_branch
        %499 = sbr.rel (%p497) target = $region52
      $region51: #{vit_backbone_forward.1} parent=11 // pred_region
        _
      $region52: #{vit_backbone_forward.1} parent=11 // pred_fallthru
        _
      // Predicated region
      $region53: #{vit_backbone_forward.1} parent=11 // pred_check
        %p500 = pneg %p282
      $region54: #{vit_backbone_forward.1} parent=11 // pred_check_branch
        %502 = sbr.rel (%p500) target = $region56
      $region55: #{vit_backbone_forward.1} parent=11 // pred_region
        _
      $region56: #{vit_backbone_forward.1} parent=11 // pred_fallthru
        _
      // Predicated region
      $region57: #{vit_backbone_forward.1} parent=11 // pred_check
        %p503 = pneg %p303
      $region58: #{vit_backbone_forward.1} parent=11 // pred_check_branch
        %505 = sbr.rel (%p503) target = $region60
      $region59: #{vit_backbone_forward.1} parent=11 // pred_region
        _
      $region60: #{vit_backbone_forward.1} parent=11 // pred_fallthru
        _
      // Predicated region
      $region61: #{vit_backbone_forward.1} parent=11 // pred_check
        %p506 = pneg %p324
      $region62: #{vit_backbone_forward.1} parent=11 // pred_check_branch
        %508 = sbr.rel (%p506) target = $region64
      $region63: #{vit_backbone_forward.1} parent=11 // pred_region
        _
      $region64: #{vit_backbone_forward.1} parent=11 // pred_fallthru
        _
      // Predicated region
      $region65: #{vit_backbone_forward.1} parent=11 // pred_check
        %p509 = pneg %p345
      $region66: #{vit_backbone_forward.1} parent=11 // pred_check_branch
        %511 = sbr.rel (%p509) target = $region68
      $region67: #{vit_backbone_forward.1} parent=11 // pred_region
        _
      $region68: #{vit_backbone_forward.1} parent=11 // pred_fallthru
        _
      // Predicated region
      $region69: #{vit_backbone_forward.1} parent=11 // pred_check
        %p512 = pneg %p366
      $region70: #{vit_backbone_forward.1} parent=11 // pred_check_branch
        %514 = sbr.rel (%p512) target = $region72
      $region71: #{vit_backbone_forward.1} parent=11 // pred_region
        _
      $region72: #{vit_backbone_forward.1} parent=11 // pred_fallthru
        _
      // Predicated region
      $region73: #{vit_backbone_forward.1} parent=11 // pred_check
        %p515 = pneg %p387
      $region74: #{vit_backbone_forward.1} parent=11 // pred_check_branch
        %517 = sbr.rel (%p515) target = $region76
      $region75: #{vit_backbone_forward.1} parent=11 // pred_region
        _
      $region76: #{vit_backbone_forward.1} parent=11 // pred_fallthru
        _
      // Predicated region
      $region77: #{vit_backbone_forward.1} parent=11 // pred_check
        %p518 = pneg %p408
      $region78: #{vit_backbone_forward.1} parent=11 // pred_check_branch
        %520 = sbr.rel (%p518) target = $region80
      $region79: #{vit_backbone_forward.1} parent=11 // pred_region
        _
      $region80: #{vit_backbone_forward.1} parent=11 // pred_fallthru
        _
      // Predicated region
      $region81: #{vit_backbone_forward.1} parent=11 // pred_check
        %p521 = pneg %p429
      $region82: #{vit_backbone_forward.1} parent=11 // pred_check_branch
        %523 = sbr.rel (%p521) target = $region84
      $region83: #{vit_backbone_forward.1} parent=11 // pred_region
        _
      $region84: #{vit_backbone_forward.1} parent=11 // pred_fallthru
        _
    $region12: #{vit_backbone_forward.1} parent=5 // pred_fallthru
      _
    %p524 = scmp.lt.s32.totalorder %s25, 2
    // Predicated region
    $region85: #{vit_backbone_forward.1} parent=5 // pred_check
      %p525 = pneg %p524
    $region86: #{vit_backbone_forward.1} parent=5 // pred_check_branch
      %527 = sbr.rel (%p525) target = $region88
    $region87: #{vit_backbone_forward.1} parent=5 // pred_region
      // Predicated region
      $region89: #{vit_backbone_forward.1} parent=87 // pred_check
        %p528 = pneg %p45
      $region90: #{vit_backbone_forward.1} parent=87 // pred_check_branch
        %530 = sbr.rel (%p528) target = $region92
      $region91: #{vit_backbone_forward.1} parent=87 // pred_region
        %p531 = scmp.lt.s32.totalorder %s25, 1
        %s532 = scalar_select %p531, %s25, 1
        %s533 = smul.addr %s532, 2
        %s534 = smul.addr %s533, 4
        %s535 = scalar_lea.vmem %s0, %s534
      $region92: #{vit_backbone_forward.1} parent=87 // pred_fallthru
        _
    $region88: #{vit_backbone_forward.1} parent=5 // pred_fallthru
      _
    %p536 = scmp.le.s32.totalorder 1, %s25
    %p537 = scmp.lt.s32.totalorder %s25, 3
    %p538 = pnand %p536, %p537
    %p539 = pneg %p538
    // Predicated region
    $region93: #{vit_backbone_forward.1} parent=5 // pred_check
      _
    $region94: #{vit_backbone_forward.1} parent=5 // pred_check_branch
      %541 = sbr.rel (%p538) target = $region96
    $region95: #{vit_backbone_forward.1} parent=5 // pred_region
      %s542 = ssub.s32 %s25, 1
      %p543 = scmp.lt.s32.totalorder %s30, 1
      %s544 = scalar_select %p543, %s30, 1
      %s545 = smul.addr %s544, 2
      %s546 = smul.addr %s545, 4
      %s547 = scalar_lea.vmem %s0, %s546
      %p548 = pneg %p51
      %p549 = pneg %p48
      %p550 = pneg %p72
      %p551 = pneg %p69
      %p552 = pneg %p93
      %p553 = pneg %p90
      %p554 = pneg %p114
      %p555 = pneg %p111
      %p556 = pneg %p135
      %p557 = pneg %p132
      %p558 = pneg %p156
      %p559 = pneg %p153
      %p560 = pneg %p177
      %p561 = pneg %p174
      %p562 = pneg %p198
      %p563 = pneg %p195
      %p564 = pneg %p219
      %p565 = pneg %p216
      %p566 = pneg %p240
      %p567 = pneg %p237
      %p568 = pneg %p261
      %p569 = pneg %p258
      %p570 = pneg %p282
      %p571 = pneg %p279
      %p572 = pneg %p303
      %p573 = pneg %p300
      %p574 = pneg %p324
      %p575 = pneg %p321
      %p576 = pneg %p345
      %p577 = pneg %p342
      %p578 = pneg %p366
      %p579 = pneg %p363
      %p580 = pneg %p387
      %p581 = pneg %p384
      %p582 = pneg %p408
      %p583 = pneg %p405
      %p584 = pneg %p429
      %p585 = pneg %p426
      %p586 = pneg %p455
      %p587 = pneg %p452
      %p588 = scmp.lt.s32.totalorder %s30, 1
      %s589 = scalar_select %p588, %s30, 1
      %s590 = smul.addr %s589, 8
      %s591 = scalar_lea.vmem %s19, %s590
      %p592 = scmp.lt.s32.totalorder %s30, 1
      %s593 = scalar_select %p592, %s30, 1
      %s594 = smul.addr %s593, 2
      %s595 = smul.addr %s594, 4
      %s596 = scalar_lea.vmem %s0, %s595
      %p597 = scmp.lt.s32.totalorder %s30, 1
      %s598 = scalar_select %p597, %s30, 1
      %s599 = smul.addr %s598, 8
      %s600 = scalar_lea.vmem %s19, %s599
      %v601 = vld [vmem:[%s596] sm:$0xff]
      %v602 = vld [vmem:[%s1] sm:$0xff]
      %v603 = vld [vmem:[%s1 + $0x8] sm:$0xff]
      %v604 = vld [vmem:[%s1 + $0x10] sm:$0xff]
      %v605 = vld [vmem:[%s1 + $0x18] sm:$0xff]
      %v606 = vld [vmem:[%s1 + $0x20] sm:$0xff]
      %v607 = vld [vmem:[%s1 + $0x28] sm:$0xff]
      %v608 = vld [vmem:[%s1 + $0x30] sm:$0xff]
      %v609 = vld [vmem:[%s1 + $0x38] sm:$0xff]
      %v610 = vld [vmem:[%s1 + $0x40] sm:$0xff]
      %v611 = vld [vmem:[%s1 + $0x48] sm:$0xff]
      %v612 = vld [vmem:[%s1 + $0x50] sm:$0xff]
      %v613 = vld [vmem:[%s1 + $0x58] sm:$0xff]
      %v614 = vld [vmem:[%s1 + $0x60] sm:$0xff]
      %v615 = vld [vmem:[%s1 + $0x68] sm:$0xff]
      %v616 = vld [vmem:[%s1 + $0x70] sm:$0xff]
      %v617 = vld [vmem:[%s1 + $0x78] sm:$0xff]
      %v618 = vld [vmem:[%s1 + $0x80] sm:$0xff]
      %v619 = vld [vmem:[%s1 + $0x88] sm:$0xff]
      %v620 = vld [vmem:[%s1 + $0x90] sm:$0xff]
      %v621 = vld [vmem:[%s1 + $0x98] sm:$0xff]
      %v622 = vld [vmem:[%s1 + $0xa0] sm:$0xff]
      %v623 = vld [vmem:[%s1 + $0xa8] sm:$0xff]
      %v624 = vld [vmem:[%s1 + $0xb0] sm:$0xff]
      %v625 = vld [vmem:[%s1 + $0xb8] sm:$0xff]
      %v626 = vld [vmem:[%s2] sm:$0x1]
      %v628 = vlaneseq
      %v629 = vshrl.u32 %v628, 7
      %v630 = vsub.s32 0, %v629
      %v631 = vrot.slane %v626, %v630
      %v634 = vcombine.high %v601, %v601
      %vm635 = vcmask 523264
      %v636 = vsel %vm635, %v634, 0
      %638 = vmatprep.subr.mxu0 0.0
      %639 = vmatpush1.msra.mxu0 %v617
      %640 = vmatprep.subr.mxu0 0.0
      %641 = vmatpush1.msra.mxu0 %v616
      %642 = vmatprep.subr.mxu0 0.0
      %643 = vmatpush1.msra.mxu0 %v615
      %644 = vmatprep.subr.mxu0 0.0
      %645 = vmatpush1.msra.mxu0 %v614
      %646 = vmatprep.subr.mxu0 0.0
      %647 = vmatpush1.msra.mxu0 %v613
      %648 = vmatprep.subr.mxu0 0.0
      %649 = vmatpush1.msra.mxu0 %v612
      %650 = vmatprep.subr.mxu0 0.0
      %651 = vmatpush1.msra.mxu0 %v611
      %652 = vmatprep.subr.mxu0 0.0
      %653 = vmatpush1.msra.mxu0 %v610
      %654 = vmatprep.subr.mxu0 0.0
      %655 = vmatpush1.msra.mxu0 %v609
      %656 = vmatprep.subr.mxu0 0.0
      %657 = vmatpush1.msra.mxu0 %v608
      %658 = vmatprep.subr.mxu0 0.0
      %659 = vmatpush1.msra.mxu0 %v607
      %660 = vmatprep.subr.mxu0 0.0
      %661 = vmatpush1.msra.mxu0 %v606
      %662 = vmatprep.subr.mxu0 0.0
      %663 = vmatpush1.msra.mxu0 %v605
      %664 = vmatprep.subr.mxu0 0.0
      %665 = vmatpush1.msra.mxu0 %v604
      %666 = vmatprep.subr.mxu0 0.0
      %667 = vmatpush1.msra.mxu0 %v603
      %668 = vmatprep.subr.mxu0 0.0
      %669 = vmatpush1.msra.mxu0 %v602
      %670 = vmatprep.subr.mxu0 0.0
      %671 = vmatpush2.msra.mxu0 0.0
      %672 = vmatprep.subr.mxu0 0.0
      %673 = vmatpush2.msra.mxu0 0.0
      %674 = vmatprep.subr.mxu0 0.0
      %675 = vmatpush2.msra.mxu0 0.0
      %676 = vmatprep.subr.mxu0 0.0
      %677 = vmatpush2.msra.mxu0 0.0
      %678 = vmatprep.subr.mxu0 0.0
      %679 = vmatpush2.msra.mxu0 0.0
      %680 = vmatprep.subr.mxu0 0.0
      %681 = vmatpush2.msra.mxu0 0.0
      %682 = vmatprep.subr.mxu0 0.0
      %683 = vmatpush2.msra.mxu0 0.0
      %684 = vmatprep.subr.mxu0 0.0
      %685 = vmatpush2.msra.mxu0 0.0
      %686 = vmatprep.subr.mxu0 0.0
      %687 = vmatpush2.msra.mxu0 %v625
      %688 = vmatprep.subr.mxu0 0.0
      %689 = vmatpush2.msra.mxu0 %v624
      %690 = vmatprep.subr.mxu0 0.0
      %691 = vmatpush2.msra.mxu0 %v623
      %692 = vmatprep.subr.mxu0 0.0
      %693 = vmatpush2.msra.mxu0 %v622
      %694 = vmatprep.subr.mxu0 0.0
      %695 = vmatpush2.msra.mxu0 %v621
      %696 = vmatprep.subr.mxu0 0.0
      %697 = vmatpush2.msra.mxu0 %v620
      %698 = vmatprep.subr.mxu0 0.0
      %699 = vmatpush2.msra.mxu0 %v619
      %700 = vmatprep.subr.mxu0 0.0
      %701 = vmatpush2.msra.mxu0 %v618
      %702 = vmatprep.mubr.f32.mxu0 %v636
      %703 = vmatmul.mubr.f32.gmra.mxu0 %v601
      %v704 = vpop.f32.mrf.mxu0
      %v705 = vadd.f32 %v631, %v704
      %v706 = vpop.f32.mrf.mxu0
      %707 = vdwg.mxu0
      %v708 = vld [vmem:[%s3] sm:$0x1]
      %v710 = vrot.slane %v705, 7
      %vm712 = vcmask 1040384
      %v713 = vsel %vm712, %v708, %v710
      %v714 = vld [vmem:[%s4] sm:$0x1f]
      %v715 = vadd.f32 %v713, %v714
      %v716 = vld [vmem:[%s5] sm:$0x1]
      %v717 = vld [vmem:[%s6] sm:$0x1]
      %vm718 = vcmask 258048
      %v719 = vsel %vm718, %v715, 0.0
      %720 = vadd.xlane.f32.xlu0 %v719
      %v721 = vpop.xlane.xlu0 %720
      %v722 = vrcp.pop 32.0
      %v723 = vmul.f32 %v721, %v722
      %v724 = vsub.f32 %v715, %v723
      %v725 = vmul.f32 %v724, %v724
      %v726 = vsel %vm718, %v725, 0.0
      %727 = vadd.xlane.f32.xlu0 %v726
      %v728 = vpop.xlane.xlu0 %727
      %v729 = vmul.f32 %v728, %v722
      %v730 = vadd.f32 %v729, 1e-12
      %v731 = vrsqrt.pop %v730
      %v732 = vmul.f32 %v724, %v731
      %v734 = vlaneseq
      %v735 = vshrl.u32 %v734, 7
      %v736 = vsub.s32 0, %v735
      %v737 = vrot.slane %v716, %v736
      %v739 = vmul.f32 %v732, %v737
      %v741 = vlaneseq
      %v742 = vshrl.u32 %v741, 7
      %v743 = vsub.s32 0, %v742
      %v744 = vrot.slane %v717, %v743
      %v746 = vadd.f32 %v739, %v744
      %v747 = vld [vmem:[%s7] sm:$0xff]
      %v748 = vld [vmem:[%s7 + $0x8] sm:$0xff]
      %v749 = vld [vmem:[%s7 + $0x10] sm:$0xff]
      %v750 = vld [vmem:[%s7 + $0x18] sm:$0xff]
      %v751 = vld [vmem:[%s8] sm:$0x1]
      %v753 = vlaneseq
      %v754 = vshrl.u32 %v753, 7
      %v755 = vsub.s32 0, %v754
      %v756 = vrot.slane %v751, %v755
      %vm758 = vcmask 261120
      %v760 = vsel %vm758, %v746, 0
      %762 = vmatprep.subr.mxu0 0.0
      %763 = vmatpush1.msra.mxu0 0.0
      %764 = vmatprep.subr.mxu0 0.0
      %765 = vmatpush1.msra.mxu0 0.0
      %766 = vmatprep.subr.mxu0 0.0
      %767 = vmatpush1.msra.mxu0 0.0
      %768 = vmatprep.subr.mxu0 0.0
      %769 = vmatpush1.msra.mxu0 0.0
      %770 = vmatprep.subr.mxu0 0.0
      %771 = vmatpush1.msra.mxu0 0.0
      %772 = vmatprep.subr.mxu0 0.0
      %773 = vmatpush1.msra.mxu0 0.0
      %774 = vmatprep.subr.mxu0 0.0
      %775 = vmatpush1.msra.mxu0 0.0
      %776 = vmatprep.subr.mxu0 0.0
      %777 = vmatpush1.msra.mxu0 0.0
      %778 = vmatprep.subr.mxu0 0.0
      %779 = vmatpush1.msra.mxu0 0.0
      %780 = vmatprep.subr.mxu0 0.0
      %781 = vmatpush1.msra.mxu0 0.0
      %782 = vmatprep.subr.mxu0 0.0
      %783 = vmatpush1.msra.mxu0 0.0
      %784 = vmatprep.subr.mxu0 0.0
      %785 = vmatpush1.msra.mxu0 0.0
      %786 = vmatprep.subr.mxu0 0.0
      %787 = vmatpush1.msra.mxu0 %v750
      %788 = vmatprep.subr.mxu0 0.0
      %789 = vmatpush1.msra.mxu0 %v749
      %790 = vmatprep.subr.mxu0 0.0
      %791 = vmatpush1.msra.mxu0 %v748
      %792 = vmatprep.subr.mxu0 0.0
      %793 = vmatpush1.msra.mxu0 %v747
      %794 = vmatprep.subr.mxu0 0.0
      %795 = vmatpush2.msra.mxu0 0.0
      %796 = vmatprep.subr.mxu0 0.0
      %797 = vmatpush2.msra.mxu0 0.0
      %798 = vmatprep.subr.mxu0 0.0
      %799 = vmatpush2.msra.mxu0 0.0
      %800 = vmatprep.subr.mxu0 0.0
      %801 = vmatpush2.msra.mxu0 0.0
      %802 = vmatprep.subr.mxu0 0.0
      %803 = vmatpush2.msra.mxu0 0.0
      %804 = vmatprep.subr.mxu0 0.0
      %805 = vmatpush2.msra.mxu0 0.0
      %806 = vmatprep.subr.mxu0 0.0
      %807 = vmatpush2.msra.mxu0 0.0
      %808 = vmatprep.subr.mxu0 0.0
      %809 = vmatpush2.msra.mxu0 0.0
      %810 = vmatprep.subr.mxu0 0.0
      %811 = vmatpush2.msra.mxu0 0.0
      %812 = vmatprep.subr.mxu0 0.0
      %813 = vmatpush2.msra.mxu0 0.0
      %814 = vmatprep.subr.mxu0 0.0
      %815 = vmatpush2.msra.mxu0 0.0
      %816 = vmatprep.subr.mxu0 0.0
      %817 = vmatpush2.msra.mxu0 0.0
      %818 = vmatprep.subr.mxu0 0.0
      %819 = vmatpush2.msra.mxu0 0.0
      %820 = vmatprep.subr.mxu0 0.0
      %821 = vmatpush2.msra.mxu0 0.0
      %822 = vmatprep.subr.mxu0 0.0
      %823 = vmatpush2.msra.mxu0 0.0
      %824 = vmatprep.subr.mxu0 0.0
      %825 = vmatpush2.msra.mxu0 0.0
      %826 = vmatprep.mubr.f32.mxu0 0.0
      %827 = vmatmul.mubr.f32.gmra.mxu0 %v760
      %v828 = vpop.f32.mrf.mxu0
      %v829 = vadd.f32 %v756, %v828
      %v830 = vpop.f32.mrf.mxu0
      %831 = vdwg.mxu0
      %v832 = vld [vmem:[%s9] sm:$0xff]
      %v833 = vld [vmem:[%s9 + $0x8] sm:$0xff]
      %v834 = vld [vmem:[%s9 + $0x10] sm:$0xff]
      %v835 = vld [vmem:[%s9 + $0x18] sm:$0xff]
      %v836 = vmul.f32 %v829, 0.35355338
      %838 = vrot.lane.b32.xlu0 %v829, 96
      %v839 = vpop.permute.xlu0 %838
      %vm840 = vcmask 64512
      %v842 = vsel %vm840, %v836, 0
      %v844 = vsel %vm840, %v839, 0
      %846 = vmatprep.subr.mxu0 0.0
      %847 = vmatpush1.xpose.msra.mxu0 0.0
      %848 = vmatprep.subr.mxu0 0.0
      %849 = vmatpush1.xpose.msra.mxu0 0.0
      %850 = vmatprep.subr.mxu0 0.0
      %851 = vmatpush1.xpose.msra.mxu0 0.0
      %852 = vmatprep.subr.mxu0 0.0
      %853 = vmatpush1.xpose.msra.mxu0 0.0
      %854 = vmatprep.subr.mxu0 0.0
      %855 = vmatpush1.xpose.msra.mxu0 0.0
      %856 = vmatprep.subr.mxu0 0.0
      %857 = vmatpush1.xpose.msra.mxu0 0.0
      %858 = vmatprep.subr.mxu0 0.0
      %859 = vmatpush1.xpose.msra.mxu0 0.0
      %860 = vmatprep.subr.mxu0 0.0
      %861 = vmatpush1.xpose.msra.mxu0 0.0
      %862 = vmatprep.subr.mxu0 0.0
      %863 = vmatpush1.xpose.msra.mxu0 0.0
      %864 = vmatprep.subr.mxu0 0.0
      %865 = vmatpush1.xpose.msra.mxu0 0.0
      %866 = vmatprep.subr.mxu0 0.0
      %867 = vmatpush1.xpose.msra.mxu0 0.0
      %868 = vmatprep.subr.mxu0 0.0
      %869 = vmatpush1.xpose.msra.mxu0 0.0
      %870 = vmatprep.subr.mxu0 0.0
      %871 = vmatpush1.xpose.msra.mxu0 0.0
      %872 = vmatprep.subr.mxu0 0.0
      %873 = vmatpush1.xpose.msra.mxu0 0.0
      %874 = vmatprep.subr.mxu0 0.0
      %875 = vmatpush1.xpose.msra.mxu0 0.0
      %876 = vmatprep.subr.mxu0 0.0
      %877 = vmatpush1.xpose.msra.mxu0 %v844
      %878 = vmatprep.subr.mxu0 0.0
      %879 = vmatpush2.xpose.msra.mxu0 0.0
      %880 = vmatprep.subr.mxu0 0.0
      %881 = vmatpush2.xpose.msra.mxu0 0.0
      %882 = vmatprep.subr.mxu0 0.0
      %883 = vmatpush2.xpose.msra.mxu0 0.0
      %884 = vmatprep.subr.mxu0 0.0
      %885 = vmatpush2.xpose.msra.mxu0 0.0
      %886 = vmatprep.subr.mxu0 0.0
      %887 = vmatpush2.xpose.msra.mxu0 0.0
      %888 = vmatprep.subr.mxu0 0.0
      %889 = vmatpush2.xpose.msra.mxu0 0.0
      %890 = vmatprep.subr.mxu0 0.0
      %891 = vmatpush2.xpose.msra.mxu0 0.0
      %892 = vmatprep.subr.mxu0 0.0
      %893 = vmatpush2.xpose.msra.mxu0 0.0
      %894 = vmatprep.subr.mxu0 0.0
      %895 = vmatpush2.xpose.msra.mxu0 0.0
      %896 = vmatprep.subr.mxu0 0.0
      %897 = vmatpush2.xpose.msra.mxu0 0.0
      %898 = vmatprep.subr.mxu0 0.0
      %899 = vmatpush2.xpose.msra.mxu0 0.0
      %900 = vmatprep.subr.mxu0 0.0
      %901 = vmatpush2.xpose.msra.mxu0 0.0
      %902 = vmatprep.subr.mxu0 0.0
      %903 = vmatpush2.xpose.msra.mxu0 0.0
      %904 = vmatprep.subr.mxu0 0.0
      %905 = vmatpush2.xpose.msra.mxu0 0.0
      %906 = vmatprep.subr.mxu0 0.0
      %907 = vmatpush2.xpose.msra.mxu0 0.0
      %908 = vmatprep.subr.mxu0 0.0
      %909 = vmatpush2.xpose.msra.mxu0 0.0
      %910 = vmatprep.mubr.f32.mxu0 0.0
      %911 = vmatmul.mubr.f32.gmra.mxu0 %v842
      %v912 = vpop.f32.mrf.mxu0
      %v913 = vadd.f32 0.0, %v912
      %v914 = vpop.f32.mrf.mxu0
      %915 = vdwg.mxu0
      %vm916 = vcmask 36864
      %v917 = vsel %vm916, %v913, -inf
      %918 = vmax.xlane.f32.xlu0 %v917
      %v919 = vpop.xlane.xlu0 %918
      %v920 = vsub.f32 %v913, %v919
      %v921 = vmul.f32 %v920, 1.442695
      %v922 = vpow.pop %v921
      %v923 = vsel %vm916, %v922, 0.0
      %924 = vadd.xlane.f32.xlu0 %v923
      %v925 = vpop.xlane.xlu0 %924
      %v926 = vrcp.pop %v925
      %v927 = vmul.f32 %v922, %v926
      %928 = vrot.lane.b32.xlu0 %v829, 64
      %v929 = vpop.permute.xlu0 %928
      %vm930 = vcmask 39936
      %v932 = vsel %vm930, %v927, 0
      %vm934 = vcmask 1044480
      %v935 = vsel %vm934, %v929, 0
      %937 = vmatprep.subr.mxu0 0.0
      %938 = vmatpush1.msra.mxu0 0.0
      %939 = vmatprep.subr.mxu0 0.0
      %940 = vmatpush1.msra.mxu0 0.0
      %941 = vmatprep.subr.mxu0 0.0
      %942 = vmatpush1.msra.mxu0 0.0
      %943 = vmatprep.subr.mxu0 0.0
      %944 = vmatpush1.msra.mxu0 0.0
      %945 = vmatprep.subr.mxu0 0.0
      %946 = vmatpush1.msra.mxu0 0.0
      %947 = vmatprep.subr.mxu0 0.0
      %948 = vmatpush1.msra.mxu0 0.0
      %949 = vmatprep.subr.mxu0 0.0
      %950 = vmatpush1.msra.mxu0 0.0
      %951 = vmatprep.subr.mxu0 0.0
      %952 = vmatpush1.msra.mxu0 0.0
      %953 = vmatprep.subr.mxu0 0.0
      %954 = vmatpush1.msra.mxu0 0.0
      %955 = vmatprep.subr.mxu0 0.0
      %956 = vmatpush1.msra.mxu0 0.0
      %957 = vmatprep.subr.mxu0 0.0
      %958 = vmatpush1.msra.mxu0 0.0
      %959 = vmatprep.subr.mxu0 0.0
      %960 = vmatpush1.msra.mxu0 0.0
      %961 = vmatprep.subr.mxu0 0.0
      %962 = vmatpush1.msra.mxu0 0.0
      %963 = vmatprep.subr.mxu0 0.0
      %964 = vmatpush1.msra.mxu0 0.0
      %965 = vmatprep.subr.mxu0 0.0
      %966 = vmatpush1.msra.mxu0 0.0
      %967 = vmatprep.subr.mxu0 0.0
      %968 = vmatpush1.msra.mxu0 %v935
      %969 = vmatprep.subr.mxu0 0.0
      %970 = vmatpush2.msra.mxu0 0.0
      %971 = vmatprep.subr.mxu0 0.0
      %972 = vmatpush2.msra.mxu0 0.0
      %973 = vmatprep.subr.mxu0 0.0
      %974 = vmatpush2.msra.mxu0 0.0
      %975 = vmatprep.subr.mxu0 0.0
      %976 = vmatpush2.msra.mxu0 0.0
      %977 = vmatprep.subr.mxu0 0.0
      %978 = vmatpush2.msra.mxu0 0.0
      %979 = vmatprep.subr.mxu0 0.0
      %980 = vmatpush2.msra.mxu0 0.0
      %981 = vmatprep.subr.mxu0 0.0
      %982 = vmatpush2.msra.mxu0 0.0
      %983 = vmatprep.subr.mxu0 0.0
      %984 = vmatpush2.msra.mxu0 0.0
      %985 = vmatprep.subr.mxu0 0.0
      %986 = vmatpush2.msra.mxu0 0.0
      %987 = vmatprep.subr.mxu0 0.0
      %988 = vmatpush2.msra.mxu0 0.0
      %989 = vmatprep.subr.mxu0 0.0
      %990 = vmatpush2.msra.mxu0 0.0
      %991 = vmatprep.subr.mxu0 0.0
      %992 = vmatpush2.msra.mxu0 0.0
      %993 = vmatprep.subr.mxu0 0.0
      %994 = vmatpush2.msra.mxu0 0.0
      %995 = vmatprep.subr.mxu0 0.0
      %996 = vmatpush2.msra.mxu0 0.0
      %997 = vmatprep.subr.mxu0 0.0
      %998 = vmatpush2.msra.mxu0 0.0
      %999 = vmatprep.subr.mxu0 0.0
      %1000 = vmatpush2.msra.mxu0 0.0
      %1001 = vmatprep.mubr.f32.mxu0 0.0
      %1002 = vmatmul.mubr.f32.gmra.mxu0 %v932
      %v1003 = vpop.f32.mrf.mxu0
      %v1004 = vadd.f32 0.0, %v1003
      %v1005 = vpop.f32.mrf.mxu0
      %1006 = vdwg.mxu0
      %1007 = vrot.lane.b32.xlu0 %v836, 120
      %v1008 = vpop.permute.xlu0 %1007
      %1009 = vrot.lane.b32.xlu0 %v829, 88
      %v1010 = vpop.permute.xlu0 %1009
      %v1011 = vsel %vm840, %v1008, 0
      %v1013 = vsel %vm840, %v1010, 0
      %1015 = vmatprep.subr.mxu0 0.0
      %1016 = vmatpush1.xpose.msra.mxu0 0.0
      %1017 = vmatprep.subr.mxu0 0.0
      %1018 = vmatpush1.xpose.msra.mxu0 0.0
      %1019 = vmatprep.subr.mxu0 0.0
      %1020 = vmatpush1.xpose.msra.mxu0 0.0
      %1021 = vmatprep.subr.mxu0 0.0
      %1022 = vmatpush1.xpose.msra.mxu0 0.0
      %1023 = vmatprep.subr.mxu0 0.0
      %1024 = vmatpush1.xpose.msra.mxu0 0.0
      %1025 = vmatprep.subr.mxu0 0.0
      %1026 = vmatpush1.xpose.msra.mxu0 0.0
      %1027 = vmatprep.subr.mxu0 0.0
      %1028 = vmatpush1.xpose.msra.mxu0 0.0
      %1029 = vmatprep.subr.mxu0 0.0
      %1030 = vmatpush1.xpose.msra.mxu0 0.0
      %1031 = vmatprep.subr.mxu0 0.0
      %1032 = vmatpush1.xpose.msra.mxu0 0.0
      %1033 = vmatprep.subr.mxu0 0.0
      %1034 = vmatpush1.xpose.msra.mxu0 0.0
      %1035 = vmatprep.subr.mxu0 0.0
      %1036 = vmatpush1.xpose.msra.mxu0 0.0
      %1037 = vmatprep.subr.mxu0 0.0
      %1038 = vmatpush1.xpose.msra.mxu0 0.0
      %1039 = vmatprep.subr.mxu0 0.0
      %1040 = vmatpush1.xpose.msra.mxu0 0.0
      %1041 = vmatprep.subr.mxu0 0.0
      %1042 = vmatpush1.xpose.msra.mxu0 0.0
      %1043 = vmatprep.subr.mxu0 0.0
      %1044 = vmatpush1.xpose.msra.mxu0 0.0
      %1045 = vmatprep.subr.mxu0 0.0
      %1046 = vmatpush1.xpose.msra.mxu0 %v1013
      %1047 = vmatprep.subr.mxu0 0.0
      %1048 = vmatpush2.xpose.msra.mxu0 0.0
      %1049 = vmatprep.subr.mxu0 0.0
      %1050 = vmatpush2.xpose.msra.mxu0 0.0
      %1051 = vmatprep.subr.mxu0 0.0
      %1052 = vmatpush2.xpose.msra.mxu0 0.0
      %1053 = vmatprep.subr.mxu0 0.0
      %1054 = vmatpush2.xpose.msra.mxu0 0.0
      %1055 = vmatprep.subr.mxu0 0.0
      %1056 = vmatpush2.xpose.msra.mxu0 0.0
      %1057 = vmatprep.subr.mxu0 0.0
      %1058 = vmatpush2.xpose.msra.mxu0 0.0
      %1059 = vmatprep.subr.mxu0 0.0
      %1060 = vmatpush2.xpose.msra.mxu0 0.0
      %1061 = vmatprep.subr.mxu0 0.0
      %1062 = vmatpush2.xpose.msra.mxu0 0.0
      %1063 = vmatprep.subr.mxu0 0.0
      %1064 = vmatpush2.xpose.msra.mxu0 0.0
      %1065 = vmatprep.subr.mxu0 0.0
      %1066 = vmatpush2.xpose.msra.mxu0 0.0
      %1067 = vmatprep.subr.mxu0 0.0
      %1068 = vmatpush2.xpose.msra.mxu0 0.0
      %1069 = vmatprep.subr.mxu0 0.0
      %1070 = vmatpush2.xpose.msra.mxu0 0.0
      %1071 = vmatprep.subr.mxu0 0.0
      %1072 = vmatpush2.xpose.msra.mxu0 0.0
      %1073 = vmatprep.subr.mxu0 0.0
      %1074 = vmatpush2.xpose.msra.mxu0 0.0
      %1075 = vmatprep.subr.mxu0 0.0
      %1076 = vmatpush2.xpose.msra.mxu0 0.0
      %1077 = vmatprep.subr.mxu0 0.0
      %1078 = vmatpush2.xpose.msra.mxu0 0.0
      %1079 = vmatprep.mubr.f32.mxu0 0.0
      %1080 = vmatmul.mubr.f32.gmra.mxu0 %v1011
      %v1081 = vpop.f32.mrf.mxu0
      %v1082 = vadd.f32 0.0, %v1081
      %v1083 = vpop.f32.mrf.mxu0
      %1084 = vdwg.mxu0
      %v1085 = vsel %vm916, %v1082, -inf
      %1086 = vmax.xlane.f32.xlu0 %v1085
      %v1087 = vpop.xlane.xlu0 %1086
      %v1088 = vsub.f32 %v1082, %v1087
      %v1089 = vmul.f32 %v1088, 1.442695
      %v1090 = vpow.pop %v1089
      %v1091 = vsel %vm916, %v1090, 0.0
      %1092 = vadd.xlane.f32.xlu0 %v1091
      %v1093 = vpop.xlane.xlu0 %1092
      %v1094 = vrcp.pop %v1093
      %v1095 = vmul.f32 %v1090, %v1094
      %1096 = vrot.lane.b32.xlu0 %v829, 56
      %v1097 = vpop.permute.xlu0 %1096
      %v1099 = vsel %vm930, %v1095, 0
      %v1101 = vsel %vm934, %v1097, 0
      %1103 = vmatprep.subr.mxu0 0.0
      %1104 = vmatpush1.msra.mxu0 0.0
      %1105 = vmatprep.subr.mxu0 0.0
      %1106 = vmatpush1.msra.mxu0 0.0
      %1107 = vmatprep.subr.mxu0 0.0
      %1108 = vmatpush1.msra.mxu0 0.0
      %1109 = vmatprep.subr.mxu0 0.0
      %1110 = vmatpush1.msra.mxu0 0.0
      %1111 = vmatprep.subr.mxu0 0.0
      %1112 = vmatpush1.msra.mxu0 0.0
      %1113 = vmatprep.subr.mxu0 0.0
      %1114 = vmatpush1.msra.mxu0 0.0
      %1115 = vmatprep.subr.mxu0 0.0
      %1116 = vmatpush1.msra.mxu0 0.0
      %1117 = vmatprep.subr.mxu0 0.0
      %1118 = vmatpush1.msra.mxu0 0.0
      %1119 = vmatprep.subr.mxu0 0.0
      %1120 = vmatpush1.msra.mxu0 0.0
      %1121 = vmatprep.subr.mxu0 0.0
      %1122 = vmatpush1.msra.mxu0 0.0
      %1123 = vmatprep.subr.mxu0 0.0
      %1124 = vmatpush1.msra.mxu0 0.0
      %1125 = vmatprep.subr.mxu0 0.0
      %1126 = vmatpush1.msra.mxu0 0.0
      %1127 = vmatprep.subr.mxu0 0.0
      %1128 = vmatpush1.msra.mxu0 0.0
      %1129 = vmatprep.subr.mxu0 0.0
      %1130 = vmatpush1.msra.mxu0 0.0
      %1131 = vmatprep.subr.mxu0 0.0
      %1132 = vmatpush1.msra.mxu0 0.0
      %1133 = vmatprep.subr.mxu0 0.0
      %1134 = vmatpush1.msra.mxu0 %v1101
      %1135 = vmatprep.subr.mxu0 0.0
      %1136 = vmatpush2.msra.mxu0 0.0
      %1137 = vmatprep.subr.mxu0 0.0
      %1138 = vmatpush2.msra.mxu0 0.0
      %1139 = vmatprep.subr.mxu0 0.0
      %1140 = vmatpush2.msra.mxu0 0.0
      %1141 = vmatprep.subr.mxu0 0.0
      %1142 = vmatpush2.msra.mxu0 0.0
      %1143 = vmatprep.subr.mxu0 0.0
      %1144 = vmatpush2.msra.mxu0 0.0
      %1145 = vmatprep.subr.mxu0 0.0
      %1146 = vmatpush2.msra.mxu0 0.0
      %1147 = vmatprep.subr.mxu0 0.0
      %1148 = vmatpush2.msra.mxu0 0.0
      %1149 = vmatprep.subr.mxu0 0.0
      %1150 = vmatpush2.msra.mxu0 0.0
      %1151 = vmatprep.subr.mxu0 0.0
      %1152 = vmatpush2.msra.mxu0 0.0
      %1153 = vmatprep.subr.mxu0 0.0
      %1154 = vmatpush2.msra.mxu0 0.0
      %1155 = vmatprep.subr.mxu0 0.0
      %1156 = vmatpush2.msra.mxu0 0.0
      %1157 = vmatprep.subr.mxu0 0.0
      %1158 = vmatpush2.msra.mxu0 0.0
      %1159 = vmatprep.subr.mxu0 0.0
      %1160 = vmatpush2.msra.mxu0 0.0
      %1161 = vmatprep.subr.mxu0 0.0
      %1162 = vmatpush2.msra.mxu0 0.0
      %1163 = vmatprep.subr.mxu0 0.0
      %1164 = vmatpush2.msra.mxu0 0.0
      %1165 = vmatprep.subr.mxu0 0.0
      %1166 = vmatpush2.msra.mxu0 0.0
      %1167 = vmatprep.mubr.f32.mxu0 0.0
      %1168 = vmatmul.mubr.f32.gmra.mxu0 %v1099
      %v1169 = vpop.f32.mrf.mxu0
      %v1170 = vadd.f32 0.0, %v1169
      %v1171 = vpop.f32.mrf.mxu0
      %1172 = vdwg.mxu0
      %v1174 = vsel %vm840, %v1170, 0
      %1176 = vmatprep.subr.mxu0 0.0
      %1177 = vmatpush1.msra.mxu0 0.0
      %1178 = vmatprep.subr.mxu0 0.0
      %1179 = vmatpush1.msra.mxu0 0.0
      %1180 = vmatprep.subr.mxu0 0.0
      %1181 = vmatpush1.msra.mxu0 0.0
      %1182 = vmatprep.subr.mxu0 0.0
      %1183 = vmatpush1.msra.mxu0 0.0
      %1184 = vmatprep.subr.mxu0 0.0
      %1185 = vmatpush1.msra.mxu0 0.0
      %1186 = vmatprep.subr.mxu0 0.0
      %1187 = vmatpush1.msra.mxu0 0.0
      %1188 = vmatprep.subr.mxu0 0.0
      %1189 = vmatpush1.msra.mxu0 0.0
      %1190 = vmatprep.subr.mxu0 0.0
      %1191 = vmatpush1.msra.mxu0 0.0
      %1192 = vmatprep.subr.mxu0 0.0
      %1193 = vmatpush1.msra.mxu0 0.0
      %1194 = vmatprep.subr.mxu0 0.0
      %1195 = vmatpush1.msra.mxu0 0.0
      %1196 = vmatprep.subr.mxu0 0.0
      %1197 = vmatpush1.msra.mxu0 0.0
      %1198 = vmatprep.subr.mxu0 0.0
      %1199 = vmatpush1.msra.mxu0 0.0
      %1200 = vmatprep.subr.mxu0 0.0
      %1201 = vmatpush1.msra.mxu0 0.0
      %1202 = vmatprep.subr.mxu0 0.0
      %1203 = vmatpush1.msra.mxu0 0.0
      %1204 = vmatprep.subr.mxu0 0.0
      %1205 = vmatpush1.msra.mxu0 0.0
      %1206 = vmatprep.subr.mxu0 0.0
      %1207 = vmatpush1.msra.mxu0 %v833
      %1208 = vmatprep.subr.mxu0 0.0
      %1209 = vmatpush2.msra.mxu0 0.0
      %1210 = vmatprep.subr.mxu0 0.0
      %1211 = vmatpush2.msra.mxu0 0.0
      %1212 = vmatprep.subr.mxu0 0.0
      %1213 = vmatpush2.msra.mxu0 0.0
      %1214 = vmatprep.subr.mxu0 0.0
      %1215 = vmatpush2.msra.mxu0 0.0
      %1216 = vmatprep.subr.mxu0 0.0
      %1217 = vmatpush2.msra.mxu0 0.0
      %1218 = vmatprep.subr.mxu0 0.0
      %1219 = vmatpush2.msra.mxu0 0.0
      %1220 = vmatprep.subr.mxu0 0.0
      %1221 = vmatpush2.msra.mxu0 0.0
      %1222 = vmatprep.subr.mxu0 0.0
      %1223 = vmatpush2.msra.mxu0 0.0
      %1224 = vmatprep.subr.mxu0 0.0
      %1225 = vmatpush2.msra.mxu0 0.0
      %1226 = vmatprep.subr.mxu0 0.0
      %1227 = vmatpush2.msra.mxu0 0.0
      %1228 = vmatprep.subr.mxu0 0.0
      %1229 = vmatpush2.msra.mxu0 0.0
      %1230 = vmatprep.subr.mxu0 0.0
      %1231 = vmatpush2.msra.mxu0 0.0
      %1232 = vmatprep.subr.mxu0 0.0
      %1233 = vmatpush2.msra.mxu0 0.0
      %1234 = vmatprep.subr.mxu0 0.0
      %1235 = vmatpush2.msra.mxu0 0.0
      %1236 = vmatprep.subr.mxu0 0.0
      %1237 = vmatpush2.msra.mxu0 0.0
      %1238 = vmatprep.subr.mxu0 0.0
      %1239 = vmatpush2.msra.mxu0 0.0
      %1240 = vmatprep.mubr.f32.mxu0 0.0
      %1241 = vmatmul.mubr.f32.gmra.mxu0 %v1174
      %v1242 = vpop.f32.mrf.mxu0
      %v1243 = vadd.f32 0.0, %v1242
      %v1244 = vpop.f32.mrf.mxu0
      %1245 = vdwg.mxu0
      %v1247 = vsel %vm840, %v1004, 0
      %1249 = vmatprep.subr.mxu0 0.0
      %1250 = vmatpush1.msra.mxu0 0.0
      %1251 = vmatprep.subr.mxu0 0.0
      %1252 = vmatpush1.msra.mxu0 0.0
      %1253 = vmatprep.subr.mxu0 0.0
      %1254 = vmatpush1.msra.mxu0 0.0
      %1255 = vmatprep.subr.mxu0 0.0
      %1256 = vmatpush1.msra.mxu0 0.0
      %1257 = vmatprep.subr.mxu0 0.0
      %1258 = vmatpush1.msra.mxu0 0.0
      %1259 = vmatprep.subr.mxu0 0.0
      %1260 = vmatpush1.msra.mxu0 0.0
      %1261 = vmatprep.subr.mxu0 0.0
      %1262 = vmatpush1.msra.mxu0 0.0
      %1263 = vmatprep.subr.mxu0 0.0
      %1264 = vmatpush1.msra.mxu0 0.0
      %1265 = vmatprep.subr.mxu0 0.0
      %1266 = vmatpush1.msra.mxu0 0.0
      %1267 = vmatprep.subr.mxu0 0.0
      %1268 = vmatpush1.msra.mxu0 0.0
      %1269 = vmatprep.subr.mxu0 0.0
      %1270 = vmatpush1.msra.mxu0 0.0
      %1271 = vmatprep.subr.mxu0 0.0
      %1272 = vmatpush1.msra.mxu0 0.0
      %1273 = vmatprep.subr.mxu0 0.0
      %1274 = vmatpush1.msra.mxu0 0.0
      %1275 = vmatprep.subr.mxu0 0.0
      %1276 = vmatpush1.msra.mxu0 0.0
      %1277 = vmatprep.subr.mxu0 0.0
      %1278 = vmatpush1.msra.mxu0 0.0
      %1279 = vmatprep.subr.mxu0 0.0
      %1280 = vmatpush1.msra.mxu0 %v832
      %1281 = vmatprep.subr.mxu0 0.0
      %1282 = vmatpush2.msra.mxu0 0.0
      %1283 = vmatprep.subr.mxu0 0.0
      %1284 = vmatpush2.msra.mxu0 0.0
      %1285 = vmatprep.subr.mxu0 0.0
      %1286 = vmatpush2.msra.mxu0 0.0
      %1287 = vmatprep.subr.mxu0 0.0
      %1288 = vmatpush2.msra.mxu0 0.0
      %1289 = vmatprep.subr.mxu0 0.0
      %1290 = vmatpush2.msra.mxu0 0.0
      %1291 = vmatprep.subr.mxu0 0.0
      %1292 = vmatpush2.msra.mxu0 0.0
      %1293 = vmatprep.subr.mxu0 0.0
      %1294 = vmatpush2.msra.mxu0 0.0
      %1295 = vmatprep.subr.mxu0 0.0
      %1296 = vmatpush2.msra.mxu0 0.0
      %1297 = vmatprep.subr.mxu0 0.0
      %1298 = vmatpush2.msra.mxu0 0.0
      %1299 = vmatprep.subr.mxu0 0.0
      %1300 = vmatpush2.msra.mxu0 0.0
      %1301 = vmatprep.subr.mxu0 0.0
      %1302 = vmatpush2.msra.mxu0 0.0
      %1303 = vmatprep.subr.mxu0 0.0
      %1304 = vmatpush2.msra.mxu0 0.0
      %1305 = vmatprep.subr.mxu0 0.0
      %1306 = vmatpush2.msra.mxu0 0.0
      %1307 = vmatprep.subr.mxu0 0.0
      %1308 = vmatpush2.msra.mxu0 0.0
      %1309 = vmatprep.subr.mxu0 0.0
      %1310 = vmatpush2.msra.mxu0 0.0
      %1311 = vmatprep.subr.mxu0 0.0
      %1312 = vmatpush2.msra.mxu0 0.0
      %1313 = vmatprep.mubr.f32.mxu0 0.0
      %1314 = vmatmul.mubr.f32.gmra.mxu0 %v1247
      %v1315 = vpop.f32.mrf.mxu0
      %v1316 = vadd.f32 %v1243, %v1315
      %v1317 = vpop.f32.mrf.mxu0
      %1318 = vdwg.mxu0
      %1319 = vrot.lane.b32.xlu0 %v836, 112
      %v1320 = vpop.permute.xlu0 %1319
      %1321 = vrot.lane.b32.xlu0 %v829, 80
      %v1322 = vpop.permute.xlu0 %1321
      %v1323 = vsel %vm840, %v1320, 0
      %v1325 = vsel %vm840, %v1322, 0
      %1327 = vmatprep.subr.mxu0 0.0
      %1328 = vmatpush1.xpose.msra.mxu0 0.0
      %1329 = vmatprep.subr.mxu0 0.0
      %1330 = vmatpush1.xpose.msra.mxu0 0.0
      %1331 = vmatprep.subr.mxu0 0.0
      %1332 = vmatpush1.xpose.msra.mxu0 0.0
      %1333 = vmatprep.subr.mxu0 0.0
      %1334 = vmatpush1.xpose.msra.mxu0 0.0
      %1335 = vmatprep.subr.mxu0 0.0
      %1336 = vmatpush1.xpose.msra.mxu0 0.0
      %1337 = vmatprep.subr.mxu0 0.0
      %1338 = vmatpush1.xpose.msra.mxu0 0.0
      %1339 = vmatprep.subr.mxu0 0.0
      %1340 = vmatpush1.xpose.msra.mxu0 0.0
      %1341 = vmatprep.subr.mxu0 0.0
      %1342 = vmatpush1.xpose.msra.mxu0 0.0
      %1343 = vmatprep.subr.mxu0 0.0
      %1344 = vmatpush1.xpose.msra.mxu0 0.0
      %1345 = vmatprep.subr.mxu0 0.0
      %1346 = vmatpush1.xpose.msra.mxu0 0.0
      %1347 = vmatprep.subr.mxu0 0.0
      %1348 = vmatpush1.xpose.msra.mxu0 0.0
      %1349 = vmatprep.subr.mxu0 0.0
      %1350 = vmatpush1.xpose.msra.mxu0 0.0
      %1351 = vmatprep.subr.mxu0 0.0
      %1352 = vmatpush1.xpose.msra.mxu0 0.0
      %1353 = vmatprep.subr.mxu0 0.0
      %1354 = vmatpush1.xpose.msra.mxu0 0.0
      %1355 = vmatprep.subr.mxu0 0.0
      %1356 = vmatpush1.xpose.msra.mxu0 0.0
      %1357 = vmatprep.subr.mxu0 0.0
      %1358 = vmatpush1.xpose.msra.mxu0 %v1325
      %1359 = vmatprep.subr.mxu0 0.0
      %1360 = vmatpush2.xpose.msra.mxu0 0.0
      %1361 = vmatprep.subr.mxu0 0.0
      %1362 = vmatpush2.xpose.msra.mxu0 0.0
      %1363 = vmatprep.subr.mxu0 0.0
      %1364 = vmatpush2.xpose.msra.mxu0 0.0
      %1365 = vmatprep.subr.mxu0 0.0
      %1366 = vmatpush2.xpose.msra.mxu0 0.0
      %1367 = vmatprep.subr.mxu0 0.0
      %1368 = vmatpush2.xpose.msra.mxu0 0.0
      %1369 = vmatprep.subr.mxu0 0.0
      %1370 = vmatpush2.xpose.msra.mxu0 0.0
      %1371 = vmatprep.subr.mxu0 0.0
      %1372 = vmatpush2.xpose.msra.mxu0 0.0
      %1373 = vmatprep.subr.mxu0 0.0
      %1374 = vmatpush2.xpose.msra.mxu0 0.0
      %1375 = vmatprep.subr.mxu0 0.0
      %1376 = vmatpush2.xpose.msra.mxu0 0.0
      %1377 = vmatprep.subr.mxu0 0.0
      %1378 = vmatpush2.xpose.msra.mxu0 0.0
      %1379 = vmatprep.subr.mxu0 0.0
      %1380 = vmatpush2.xpose.msra.mxu0 0.0
      %1381 = vmatprep.subr.mxu0 0.0
      %1382 = vmatpush2.xpose.msra.mxu0 0.0
      %1383 = vmatprep.subr.mxu0 0.0
      %1384 = vmatpush2.xpose.msra.mxu0 0.0
      %1385 = vmatprep.subr.mxu0 0.0
      %1386 = vmatpush2.xpose.msra.mxu0 0.0
      %1387 = vmatprep.subr.mxu0 0.0
      %1388 = vmatpush2.xpose.msra.mxu0 0.0
      %1389 = vmatprep.subr.mxu0 0.0
      %1390 = vmatpush2.xpose.msra.mxu0 0.0
      %1391 = vmatprep.mubr.f32.mxu0 0.0
      %1392 = vmatmul.mubr.f32.gmra.mxu0 %v1323
      %v1393 = vpop.f32.mrf.mxu0
      %v1394 = vadd.f32 0.0, %v1393
      %v1395 = vpop.f32.mrf.mxu0
      %1396 = vdwg.mxu0
      %v1397 = vsel %vm916, %v1394, -inf
      %1398 = vmax.xlane.f32.xlu0 %v1397
      %v1399 = vpop.xlane.xlu0 %1398
      %v1400 = vsub.f32 %v1394, %v1399
      %v1401 = vmul.f32 %v1400, 1.442695
      %v1402 = vpow.pop %v1401
      %v1403 = vsel %vm916, %v1402, 0.0
      %1404 = vadd.xlane.f32.xlu0 %v1403
      %v1405 = vpop.xlane.xlu0 %1404
      %v1406 = vrcp.pop %v1405
      %v1407 = vmul.f32 %v1402, %v1406
      %1408 = vrot.lane.b32.xlu0 %v829, 48
      %v1409 = vpop.permute.xlu0 %1408
      %v1411 = vsel %vm930, %v1407, 0
      %v1413 = vsel %vm934, %v1409, 0
      %1415 = vmatprep.subr.mxu0 0.0
      %1416 = vmatpush1.msra.mxu0 0.0
      %1417 = vmatprep.subr.mxu0 0.0
      %1418 = vmatpush1.msra.mxu0 0.0
      %1419 = vmatprep.subr.mxu0 0.0
      %1420 = vmatpush1.msra.mxu0 0.0
      %1421 = vmatprep.subr.mxu0 0.0
      %1422 = vmatpush1.msra.mxu0 0.0
      %1423 = vmatprep.subr.mxu0 0.0
      %1424 = vmatpush1.msra.mxu0 0.0
      %1425 = vmatprep.subr.mxu0 0.0
      %1426 = vmatpush1.msra.mxu0 0.0
      %1427 = vmatprep.subr.mxu0 0.0
      %1428 = vmatpush1.msra.mxu0 0.0
      %1429 = vmatprep.subr.mxu0 0.0
      %1430 = vmatpush1.msra.mxu0 0.0
      %1431 = vmatprep.subr.mxu0 0.0
      %1432 = vmatpush1.msra.mxu0 0.0
      %1433 = vmatprep.subr.mxu0 0.0
      %1434 = vmatpush1.msra.mxu0 0.0
      %1435 = vmatprep.subr.mxu0 0.0
      %1436 = vmatpush1.msra.mxu0 0.0
      %1437 = vmatprep.subr.mxu0 0.0
      %1438 = vmatpush1.msra.mxu0 0.0
      %1439 = vmatprep.subr.mxu0 0.0
      %1440 = vmatpush1.msra.mxu0 0.0
      %1441 = vmatprep.subr.mxu0 0.0
      %1442 = vmatpush1.msra.mxu0 0.0
      %1443 = vmatprep.subr.mxu0 0.0
      %1444 = vmatpush1.msra.mxu0 0.0
      %1445 = vmatprep.subr.mxu0 0.0
      %1446 = vmatpush1.msra.mxu0 %v1413
      %1447 = vmatprep.subr.mxu0 0.0
      %1448 = vmatpush2.msra.mxu0 0.0
      %1449 = vmatprep.subr.mxu0 0.0
      %1450 = vmatpush2.msra.mxu0 0.0
      %1451 = vmatprep.subr.mxu0 0.0
      %1452 = vmatpush2.msra.mxu0 0.0
      %1453 = vmatprep.subr.mxu0 0.0
      %1454 = vmatpush2.msra.mxu0 0.0
      %1455 = vmatprep.subr.mxu0 0.0
      %1456 = vmatpush2.msra.mxu0 0.0
      %1457 = vmatprep.subr.mxu0 0.0
      %1458 = vmatpush2.msra.mxu0 0.0
      %1459 = vmatprep.subr.mxu0 0.0
      %1460 = vmatpush2.msra.mxu0 0.0
      %1461 = vmatprep.subr.mxu0 0.0
      %1462 = vmatpush2.msra.mxu0 0.0
      %1463 = vmatprep.subr.mxu0 0.0
      %1464 = vmatpush2.msra.mxu0 0.0
      %1465 = vmatprep.subr.mxu0 0.0
      %1466 = vmatpush2.msra.mxu0 0.0
      %1467 = vmatprep.subr.mxu0 0.0
      %1468 = vmatpush2.msra.mxu0 0.0
      %1469 = vmatprep.subr.mxu0 0.0
      %1470 = vmatpush2.msra.mxu0 0.0
      %1471 = vmatprep.subr.mxu0 0.0
      %1472 = vmatpush2.msra.mxu0 0.0
      %1473 = vmatprep.subr.mxu0 0.0
      %1474 = vmatpush2.msra.mxu0 0.0
      %1475 = vmatprep.subr.mxu0 0.0
      %1476 = vmatpush2.msra.mxu0 0.0
      %1477 = vmatprep.subr.mxu0 0.0
      %1478 = vmatpush2.msra.mxu0 0.0
      %1479 = vmatprep.mubr.f32.mxu0 0.0
      %1480 = vmatmul.mubr.f32.gmra.mxu0 %v1411
      %v1481 = vpop.f32.mrf.mxu0
      %v1482 = vadd.f32 0.0, %v1481
      %v1483 = vpop.f32.mrf.mxu0
      %1484 = vdwg.mxu0
      %v1486 = vsel %vm840, %v1482, 0
      %1488 = vmatprep.subr.mxu0 0.0
      %1489 = vmatpush1.msra.mxu0 0.0
      %1490 = vmatprep.subr.mxu0 0.0
      %1491 = vmatpush1.msra.mxu0 0.0
      %1492 = vmatprep.subr.mxu0 0.0
      %1493 = vmatpush1.msra.mxu0 0.0
      %1494 = vmatprep.subr.mxu0 0.0
      %1495 = vmatpush1.msra.mxu0 0.0
      %1496 = vmatprep.subr.mxu0 0.0
      %1497 = vmatpush1.msra.mxu0 0.0
      %1498 = vmatprep.subr.mxu0 0.0
      %1499 = vmatpush1.msra.mxu0 0.0
      %1500 = vmatprep.subr.mxu0 0.0
      %1501 = vmatpush1.msra.mxu0 0.0
      %1502 = vmatprep.subr.mxu0 0.0
      %1503 = vmatpush1.msra.mxu0 0.0
      %1504 = vmatprep.subr.mxu0 0.0
      %1505 = vmatpush1.msra.mxu0 0.0
      %1506 = vmatprep.subr.mxu0 0.0
      %1507 = vmatpush1.msra.mxu0 0.0
      %1508 = vmatprep.subr.mxu0 0.0
      %1509 = vmatpush1.msra.mxu0 0.0
      %1510 = vmatprep.subr.mxu0 0.0
      %1511 = vmatpush1.msra.mxu0 0.0
      %1512 = vmatprep.subr.mxu0 0.0
      %1513 = vmatpush1.msra.mxu0 0.0
      %1514 = vmatprep.subr.mxu0 0.0
      %1515 = vmatpush1.msra.mxu0 0.0
      %1516 = vmatprep.subr.mxu0 0.0
      %1517 = vmatpush1.msra.mxu0 0.0
      %1518 = vmatprep.subr.mxu0 0.0
      %1519 = vmatpush1.msra.mxu0 %v834
      %1520 = vmatprep.subr.mxu0 0.0
      %1521 = vmatpush2.msra.mxu0 0.0
      %1522 = vmatprep.subr.mxu0 0.0
      %1523 = vmatpush2.msra.mxu0 0.0
      %1524 = vmatprep.subr.mxu0 0.0
      %1525 = vmatpush2.msra.mxu0 0.0
      %1526 = vmatprep.subr.mxu0 0.0
      %1527 = vmatpush2.msra.mxu0 0.0
      %1528 = vmatprep.subr.mxu0 0.0
      %1529 = vmatpush2.msra.mxu0 0.0
      %1530 = vmatprep.subr.mxu0 0.0
      %1531 = vmatpush2.msra.mxu0 0.0
      %1532 = vmatprep.subr.mxu0 0.0
      %1533 = vmatpush2.msra.mxu0 0.0
      %1534 = vmatprep.subr.mxu0 0.0
      %1535 = vmatpush2.msra.mxu0 0.0
      %1536 = vmatprep.subr.mxu0 0.0
      %1537 = vmatpush2.msra.mxu0 0.0
      %1538 = vmatprep.subr.mxu0 0.0
      %1539 = vmatpush2.msra.mxu0 0.0
      %1540 = vmatprep.subr.mxu0 0.0
      %1541 = vmatpush2.msra.mxu0 0.0
      %1542 = vmatprep.subr.mxu0 0.0
      %1543 = vmatpush2.msra.mxu0 0.0
      %1544 = vmatprep.subr.mxu0 0.0
      %1545 = vmatpush2.msra.mxu0 0.0
      %1546 = vmatprep.subr.mxu0 0.0
      %1547 = vmatpush2.msra.mxu0 0.0
      %1548 = vmatprep.subr.mxu0 0.0
      %1549 = vmatpush2.msra.mxu0 0.0
      %1550 = vmatprep.subr.mxu0 0.0
      %1551 = vmatpush2.msra.mxu0 0.0
      %1552 = vmatprep.mubr.f32.mxu0 0.0
      %1553 = vmatmul.mubr.f32.gmra.mxu0 %v1486
      %v1554 = vpop.f32.mrf.mxu0
      %v1555 = vadd.f32 0.0, %v1554
      %v1556 = vpop.f32.mrf.mxu0
      %1557 = vdwg.mxu0
      %v1558 = vadd.f32 %v1316, %v1555
      %1559 = vrot.lane.b32.xlu0 %v836, 104
      %v1560 = vpop.permute.xlu0 %1559
      %1561 = vrot.lane.b32.xlu0 %v829, 72
      %v1562 = vpop.permute.xlu0 %1561
      %v1563 = vsel %vm840, %v1560, 0
      %v1565 = vsel %vm840, %v1562, 0
      %1567 = vmatprep.subr.mxu0 0.0
      %1568 = vmatpush1.xpose.msra.mxu0 0.0
      %1569 = vmatprep.subr.mxu0 0.0
      %1570 = vmatpush1.xpose.msra.mxu0 0.0
      %1571 = vmatprep.subr.mxu0 0.0
      %1572 = vmatpush1.xpose.msra.mxu0 0.0
      %1573 = vmatprep.subr.mxu0 0.0
      %1574 = vmatpush1.xpose.msra.mxu0 0.0
      %1575 = vmatprep.subr.mxu0 0.0
      %1576 = vmatpush1.xpose.msra.mxu0 0.0
      %1577 = vmatprep.subr.mxu0 0.0
      %1578 = vmatpush1.xpose.msra.mxu0 0.0
      %1579 = vmatprep.subr.mxu0 0.0
      %1580 = vmatpush1.xpose.msra.mxu0 0.0
      %1581 = vmatprep.subr.mxu0 0.0
      %1582 = vmatpush1.xpose.msra.mxu0 0.0
      %1583 = vmatprep.subr.mxu0 0.0
      %1584 = vmatpush1.xpose.msra.mxu0 0.0
      %1585 = vmatprep.subr.mxu0 0.0
      %1586 = vmatpush1.xpose.msra.mxu0 0.0
      %1587 = vmatprep.subr.mxu0 0.0
      %1588 = vmatpush1.xpose.msra.mxu0 0.0
      %1589 = vmatprep.subr.mxu0 0.0
      %1590 = vmatpush1.xpose.msra.mxu0 0.0
      %1591 = vmatprep.subr.mxu0 0.0
      %1592 = vmatpush1.xpose.msra.mxu0 0.0
      %1593 = vmatprep.subr.mxu0 0.0
      %1594 = vmatpush1.xpose.msra.mxu0 0.0
      %1595 = vmatprep.subr.mxu0 0.0
      %1596 = vmatpush1.xpose.msra.mxu0 0.0
      %1597 = vmatprep.subr.mxu0 0.0
      %1598 = vmatpush1.xpose.msra.mxu0 %v1565
      %1599 = vmatprep.subr.mxu0 0.0
      %1600 = vmatpush2.xpose.msra.mxu0 0.0
      %1601 = vmatprep.subr.mxu0 0.0
      %1602 = vmatpush2.xpose.msra.mxu0 0.0
      %1603 = vmatprep.subr.mxu0 0.0
      %1604 = vmatpush2.xpose.msra.mxu0 0.0
      %1605 = vmatprep.subr.mxu0 0.0
      %1606 = vmatpush2.xpose.msra.mxu0 0.0
      %1607 = vmatprep.subr.mxu0 0.0
      %1608 = vmatpush2.xpose.msra.mxu0 0.0
      %1609 = vmatprep.subr.mxu0 0.0
      %1610 = vmatpush2.xpose.msra.mxu0 0.0
      %1611 = vmatprep.subr.mxu0 0.0
      %1612 = vmatpush2.xpose.msra.mxu0 0.0
      %1613 = vmatprep.subr.mxu0 0.0
      %1614 = vmatpush2.xpose.msra.mxu0 0.0
      %1615 = vmatprep.subr.mxu0 0.0
      %1616 = vmatpush2.xpose.msra.mxu0 0.0
      %1617 = vmatprep.subr.mxu0 0.0
      %1618 = vmatpush2.xpose.msra.mxu0 0.0
      %1619 = vmatprep.subr.mxu0 0.0
      %1620 = vmatpush2.xpose.msra.mxu0 0.0
      %1621 = vmatprep.subr.mxu0 0.0
      %1622 = vmatpush2.xpose.msra.mxu0 0.0
      %1623 = vmatprep.subr.mxu0 0.0
      %1624 = vmatpush2.xpose.msra.mxu0 0.0
      %1625 = vmatprep.subr.mxu0 0.0
      %1626 = vmatpush2.xpose.msra.mxu0 0.0
      %1627 = vmatprep.subr.mxu0 0.0
      %1628 = vmatpush2.xpose.msra.mxu0 0.0
      %1629 = vmatprep.subr.mxu0 0.0
      %1630 = vmatpush2.xpose.msra.mxu0 0.0
      %1631 = vmatprep.mubr.f32.mxu0 0.0
      %1632 = vmatmul.mubr.f32.gmra.mxu0 %v1563
      %v1633 = vpop.f32.mrf.mxu0
      %v1634 = vadd.f32 0.0, %v1633
      %v1635 = vpop.f32.mrf.mxu0
      %1636 = vdwg.mxu0
      %v1637 = vsel %vm916, %v1634, -inf
      %1638 = vmax.xlane.f32.xlu0 %v1637
      %v1639 = vpop.xlane.xlu0 %1638
      %v1640 = vsub.f32 %v1634, %v1639
      %v1641 = vmul.f32 %v1640, 1.442695
      %v1642 = vpow.pop %v1641
      %v1643 = vsel %vm916, %v1642, 0.0
      %1644 = vadd.xlane.f32.xlu0 %v1643
      %v1645 = vpop.xlane.xlu0 %1644
      %v1646 = vrcp.pop %v1645
      %v1647 = vmul.f32 %v1642, %v1646
      %1648 = vrot.lane.b32.xlu0 %v829, 40
      %v1649 = vpop.permute.xlu0 %1648
      %v1651 = vsel %vm930, %v1647, 0
      %v1653 = vsel %vm934, %v1649, 0
      %1655 = vmatprep.subr.mxu0 0.0
      %1656 = vmatpush1.msra.mxu0 0.0
      %1657 = vmatprep.subr.mxu0 0.0
      %1658 = vmatpush1.msra.mxu0 0.0
      %1659 = vmatprep.subr.mxu0 0.0
      %1660 = vmatpush1.msra.mxu0 0.0
      %1661 = vmatprep.subr.mxu0 0.0
      %1662 = vmatpush1.msra.mxu0 0.0
      %1663 = vmatprep.subr.mxu0 0.0
      %1664 = vmatpush1.msra.mxu0 0.0
      %1665 = vmatprep.subr.mxu0 0.0
      %1666 = vmatpush1.msra.mxu0 0.0
      %1667 = vmatprep.subr.mxu0 0.0
      %1668 = vmatpush1.msra.mxu0 0.0
      %1669 = vmatprep.subr.mxu0 0.0
      %1670 = vmatpush1.msra.mxu0 0.0
      %1671 = vmatprep.subr.mxu0 0.0
      %1672 = vmatpush1.msra.mxu0 0.0
      %1673 = vmatprep.subr.mxu0 0.0
      %1674 = vmatpush1.msra.mxu0 0.0
      %1675 = vmatprep.subr.mxu0 0.0
      %1676 = vmatpush1.msra.mxu0 0.0
      %1677 = vmatprep.subr.mxu0 0.0
      %1678 = vmatpush1.msra.mxu0 0.0
      %1679 = vmatprep.subr.mxu0 0.0
      %1680 = vmatpush1.msra.mxu0 0.0
      %1681 = vmatprep.subr.mxu0 0.0
      %1682 = vmatpush1.msra.mxu0 0.0
      %1683 = vmatprep.subr.mxu0 0.0
      %1684 = vmatpush1.msra.mxu0 0.0
      %1685 = vmatprep.subr.mxu0 0.0
      %1686 = vmatpush1.msra.mxu0 %v1653
      %1687 = vmatprep.subr.mxu0 0.0
      %1688 = vmatpush2.msra.mxu0 0.0
      %1689 = vmatprep.subr.mxu0 0.0
      %1690 = vmatpush2.msra.mxu0 0.0
      %1691 = vmatprep.subr.mxu0 0.0
      %1692 = vmatpush2.msra.mxu0 0.0
      %1693 = vmatprep.subr.mxu0 0.0
      %1694 = vmatpush2.msra.mxu0 0.0
      %1695 = vmatprep.subr.mxu0 0.0
      %1696 = vmatpush2.msra.mxu0 0.0
      %1697 = vmatprep.subr.mxu0 0.0
      %1698 = vmatpush2.msra.mxu0 0.0
      %1699 = vmatprep.subr.mxu0 0.0
      %1700 = vmatpush2.msra.mxu0 0.0
      %1701 = vmatprep.subr.mxu0 0.0
      %1702 = vmatpush2.msra.mxu0 0.0
      %1703 = vmatprep.subr.mxu0 0.0
      %1704 = vmatpush2.msra.mxu0 0.0
      %1705 = vmatprep.subr.mxu0 0.0
      %1706 = vmatpush2.msra.mxu0 0.0
      %1707 = vmatprep.subr.mxu0 0.0
      %1708 = vmatpush2.msra.mxu0 0.0
      %1709 = vmatprep.subr.mxu0 0.0
      %1710 = vmatpush2.msra.mxu0 0.0
      %1711 = vmatprep.subr.mxu0 0.0
      %1712 = vmatpush2.msra.mxu0 0.0
      %1713 = vmatprep.subr.mxu0 0.0
      %1714 = vmatpush2.msra.mxu0 0.0
      %1715 = vmatprep.subr.mxu0 0.0
      %1716 = vmatpush2.msra.mxu0 0.0
      %1717 = vmatprep.subr.mxu0 0.0
      %1718 = vmatpush2.msra.mxu0 0.0
      %1719 = vmatprep.mubr.f32.mxu0 0.0
      %1720 = vmatmul.mubr.f32.gmra.mxu0 %v1651
      %v1721 = vpop.f32.mrf.mxu0
      %v1722 = vadd.f32 0.0, %v1721
      %v1723 = vpop.f32.mrf.mxu0
      %1724 = vdwg.mxu0
      %v1726 = vsel %vm840, %v1722, 0
      %1728 = vmatprep.subr.mxu0 0.0
      %1729 = vmatpush1.msra.mxu0 0.0
      %1730 = vmatprep.subr.mxu0 0.0
      %1731 = vmatpush1.msra.mxu0 0.0
      %1732 = vmatprep.subr.mxu0 0.0
      %1733 = vmatpush1.msra.mxu0 0.0
      %1734 = vmatprep.subr.mxu0 0.0
      %1735 = vmatpush1.msra.mxu0 0.0
      %1736 = vmatprep.subr.mxu0 0.0
      %1737 = vmatpush1.msra.mxu0 0.0
      %1738 = vmatprep.subr.mxu0 0.0
      %1739 = vmatpush1.msra.mxu0 0.0
      %1740 = vmatprep.subr.mxu0 0.0
      %1741 = vmatpush1.msra.mxu0 0.0
      %1742 = vmatprep.subr.mxu0 0.0
      %1743 = vmatpush1.msra.mxu0 0.0
      %1744 = vmatprep.subr.mxu0 0.0
      %1745 = vmatpush1.msra.mxu0 0.0
      %1746 = vmatprep.subr.mxu0 0.0
      %1747 = vmatpush1.msra.mxu0 0.0
      %1748 = vmatprep.subr.mxu0 0.0
      %1749 = vmatpush1.msra.mxu0 0.0
      %1750 = vmatprep.subr.mxu0 0.0
      %1751 = vmatpush1.msra.mxu0 0.0
      %1752 = vmatprep.subr.mxu0 0.0
      %1753 = vmatpush1.msra.mxu0 0.0
      %1754 = vmatprep.subr.mxu0 0.0
      %1755 = vmatpush1.msra.mxu0 0.0
      %1756 = vmatprep.subr.mxu0 0.0
      %1757 = vmatpush1.msra.mxu0 0.0
      %1758 = vmatprep.subr.mxu0 0.0
      %1759 = vmatpush1.msra.mxu0 %v835
      %1760 = vmatprep.subr.mxu0 0.0
      %1761 = vmatpush2.msra.mxu0 0.0
      %1762 = vmatprep.subr.mxu0 0.0
      %1763 = vmatpush2.msra.mxu0 0.0
      %1764 = vmatprep.subr.mxu0 0.0
      %1765 = vmatpush2.msra.mxu0 0.0
      %1766 = vmatprep.subr.mxu0 0.0
      %1767 = vmatpush2.msra.mxu0 0.0
      %1768 = vmatprep.subr.mxu0 0.0
      %1769 = vmatpush2.msra.mxu0 0.0
      %1770 = vmatprep.subr.mxu0 0.0
      %1771 = vmatpush2.msra.mxu0 0.0
      %1772 = vmatprep.subr.mxu0 0.0
      %1773 = vmatpush2.msra.mxu0 0.0
      %1774 = vmatprep.subr.mxu0 0.0
      %1775 = vmatpush2.msra.mxu0 0.0
      %1776 = vmatprep.subr.mxu0 0.0
      %1777 = vmatpush2.msra.mxu0 0.0
      %1778 = vmatprep.subr.mxu0 0.0
      %1779 = vmatpush2.msra.mxu0 0.0
      %1780 = vmatprep.subr.mxu0 0.0
      %1781 = vmatpush2.msra.mxu0 0.0
      %1782 = vmatprep.subr.mxu0 0.0
      %1783 = vmatpush2.msra.mxu0 0.0
      %1784 = vmatprep.subr.mxu0 0.0
      %1785 = vmatpush2.msra.mxu0 0.0
      %1786 = vmatprep.subr.mxu0 0.0
      %1787 = vmatpush2.msra.mxu0 0.0
      %1788 = vmatprep.subr.mxu0 0.0
      %1789 = vmatpush2.msra.mxu0 0.0
      %1790 = vmatprep.subr.mxu0 0.0
      %1791 = vmatpush2.msra.mxu0 0.0
      %1792 = vmatprep.mubr.f32.mxu0 0.0
      %1793 = vmatmul.mubr.f32.gmra.mxu0 %v1726
      %v1794 = vpop.f32.mrf.mxu0
      %v1795 = vadd.f32 0.0, %v1794
      %v1796 = vpop.f32.mrf.mxu0
      %1797 = vdwg.mxu0
      %v1798 = vadd.f32 %v1558, %v1795
      %v1799 = vadd.f32 %v715, %v1798
      %v1800 = vld [vmem:[%s10] sm:$0x1]
      %v1802 = vlaneseq
      %v1803 = vshrl.u32 %v1802, 7
      %v1804 = vsub.s32 0, %v1803
      %v1805 = vrot.slane %v1800, %v1804
      %v1807 = vadd.f32 %v1799, %v1805
      %v1808 = vld [vmem:[%s11] sm:$0x1]
      %v1809 = vld [vmem:[%s12] sm:$0x1]
      %v1810 = vsel %vm718, %v1807, 0.0
      %1811 = vadd.xlane.f32.xlu0 %v1810
      %v1812 = vpop.xlane.xlu0 %1811
      %v1813 = vmul.f32 %v1812, %v722
      %v1814 = vsub.f32 %v1807, %v1813
      %v1815 = vmul.f32 %v1814, %v1814
      %v1816 = vsel %vm718, %v1815, 0.0
      %1817 = vadd.xlane.f32.xlu0 %v1816
      %v1818 = vpop.xlane.xlu0 %1817
      %v1819 = vmul.f32 %v1818, %v722
      %v1820 = vadd.f32 %v1819, 1e-12
      %v1821 = vrsqrt.pop %v1820
      %v1822 = vmul.f32 %v1814, %v1821
      %v1824 = vlaneseq
      %v1825 = vshrl.u32 %v1824, 7
      %v1826 = vsub.s32 0, %v1825
      %v1827 = vrot.slane %v1808, %v1826
      %v1829 = vmul.f32 %v1822, %v1827
      %v1831 = vlaneseq
      %v1832 = vshrl.u32 %v1831, 7
      %v1833 = vsub.s32 0, %v1832
      %v1834 = vrot.slane %v1809, %v1833
      %v1836 = vadd.f32 %v1829, %v1834
      %v1837 = vld [vmem:[%s13] sm:$0xff]
      %v1838 = vld [vmem:[%s13 + $0x8] sm:$0xff]
      %v1839 = vld [vmem:[%s13 + $0x10] sm:$0xff]
      %v1840 = vld [vmem:[%s13 + $0x18] sm:$0xff]
      %v1841 = vld [vmem:[%s14] sm:$0x1]
      %v1843 = vlaneseq
      %v1844 = vshrl.u32 %v1843, 7
      %v1845 = vsub.s32 0, %v1844
      %v1846 = vrot.slane %v1841, %v1845
      %v1849 = vsel %vm758, %v1836, 0
      %1851 = vmatprep.subr.mxu0 0.0
      %1852 = vmatpush1.msra.mxu0 0.0
      %1853 = vmatprep.subr.mxu0 0.0
      %1854 = vmatpush1.msra.mxu0 0.0
      %1855 = vmatprep.subr.mxu0 0.0
      %1856 = vmatpush1.msra.mxu0 0.0
      %1857 = vmatprep.subr.mxu0 0.0
      %1858 = vmatpush1.msra.mxu0 0.0
      %1859 = vmatprep.subr.mxu0 0.0
      %1860 = vmatpush1.msra.mxu0 0.0
      %1861 = vmatprep.subr.mxu0 0.0
      %1862 = vmatpush1.msra.mxu0 0.0
      %1863 = vmatprep.subr.mxu0 0.0
      %1864 = vmatpush1.msra.mxu0 0.0
      %1865 = vmatprep.subr.mxu0 0.0
      %1866 = vmatpush1.msra.mxu0 0.0
      %1867 = vmatprep.subr.mxu0 0.0
      %1868 = vmatpush1.msra.mxu0 0.0
      %1869 = vmatprep.subr.mxu0 0.0
      %1870 = vmatpush1.msra.mxu0 0.0
      %1871 = vmatprep.subr.mxu0 0.0
      %1872 = vmatpush1.msra.mxu0 0.0
      %1873 = vmatprep.subr.mxu0 0.0
      %1874 = vmatpush1.msra.mxu0 0.0
      %1875 = vmatprep.subr.mxu0 0.0
      %1876 = vmatpush1.msra.mxu0 %v1840
      %1877 = vmatprep.subr.mxu0 0.0
      %1878 = vmatpush1.msra.mxu0 %v1839
      %1879 = vmatprep.subr.mxu0 0.0
      %1880 = vmatpush1.msra.mxu0 %v1838
      %1881 = vmatprep.subr.mxu0 0.0
      %1882 = vmatpush1.msra.mxu0 %v1837
      %1883 = vmatprep.subr.mxu0 0.0
      %1884 = vmatpush2.msra.mxu0 0.0
      %1885 = vmatprep.subr.mxu0 0.0
      %1886 = vmatpush2.msra.mxu0 0.0
      %1887 = vmatprep.subr.mxu0 0.0
      %1888 = vmatpush2.msra.mxu0 0.0
      %1889 = vmatprep.subr.mxu0 0.0
      %1890 = vmatpush2.msra.mxu0 0.0
      %1891 = vmatprep.subr.mxu0 0.0
      %1892 = vmatpush2.msra.mxu0 0.0
      %1893 = vmatprep.subr.mxu0 0.0
      %1894 = vmatpush2.msra.mxu0 0.0
      %1895 = vmatprep.subr.mxu0 0.0
      %1896 = vmatpush2.msra.mxu0 0.0
      %1897 = vmatprep.subr.mxu0 0.0
      %1898 = vmatpush2.msra.mxu0 0.0
      %1899 = vmatprep.subr.mxu0 0.0
      %1900 = vmatpush2.msra.mxu0 0.0
      %1901 = vmatprep.subr.mxu0 0.0
      %1902 = vmatpush2.msra.mxu0 0.0
      %1903 = vmatprep.subr.mxu0 0.0
      %1904 = vmatpush2.msra.mxu0 0.0
      %1905 = vmatprep.subr.mxu0 0.0
      %1906 = vmatpush2.msra.mxu0 0.0
      %1907 = vmatprep.subr.mxu0 0.0
      %1908 = vmatpush2.msra.mxu0 0.0
      %1909 = vmatprep.subr.mxu0 0.0
      %1910 = vmatpush2.msra.mxu0 0.0
      %1911 = vmatprep.subr.mxu0 0.0
      %1912 = vmatpush2.msra.mxu0 0.0
      %1913 = vmatprep.subr.mxu0 0.0
      %1914 = vmatpush2.msra.mxu0 0.0
      %1915 = vmatprep.mubr.f32.mxu0 0.0
      %1916 = vmatmul.mubr.f32.gmra.mxu0 %v1849
      %v1917 = vpop.f32.mrf.mxu0
      %v1918 = vadd.f32 %v1846, %v1917
      %v1919 = vpop.f32.mrf.mxu0
      %1920 = vdwg.mxu0
      %v1921 = vmul.f32 %v1918, 0.5
      %v1922 = vmul.f32 %v1918, 0.70710677
      %v1923 = verf.f32.pop %v1922
      %v1924 = vadd.f32 %v1923, 1.0
      %v1925 = vmul.f32 %v1921, %v1924
      %v1926 = vld [vmem:[%s15] sm:$0xff]
      %v1927 = vld [vmem:[%s15 + $0x8] sm:$0xff]
      %v1928 = vld [vmem:[%s15 + $0x10] sm:$0xff]
      %v1929 = vld [vmem:[%s15 + $0x18] sm:$0xff]
      %v1930 = vld [vmem:[%s15 + $0x20] sm:$0xff]
      %v1931 = vld [vmem:[%s15 + $0x28] sm:$0xff]
      %v1932 = vld [vmem:[%s15 + $0x30] sm:$0xff]
      %v1933 = vld [vmem:[%s15 + $0x38] sm:$0xff]
      %v1935 = vsel %vm635, %v1925, 0
      %1937 = vmatprep.subr.mxu0 0.0
      %1938 = vmatpush1.msra.mxu0 0.0
      %1939 = vmatprep.subr.mxu0 0.0
      %1940 = vmatpush1.msra.mxu0 0.0
      %1941 = vmatprep.subr.mxu0 0.0
      %1942 = vmatpush1.msra.mxu0 0.0
      %1943 = vmatprep.subr.mxu0 0.0
      %1944 = vmatpush1.msra.mxu0 0.0
      %1945 = vmatprep.subr.mxu0 0.0
      %1946 = vmatpush1.msra.mxu0 0.0
      %1947 = vmatprep.subr.mxu0 0.0
      %1948 = vmatpush1.msra.mxu0 0.0
      %1949 = vmatprep.subr.mxu0 0.0
      %1950 = vmatpush1.msra.mxu0 0.0
      %1951 = vmatprep.subr.mxu0 0.0
      %1952 = vmatpush1.msra.mxu0 0.0
      %1953 = vmatprep.subr.mxu0 0.0
      %1954 = vmatpush1.msra.mxu0 %v1933
      %1955 = vmatprep.subr.mxu0 0.0
      %1956 = vmatpush1.msra.mxu0 %v1932
      %1957 = vmatprep.subr.mxu0 0.0
      %1958 = vmatpush1.msra.mxu0 %v1931
      %1959 = vmatprep.subr.mxu0 0.0
      %1960 = vmatpush1.msra.mxu0 %v1930
      %1961 = vmatprep.subr.mxu0 0.0
      %1962 = vmatpush1.msra.mxu0 %v1929
      %1963 = vmatprep.subr.mxu0 0.0
      %1964 = vmatpush1.msra.mxu0 %v1928
      %1965 = vmatprep.subr.mxu0 0.0
      %1966 = vmatpush1.msra.mxu0 %v1927
      %1967 = vmatprep.subr.mxu0 0.0
      %1968 = vmatpush1.msra.mxu0 %v1926
      %1969 = vmatprep.subr.mxu0 0.0
      %1970 = vmatpush2.msra.mxu0 0.0
      %1971 = vmatprep.subr.mxu0 0.0
      %1972 = vmatpush2.msra.mxu0 0.0
      %1973 = vmatprep.subr.mxu0 0.0
      %1974 = vmatpush2.msra.mxu0 0.0
      %1975 = vmatprep.subr.mxu0 0.0
      %1976 = vmatpush2.msra.mxu0 0.0
      %1977 = vmatprep.subr.mxu0 0.0
      %1978 = vmatpush2.msra.mxu0 0.0
      %1979 = vmatprep.subr.mxu0 0.0
      %1980 = vmatpush2.msra.mxu0 0.0
      %1981 = vmatprep.subr.mxu0 0.0
      %1982 = vmatpush2.msra.mxu0 0.0
      %1983 = vmatprep.subr.mxu0 0.0
      %1984 = vmatpush2.msra.mxu0 0.0
      %1985 = vmatprep.subr.mxu0 0.0
      %1986 = vmatpush2.msra.mxu0 0.0
      %1987 = vmatprep.subr.mxu0 0.0
      %1988 = vmatpush2.msra.mxu0 0.0
      %1989 = vmatprep.subr.mxu0 0.0
      %1990 = vmatpush2.msra.mxu0 0.0
      %1991 = vmatprep.subr.mxu0 0.0
      %1992 = vmatpush2.msra.mxu0 0.0
      %1993 = vmatprep.subr.mxu0 0.0
      %1994 = vmatpush2.msra.mxu0 0.0
      %1995 = vmatprep.subr.mxu0 0.0
      %1996 = vmatpush2.msra.mxu0 0.0
      %1997 = vmatprep.subr.mxu0 0.0
      %1998 = vmatpush2.msra.mxu0 0.0
      %1999 = vmatprep.subr.mxu0 0.0
      %2000 = vmatpush2.msra.mxu0 0.0
      %2001 = vmatprep.mubr.f32.mxu0 0.0
      %2002 = vmatmul.mubr.f32.gmra.mxu0 %v1935
      %v2003 = vpop.f32.mrf.mxu0
      %v2004 = vadd.f32 0.0, %v2003
      %v2005 = vpop.f32.mrf.mxu0
      %2006 = vdwg.mxu0
      %v2007 = vadd.f32 %v1807, %v2004
      %v2008 = vld [vmem:[%s16] sm:$0x1]
      %v2010 = vlaneseq
      %v2011 = vshrl.u32 %v2010, 7
      %v2012 = vsub.s32 0, %v2011
      %v2013 = vrot.slane %v2008, %v2012
      %v2015 = vadd.f32 %v2007, %v2013
      %s2016 = scalar_lea.vmem %s5, 1
      %v2017 = vld [vmem:[%s2016] sm:$0x1]
      %s2018 = scalar_lea.vmem %s6, 1
      %v2019 = vld [vmem:[%s2018] sm:$0x1]
      %v2020 = vsel %vm718, %v2015, 0.0
      %2021 = vadd.xlane.f32.xlu0 %v2020
      %v2022 = vpop.xlane.xlu0 %2021
      %v2023 = vmul.f32 %v2022, %v722
      %v2024 = vsub.f32 %v2015, %v2023
      %v2025 = vmul.f32 %v2024, %v2024
      %v2026 = vsel %vm718, %v2025, 0.0
      %2027 = vadd.xlane.f32.xlu0 %v2026
      %v2028 = vpop.xlane.xlu0 %2027
      %v2029 = vmul.f32 %v2028, %v722
      %v2030 = vadd.f32 %v2029, 1e-12
      %v2031 = vrsqrt.pop %v2030
      %v2032 = vmul.f32 %v2024, %v2031
      %v2034 = vlaneseq
      %v2035 = vshrl.u32 %v2034, 7
      %v2036 = vsub.s32 0, %v2035
      %v2037 = vrot.slane %v2017, %v2036
      %v2039 = vmul.f32 %v2032, %v2037
      %v2041 = vlaneseq
      %v2042 = vshrl.u32 %v2041, 7
      %v2043 = vsub.s32 0, %v2042
      %v2044 = vrot.slane %v2019, %v2043
      %v2046 = vadd.f32 %v2039, %v2044
      %s2047 = scalar_lea.vmem %s7, 32
      %v2048 = vld [vmem:[%s2047] sm:$0xff]
      %v2049 = vld [vmem:[%s2047 + $0x8] sm:$0xff]
      %v2050 = vld [vmem:[%s2047 + $0x10] sm:$0xff]
      %v2051 = vld [vmem:[%s2047 + $0x18] sm:$0xff]
      %s2052 = scalar_lea.vmem %s8, 1
      %v2053 = vld [vmem:[%s2052] sm:$0x1]
      %v2055 = vlaneseq
      %v2056 = vshrl.u32 %v2055, 7
      %v2057 = vsub.s32 0, %v2056
      %v2058 = vrot.slane %v2053, %v2057
      %v2061 = vsel %vm758, %v2046, 0
      %2063 = vmatprep.subr.mxu0 0.0
      %2064 = vmatpush1.msra.mxu0 0.0
      %2065 = vmatprep.subr.mxu0 0.0
      %2066 = vmatpush1.msra.mxu0 0.0
      %2067 = vmatprep.subr.mxu0 0.0
      %2068 = vmatpush1.msra.mxu0 0.0
      %2069 = vmatprep.subr.mxu0 0.0
      %2070 = vmatpush1.msra.mxu0 0.0
      %2071 = vmatprep.subr.mxu0 0.0
      %2072 = vmatpush1.msra.mxu0 0.0
      %2073 = vmatprep.subr.mxu0 0.0
      %2074 = vmatpush1.msra.mxu0 0.0
      %2075 = vmatprep.subr.mxu0 0.0
      %2076 = vmatpush1.msra.mxu0 0.0
      %2077 = vmatprep.subr.mxu0 0.0
      %2078 = vmatpush1.msra.mxu0 0.0
      %2079 = vmatprep.subr.mxu0 0.0
      %2080 = vmatpush1.msra.mxu0 0.0
      %2081 = vmatprep.subr.mxu0 0.0
      %2082 = vmatpush1.msra.mxu0 0.0
      %2083 = vmatprep.subr.mxu0 0.0
      %2084 = vmatpush1.msra.mxu0 0.0
      %2085 = vmatprep.subr.mxu0 0.0
      %2086 = vmatpush1.msra.mxu0 0.0
      %2087 = vmatprep.subr.mxu0 0.0
      %2088 = vmatpush1.msra.mxu0 %v2051
      %2089 = vmatprep.subr.mxu0 0.0
      %2090 = vmatpush1.msra.mxu0 %v2050
      %2091 = vmatprep.subr.mxu0 0.0
      %2092 = vmatpush1.msra.mxu0 %v2049
      %2093 = vmatprep.subr.mxu0 0.0
      %2094 = vmatpush1.msra.mxu0 %v2048
      %2095 = vmatprep.subr.mxu0 0.0
      %2096 = vmatpush2.msra.mxu0 0.0
      %2097 = vmatprep.subr.mxu0 0.0
      %2098 = vmatpush2.msra.mxu0 0.0
      %2099 = vmatprep.subr.mxu0 0.0
      %2100 = vmatpush2.msra.mxu0 0.0
      %2101 = vmatprep.subr.mxu0 0.0
      %2102 = vmatpush2.msra.mxu0 0.0
      %2103 = vmatprep.subr.mxu0 0.0
      %2104 = vmatpush2.msra.mxu0 0.0
      %2105 = vmatprep.subr.mxu0 0.0
      %2106 = vmatpush2.msra.mxu0 0.0
      %2107 = vmatprep.subr.mxu0 0.0
      %2108 = vmatpush2.msra.mxu0 0.0
      %2109 = vmatprep.subr.mxu0 0.0
      %2110 = vmatpush2.msra.mxu0 0.0
      %2111 = vmatprep.subr.mxu0 0.0
      %2112 = vmatpush2.msra.mxu0 0.0
      %2113 = vmatprep.subr.mxu0 0.0
      %2114 = vmatpush2.msra.mxu0 0.0
      %2115 = vmatprep.subr.mxu0 0.0
      %2116 = vmatpush2.msra.mxu0 0.0
      %2117 = vmatprep.subr.mxu0 0.0
      %2118 = vmatpush2.msra.mxu0 0.0
      %2119 = vmatprep.subr.mxu0 0.0
      %2120 = vmatpush2.msra.mxu0 0.0
      %2121 = vmatprep.subr.mxu0 0.0
      %2122 = vmatpush2.msra.mxu0 0.0
      %2123 = vmatprep.subr.mxu0 0.0
      %2124 = vmatpush2.msra.mxu0 0.0
      %2125 = vmatprep.subr.mxu0 0.0
      %2126 = vmatpush2.msra.mxu0 0.0
      %2127 = vmatprep.mubr.f32.mxu0 0.0
      %2128 = vmatmul.mubr.f32.gmra.mxu0 %v2061
      %v2129 = vpop.f32.mrf.mxu0
      %v2130 = vadd.f32 %v2058, %v2129
      %v2131 = vpop.f32.mrf.mxu0
      %2132 = vdwg.mxu0
      %s2133 = scalar_lea.vmem %s9, 32
      %v2134 = vld [vmem:[%s2133] sm:$0xff]
      %v2135 = vld [vmem:[%s2133 + $0x8] sm:$0xff]
      %v2136 = vld [vmem:[%s2133 + $0x10] sm:$0xff]
      %v2137 = vld [vmem:[%s2133 + $0x18] sm:$0xff]
      %v2138 = vmul.f32 %v2130, 0.35355338
      %2140 = vrot.lane.b32.xlu0 %v2130, 96
      %v2141 = vpop.permute.xlu0 %2140
      %v2143 = vsel %vm840, %v2138, 0
      %v2145 = vsel %vm840, %v2141, 0
      %2147 = vmatprep.subr.mxu0 0.0
      %2148 = vmatpush1.xpose.msra.mxu0 0.0
      %2149 = vmatprep.subr.mxu0 0.0
      %2150 = vmatpush1.xpose.msra.mxu0 0.0
      %2151 = vmatprep.subr.mxu0 0.0
      %2152 = vmatpush1.xpose.msra.mxu0 0.0
      %2153 = vmatprep.subr.mxu0 0.0
      %2154 = vmatpush1.xpose.msra.mxu0 0.0
      %2155 = vmatprep.subr.mxu0 0.0
      %2156 = vmatpush1.xpose.msra.mxu0 0.0
      %2157 = vmatprep.subr.mxu0 0.0
      %2158 = vmatpush1.xpose.msra.mxu0 0.0
      %2159 = vmatprep.subr.mxu0 0.0
      %2160 = vmatpush1.xpose.msra.mxu0 0.0
      %2161 = vmatprep.subr.mxu0 0.0
      %2162 = vmatpush1.xpose.msra.mxu0 0.0
      %2163 = vmatprep.subr.mxu0 0.0
      %2164 = vmatpush1.xpose.msra.mxu0 0.0
      %2165 = vmatprep.subr.mxu0 0.0
      %2166 = vmatpush1.xpose.msra.mxu0 0.0
      %2167 = vmatprep.subr.mxu0 0.0
      %2168 = vmatpush1.xpose.msra.mxu0 0.0
      %2169 = vmatprep.subr.mxu0 0.0
      %2170 = vmatpush1.xpose.msra.mxu0 0.0
      %2171 = vmatprep.subr.mxu0 0.0
      %2172 = vmatpush1.xpose.msra.mxu0 0.0
      %2173 = vmatprep.subr.mxu0 0.0
      %2174 = vmatpush1.xpose.msra.mxu0 0.0
      %2175 = vmatprep.subr.mxu0 0.0
      %2176 = vmatpush1.xpose.msra.mxu0 0.0
      %2177 = vmatprep.subr.mxu0 0.0
      %2178 = vmatpush1.xpose.msra.mxu0 %v2145
      %2179 = vmatprep.subr.mxu0 0.0
      %2180 = vmatpush2.xpose.msra.mxu0 0.0
      %2181 = vmatprep.subr.mxu0 0.0
      %2182 = vmatpush2.xpose.msra.mxu0 0.0
      %2183 = vmatprep.subr.mxu0 0.0
      %2184 = vmatpush2.xpose.msra.mxu0 0.0
      %2185 = vmatprep.subr.mxu0 0.0
      %2186 = vmatpush2.xpose.msra.mxu0 0.0
      %2187 = vmatprep.subr.mxu0 0.0
      %2188 = vmatpush2.xpose.msra.mxu0 0.0
      %2189 = vmatprep.subr.mxu0 0.0
      %2190 = vmatpush2.xpose.msra.mxu0 0.0
      %2191 = vmatprep.subr.mxu0 0.0
      %2192 = vmatpush2.xpose.msra.mxu0 0.0
      %2193 = vmatprep.subr.mxu0 0.0
      %2194 = vmatpush2.xpose.msra.mxu0 0.0
      %2195 = vmatprep.subr.mxu0 0.0
      %2196 = vmatpush2.xpose.msra.mxu0 0.0
      %2197 = vmatprep.subr.mxu0 0.0
      %2198 = vmatpush2.xpose.msra.mxu0 0.0
      %2199 = vmatprep.subr.mxu0 0.0
      %2200 = vmatpush2.xpose.msra.mxu0 0.0
      %2201 = vmatprep.subr.mxu0 0.0
      %2202 = vmatpush2.xpose.msra.mxu0 0.0
      %2203 = vmatprep.subr.mxu0 0.0
      %2204 = vmatpush2.xpose.msra.mxu0 0.0
      %2205 = vmatprep.subr.mxu0 0.0
      %2206 = vmatpush2.xpose.msra.mxu0 0.0
      %2207 = vmatprep.subr.mxu0 0.0
      %2208 = vmatpush2.xpose.msra.mxu0 0.0
      %2209 = vmatprep.subr.mxu0 0.0
      %2210 = vmatpush2.xpose.msra.mxu0 0.0
      %2211 = vmatprep.mubr.f32.mxu0 0.0
      %2212 = vmatmul.mubr.f32.gmra.mxu0 %v2143
      %v2213 = vpop.f32.mrf.mxu0
      %v2214 = vadd.f32 0.0, %v2213
      %v2215 = vpop.f32.mrf.mxu0
      %2216 = vdwg.mxu0
      %v2217 = vsel %vm916, %v2214, -inf
      %2218 = vmax.xlane.f32.xlu0 %v2217
      %v2219 = vpop.xlane.xlu0 %2218
      %v2220 = vsub.f32 %v2214, %v2219
      %v2221 = vmul.f32 %v2220, 1.442695
      %v2222 = vpow.pop %v2221
      %v2223 = vsel %vm916, %v2222, 0.0
      %2224 = vadd.xlane.f32.xlu0 %v2223
      %v2225 = vpop.xlane.xlu0 %2224
      %v2226 = vrcp.pop %v2225
      %v2227 = vmul.f32 %v2222, %v2226
      %2228 = vrot.lane.b32.xlu0 %v2130, 64
      %v2229 = vpop.permute.xlu0 %2228
      %v2231 = vsel %vm930, %v2227, 0
      %v2233 = vsel %vm934, %v2229, 0
      %2235 = vmatprep.subr.mxu0 0.0
      %2236 = vmatpush1.msra.mxu0 0.0
      %2237 = vmatprep.subr.mxu0 0.0
      %2238 = vmatpush1.msra.mxu0 0.0
      %2239 = vmatprep.subr.mxu0 0.0
      %2240 = vmatpush1.msra.mxu0 0.0
      %2241 = vmatprep.subr.mxu0 0.0
      %2242 = vmatpush1.msra.mxu0 0.0
      %2243 = vmatprep.subr.mxu0 0.0
      %2244 = vmatpush1.msra.mxu0 0.0
      %2245 = vmatprep.subr.mxu0 0.0
      %2246 = vmatpush1.msra.mxu0 0.0
      %2247 = vmatprep.subr.mxu0 0.0
      %2248 = vmatpush1.msra.mxu0 0.0
      %2249 = vmatprep.subr.mxu0 0.0
      %2250 = vmatpush1.msra.mxu0 0.0
      %2251 = vmatprep.subr.mxu0 0.0
      %2252 = vmatpush1.msra.mxu0 0.0
      %2253 = vmatprep.subr.mxu0 0.0
      %2254 = vmatpush1.msra.mxu0 0.0
      %2255 = vmatprep.subr.mxu0 0.0
      %2256 = vmatpush1.msra.mxu0 0.0
      %2257 = vmatprep.subr.mxu0 0.0
      %2258 = vmatpush1.msra.mxu0 0.0
      %2259 = vmatprep.subr.mxu0 0.0
      %2260 = vmatpush1.msra.mxu0 0.0
      %2261 = vmatprep.subr.mxu0 0.0
      %2262 = vmatpush1.msra.mxu0 0.0
      %2263 = vmatprep.subr.mxu0 0.0
      %2264 = vmatpush1.msra.mxu0 0.0
      %2265 = vmatprep.subr.mxu0 0.0
      %2266 = vmatpush1.msra.mxu0 %v2233
      %2267 = vmatprep.subr.mxu0 0.0
      %2268 = vmatpush2.msra.mxu0 0.0
      %2269 = vmatprep.subr.mxu0 0.0
      %2270 = vmatpush2.msra.mxu0 0.0
      %2271 = vmatprep.subr.mxu0 0.0
      %2272 = vmatpush2.msra.mxu0 0.0
      %2273 = vmatprep.subr.mxu0 0.0
      %2274 = vmatpush2.msra.mxu0 0.0
      %2275 = vmatprep.subr.mxu0 0.0
      %2276 = vmatpush2.msra.mxu0 0.0
      %2277 = vmatprep.subr.mxu0 0.0
      %2278 = vmatpush2.msra.mxu0 0.0
      %2279 = vmatprep.subr.mxu0 0.0
      %2280 = vmatpush2.msra.mxu0 0.0
      %2281 = vmatprep.subr.mxu0 0.0
      %2282 = vmatpush2.msra.mxu0 0.0
      %2283 = vmatprep.subr.mxu0 0.0
      %2284 = vmatpush2.msra.mxu0 0.0
      %2285 = vmatprep.subr.mxu0 0.0
      %2286 = vmatpush2.msra.mxu0 0.0
      %2287 = vmatprep.subr.mxu0 0.0
      %2288 = vmatpush2.msra.mxu0 0.0
      %2289 = vmatprep.subr.mxu0 0.0
      %2290 = vmatpush2.msra.mxu0 0.0
      %2291 = vmatprep.subr.mxu0 0.0
      %2292 = vmatpush2.msra.mxu0 0.0
      %2293 = vmatprep.subr.mxu0 0.0
      %2294 = vmatpush2.msra.mxu0 0.0
      %2295 = vmatprep.subr.mxu0 0.0
      %2296 = vmatpush2.msra.mxu0 0.0
      %2297 = vmatprep.subr.mxu0 0.0
      %2298 = vmatpush2.msra.mxu0 0.0
      %2299 = vmatprep.mubr.f32.mxu0 0.0
      %2300 = vmatmul.mubr.f32.gmra.mxu0 %v2231
      %v2301 = vpop.f32.mrf.mxu0
      %v2302 = vadd.f32 0.0, %v2301
      %v2303 = vpop.f32.mrf.mxu0
      %2304 = vdwg.mxu0
      %2305 = vrot.lane.b32.xlu0 %v2138, 120
      %v2306 = vpop.permute.xlu0 %2305
      %2307 = vrot.lane.b32.xlu0 %v2130, 88
      %v2308 = vpop.permute.xlu0 %2307
      %v2309 = vsel %vm840, %v2306, 0
      %v2311 = vsel %vm840, %v2308, 0
      %2313 = vmatprep.subr.mxu0 0.0
      %2314 = vmatpush1.xpose.msra.mxu0 0.0
      %2315 = vmatprep.subr.mxu0 0.0
      %2316 = vmatpush1.xpose.msra.mxu0 0.0
      %2317 = vmatprep.subr.mxu0 0.0
      %2318 = vmatpush1.xpose.msra.mxu0 0.0
      %2319 = vmatprep.subr.mxu0 0.0
      %2320 = vmatpush1.xpose.msra.mxu0 0.0
      %2321 = vmatprep.subr.mxu0 0.0
      %2322 = vmatpush1.xpose.msra.mxu0 0.0
      %2323 = vmatprep.subr.mxu0 0.0
      %2324 = vmatpush1.xpose.msra.mxu0 0.0
      %2325 = vmatprep.subr.mxu0 0.0
      %2326 = vmatpush1.xpose.msra.mxu0 0.0
      %2327 = vmatprep.subr.mxu0 0.0
      %2328 = vmatpush1.xpose.msra.mxu0 0.0
      %2329 = vmatprep.subr.mxu0 0.0
      %2330 = vmatpush1.xpose.msra.mxu0 0.0
      %2331 = vmatprep.subr.mxu0 0.0
      %2332 = vmatpush1.xpose.msra.mxu0 0.0
      %2333 = vmatprep.subr.mxu0 0.0
      %2334 = vmatpush1.xpose.msra.mxu0 0.0
      %2335 = vmatprep.subr.mxu0 0.0
      %2336 = vmatpush1.xpose.msra.mxu0 0.0
      %2337 = vmatprep.subr.mxu0 0.0
      %2338 = vmatpush1.xpose.msra.mxu0 0.0
      %2339 = vmatprep.subr.mxu0 0.0
      %2340 = vmatpush1.xpose.msra.mxu0 0.0
      %2341 = vmatprep.subr.mxu0 0.0
      %2342 = vmatpush1.xpose.msra.mxu0 0.0
      %2343 = vmatprep.subr.mxu0 0.0
      %2344 = vmatpush1.xpose.msra.mxu0 %v2311
      %2345 = vmatprep.subr.mxu0 0.0
      %2346 = vmatpush2.xpose.msra.mxu0 0.0
      %2347 = vmatprep.subr.mxu0 0.0
      %2348 = vmatpush2.xpose.msra.mxu0 0.0
      %2349 = vmatprep.subr.mxu0 0.0
      %2350 = vmatpush2.xpose.msra.mxu0 0.0
      %2351 = vmatprep.subr.mxu0 0.0
      %2352 = vmatpush2.xpose.msra.mxu0 0.0
      %2353 = vmatprep.subr.mxu0 0.0
      %2354 = vmatpush2.xpose.msra.mxu0 0.0
      %2355 = vmatprep.subr.mxu0 0.0
      %2356 = vmatpush2.xpose.msra.mxu0 0.0
      %2357 = vmatprep.subr.mxu0 0.0
      %2358 = vmatpush2.xpose.msra.mxu0 0.0
      %2359 = vmatprep.subr.mxu0 0.0
      %2360 = vmatpush2.xpose.msra.mxu0 0.0
      %2361 = vmatprep.subr.mxu0 0.0
      %2362 = vmatpush2.xpose.msra.mxu0 0.0
      %2363 = vmatprep.subr.mxu0 0.0
      %2364 = vmatpush2.xpose.msra.mxu0 0.0
      %2365 = vmatprep.subr.mxu0 0.0
      %2366 = vmatpush2.xpose.msra.mxu0 0.0
      %2367 = vmatprep.subr.mxu0 0.0
      %2368 = vmatpush2.xpose.msra.mxu0 0.0
      %2369 = vmatprep.subr.mxu0 0.0
      %2370 = vmatpush2.xpose.msra.mxu0 0.0
      %2371 = vmatprep.subr.mxu0 0.0
      %2372 = vmatpush2.xpose.msra.mxu0 0.0
      %2373 = vmatprep.subr.mxu0 0.0
      %2374 = vmatpush2.xpose.msra.mxu0 0.0
      %2375 = vmatprep.subr.mxu0 0.0
      %2376 = vmatpush2.xpose.msra.mxu0 0.0
      %2377 = vmatprep.mubr.f32.mxu0 0.0
      %2378 = vmatmul.mubr.f32.gmra.mxu0 %v2309
      %v2379 = vpop.f32.mrf.mxu0
      %v2380 = vadd.f32 0.0, %v2379
      %v2381 = vpop.f32.mrf.mxu0
      %2382 = vdwg.mxu0
      %v2383 = vsel %vm916, %v2380, -inf
      %2384 = vmax.xlane.f32.xlu0 %v2383
      %v2385 = vpop.xlane.xlu0 %2384
      %v2386 = vsub.f32 %v2380, %v2385
      %v2387 = vmul.f32 %v2386, 1.442695
      %v2388 = vpow.pop %v2387
      %v2389 = vsel %vm916, %v2388, 0.0
      %2390 = vadd.xlane.f32.xlu0 %v2389
      %v2391 = vpop.xlane.xlu0 %2390
      %v2392 = vrcp.pop %v2391
      %v2393 = vmul.f32 %v2388, %v2392
      %2394 = vrot.lane.b32.xlu0 %v2130, 56
      %v2395 = vpop.permute.xlu0 %2394
      %v2397 = vsel %vm930, %v2393, 0
      %v2399 = vsel %vm934, %v2395, 0
      %2401 = vmatprep.subr.mxu0 0.0
      %2402 = vmatpush1.msra.mxu0 0.0
      %2403 = vmatprep.subr.mxu0 0.0
      %2404 = vmatpush1.msra.mxu0 0.0
      %2405 = vmatprep.subr.mxu0 0.0
      %2406 = vmatpush1.msra.mxu0 0.0
      %2407 = vmatprep.subr.mxu0 0.0
      %2408 = vmatpush1.msra.mxu0 0.0
      %2409 = vmatprep.subr.mxu0 0.0
      %2410 = vmatpush1.msra.mxu0 0.0
      %2411 = vmatprep.subr.mxu0 0.0
      %2412 = vmatpush1.msra.mxu0 0.0
      %2413 = vmatprep.subr.mxu0 0.0
      %2414 = vmatpush1.msra.mxu0 0.0
      %2415 = vmatprep.subr.mxu0 0.0
      %2416 = vmatpush1.msra.mxu0 0.0
      %2417 = vmatprep.subr.mxu0 0.0
      %2418 = vmatpush1.msra.mxu0 0.0
      %2419 = vmatprep.subr.mxu0 0.0
      %2420 = vmatpush1.msra.mxu0 0.0
      %2421 = vmatprep.subr.mxu0 0.0
      %2422 = vmatpush1.msra.mxu0 0.0
      %2423 = vmatprep.subr.mxu0 0.0
      %2424 = vmatpush1.msra.mxu0 0.0
      %2425 = vmatprep.subr.mxu0 0.0
      %2426 = vmatpush1.msra.mxu0 0.0
      %2427 = vmatprep.subr.mxu0 0.0
      %2428 = vmatpush1.msra.mxu0 0.0
      %2429 = vmatprep.subr.mxu0 0.0
      %2430 = vmatpush1.msra.mxu0 0.0
      %2431 = vmatprep.subr.mxu0 0.0
      %2432 = vmatpush1.msra.mxu0 %v2399
      %2433 = vmatprep.subr.mxu0 0.0
      %2434 = vmatpush2.msra.mxu0 0.0
      %2435 = vmatprep.subr.mxu0 0.0
      %2436 = vmatpush2.msra.mxu0 0.0
      %2437 = vmatprep.subr.mxu0 0.0
      %2438 = vmatpush2.msra.mxu0 0.0
      %2439 = vmatprep.subr.mxu0 0.0
      %2440 = vmatpush2.msra.mxu0 0.0
      %2441 = vmatprep.subr.mxu0 0.0
      %2442 = vmatpush2.msra.mxu0 0.0
      %2443 = vmatprep.subr.mxu0 0.0
      %2444 = vmatpush2.msra.mxu0 0.0
      %2445 = vmatprep.subr.mxu0 0.0
      %2446 = vmatpush2.msra.mxu0 0.0
      %2447 = vmatprep.subr.mxu0 0.0
      %2448 = vmatpush2.msra.mxu0 0.0
      %2449 = vmatprep.subr.mxu0 0.0
      %2450 = vmatpush2.msra.mxu0 0.0
      %2451 = vmatprep.subr.mxu0 0.0
      %2452 = vmatpush2.msra.mxu0 0.0
      %2453 = vmatprep.subr.mxu0 0.0
      %2454 = vmatpush2.msra.mxu0 0.0
      %2455 = vmatprep.subr.mxu0 0.0
      %2456 = vmatpush2.msra.mxu0 0.0
      %2457 = vmatprep.subr.mxu0 0.0
      %2458 = vmatpush2.msra.mxu0 0.0
      %2459 = vmatprep.subr.mxu0 0.0
      %2460 = vmatpush2.msra.mxu0 0.0
      %2461 = vmatprep.subr.mxu0 0.0
      %2462 = vmatpush2.msra.mxu0 0.0
      %2463 = vmatprep.subr.mxu0 0.0
      %2464 = vmatpush2.msra.mxu0 0.0
      %2465 = vmatprep.mubr.f32.mxu0 0.0
      %2466 = vmatmul.mubr.f32.gmra.mxu0 %v2397
      %v2467 = vpop.f32.mrf.mxu0
      %v2468 = vadd.f32 0.0, %v2467
      %v2469 = vpop.f32.mrf.mxu0
      %2470 = vdwg.mxu0
      %v2472 = vsel %vm840, %v2468, 0
      %2474 = vmatprep.subr.mxu0 0.0
      %2475 = vmatpush1.msra.mxu0 0.0
      %2476 = vmatprep.subr.mxu0 0.0
      %2477 = vmatpush1.msra.mxu0 0.0
      %2478 = vmatprep.subr.mxu0 0.0
      %2479 = vmatpush1.msra.mxu0 0.0
      %2480 = vmatprep.subr.mxu0 0.0
      %2481 = vmatpush1.msra.mxu0 0.0
      %2482 = vmatprep.subr.mxu0 0.0
      %2483 = vmatpush1.msra.mxu0 0.0
      %2484 = vmatprep.subr.mxu0 0.0
      %2485 = vmatpush1.msra.mxu0 0.0
      %2486 = vmatprep.subr.mxu0 0.0
      %2487 = vmatpush1.msra.mxu0 0.0
      %2488 = vmatprep.subr.mxu0 0.0
      %2489 = vmatpush1.msra.mxu0 0.0
      %2490 = vmatprep.subr.mxu0 0.0
      %2491 = vmatpush1.msra.mxu0 0.0
      %2492 = vmatprep.subr.mxu0 0.0
      %2493 = vmatpush1.msra.mxu0 0.0
      %2494 = vmatprep.subr.mxu0 0.0
      %2495 = vmatpush1.msra.mxu0 0.0
      %2496 = vmatprep.subr.mxu0 0.0
      %2497 = vmatpush1.msra.mxu0 0.0
      %2498 = vmatprep.subr.mxu0 0.0
      %2499 = vmatpush1.msra.mxu0 0.0
      %2500 = vmatprep.subr.mxu0 0.0
      %2501 = vmatpush1.msra.mxu0 0.0
      %2502 = vmatprep.subr.mxu0 0.0
      %2503 = vmatpush1.msra.mxu0 0.0
      %2504 = vmatprep.subr.mxu0 0.0
      %2505 = vmatpush1.msra.mxu0 %v2135
      %2506 = vmatprep.subr.mxu0 0.0
      %2507 = vmatpush2.msra.mxu0 0.0
      %2508 = vmatprep.subr.mxu0 0.0
      %2509 = vmatpush2.msra.mxu0 0.0
      %2510 = vmatprep.subr.mxu0 0.0
      %2511 = vmatpush2.msra.mxu0 0.0
      %2512 = vmatprep.subr.mxu0 0.0
      %2513 = vmatpush2.msra.mxu0 0.0
      %2514 = vmatprep.subr.mxu0 0.0
      %2515 = vmatpush2.msra.mxu0 0.0
      %2516 = vmatprep.subr.mxu0 0.0
      %2517 = vmatpush2.msra.mxu0 0.0
      %2518 = vmatprep.subr.mxu0 0.0
      %2519 = vmatpush2.msra.mxu0 0.0
      %2520 = vmatprep.subr.mxu0 0.0
      %2521 = vmatpush2.msra.mxu0 0.0
      %2522 = vmatprep.subr.mxu0 0.0
      %2523 = vmatpush2.msra.mxu0 0.0
      %2524 = vmatprep.subr.mxu0 0.0
      %2525 = vmatpush2.msra.mxu0 0.0
      %2526 = vmatprep.subr.mxu0 0.0
      %2527 = vmatpush2.msra.mxu0 0.0
      %2528 = vmatprep.subr.mxu0 0.0
      %2529 = vmatpush2.msra.mxu0 0.0
      %2530 = vmatprep.subr.mxu0 0.0
      %2531 = vmatpush2.msra.mxu0 0.0
      %2532 = vmatprep.subr.mxu0 0.0
      %2533 = vmatpush2.msra.mxu0 0.0
      %2534 = vmatprep.subr.mxu0 0.0
      %2535 = vmatpush2.msra.mxu0 0.0
      %2536 = vmatprep.subr.mxu0 0.0
      %2537 = vmatpush2.msra.mxu0 0.0
      %2538 = vmatprep.mubr.f32.mxu0 0.0
      %2539 = vmatmul.mubr.f32.gmra.mxu0 %v2472
      %v2540 = vpop.f32.mrf.mxu0
      %v2541 = vadd.f32 0.0, %v2540
      %v2542 = vpop.f32.mrf.mxu0
      %2543 = vdwg.mxu0
      %v2545 = vsel %vm840, %v2302, 0
      %2547 = vmatprep.subr.mxu0 0.0
      %2548 = vmatpush1.msra.mxu0 0.0
      %2549 = vmatprep.subr.mxu0 0.0
      %2550 = vmatpush1.msra.mxu0 0.0
      %2551 = vmatprep.subr.mxu0 0.0
      %2552 = vmatpush1.msra.mxu0 0.0
      %2553 = vmatprep.subr.mxu0 0.0
      %2554 = vmatpush1.msra.mxu0 0.0
      %2555 = vmatprep.subr.mxu0 0.0
      %2556 = vmatpush1.msra.mxu0 0.0
      %2557 = vmatprep.subr.mxu0 0.0
      %2558 = vmatpush1.msra.mxu0 0.0
      %2559 = vmatprep.subr.mxu0 0.0
      %2560 = vmatpush1.msra.mxu0 0.0
      %2561 = vmatprep.subr.mxu0 0.0
      %2562 = vmatpush1.msra.mxu0 0.0
      %2563 = vmatprep.subr.mxu0 0.0
      %2564 = vmatpush1.msra.mxu0 0.0
      %2565 = vmatprep.subr.mxu0 0.0
      %2566 = vmatpush1.msra.mxu0 0.0
      %2567 = vmatprep.subr.mxu0 0.0
      %2568 = vmatpush1.msra.mxu0 0.0
      %2569 = vmatprep.subr.mxu0 0.0
      %2570 = vmatpush1.msra.mxu0 0.0
      %2571 = vmatprep.subr.mxu0 0.0
      %2572 = vmatpush1.msra.mxu0 0.0
      %2573 = vmatprep.subr.mxu0 0.0
      %2574 = vmatpush1.msra.mxu0 0.0
      %2575 = vmatprep.subr.mxu0 0.0
      %2576 = vmatpush1.msra.mxu0 0.0
      %2577 = vmatprep.subr.mxu0 0.0
      %2578 = vmatpush1.msra.mxu0 %v2134
      %2579 = vmatprep.subr.mxu0 0.0
      %2580 = vmatpush2.msra.mxu0 0.0
      %2581 = vmatprep.subr.mxu0 0.0
      %2582 = vmatpush2.msra.mxu0 0.0
      %2583 = vmatprep.subr.mxu0 0.0
      %2584 = vmatpush2.msra.mxu0 0.0
      %2585 = vmatprep.subr.mxu0 0.0
      %2586 = vmatpush2.msra.mxu0 0.0
      %2587 = vmatprep.subr.mxu0 0.0
      %2588 = vmatpush2.msra.mxu0 0.0
      %2589 = vmatprep.subr.mxu0 0.0
      %2590 = vmatpush2.msra.mxu0 0.0
      %2591 = vmatprep.subr.mxu0 0.0
      %2592 = vmatpush2.msra.mxu0 0.0
      %2593 = vmatprep.subr.mxu0 0.0
      %2594 = vmatpush2.msra.mxu0 0.0
      %2595 = vmatprep.subr.mxu0 0.0
      %2596 = vmatpush2.msra.mxu0 0.0
      %2597 = vmatprep.subr.mxu0 0.0
      %2598 = vmatpush2.msra.mxu0 0.0
      %2599 = vmatprep.subr.mxu0 0.0
      %2600 = vmatpush2.msra.mxu0 0.0
      %2601 = vmatprep.subr.mxu0 0.0
      %2602 = vmatpush2.msra.mxu0 0.0
      %2603 = vmatprep.subr.mxu0 0.0
      %2604 = vmatpush2.msra.mxu0 0.0
      %2605 = vmatprep.subr.mxu0 0.0
      %2606 = vmatpush2.msra.mxu0 0.0
      %2607 = vmatprep.subr.mxu0 0.0
      %2608 = vmatpush2.msra.mxu0 0.0
      %2609 = vmatprep.subr.mxu0 0.0
      %2610 = vmatpush2.msra.mxu0 0.0
      %2611 = vmatprep.mubr.f32.mxu0 0.0
      %2612 = vmatmul.mubr.f32.gmra.mxu0 %v2545
      %v2613 = vpop.f32.mrf.mxu0
      %v2614 = vadd.f32 %v2541, %v2613
      %v2615 = vpop.f32.mrf.mxu0
      %2616 = vdwg.mxu0
      %2617 = vrot.lane.b32.xlu0 %v2138, 112
      %v2618 = vpop.permute.xlu0 %2617
      %2619 = vrot.lane.b32.xlu0 %v2130, 80
      %v2620 = vpop.permute.xlu0 %2619
      %v2621 = vsel %vm840, %v2618, 0
      %v2623 = vsel %vm840, %v2620, 0
      %2625 = vmatprep.subr.mxu0 0.0
      %2626 = vmatpush1.xpose.msra.mxu0 0.0
      %2627 = vmatprep.subr.mxu0 0.0
      %2628 = vmatpush1.xpose.msra.mxu0 0.0
      %2629 = vmatprep.subr.mxu0 0.0
      %2630 = vmatpush1.xpose.msra.mxu0 0.0
      %2631 = vmatprep.subr.mxu0 0.0
      %2632 = vmatpush1.xpose.msra.mxu0 0.0
      %2633 = vmatprep.subr.mxu0 0.0
      %2634 = vmatpush1.xpose.msra.mxu0 0.0
      %2635 = vmatprep.subr.mxu0 0.0
      %2636 = vmatpush1.xpose.msra.mxu0 0.0
      %2637 = vmatprep.subr.mxu0 0.0
      %2638 = vmatpush1.xpose.msra.mxu0 0.0
      %2639 = vmatprep.subr.mxu0 0.0
      %2640 = vmatpush1.xpose.msra.mxu0 0.0
      %2641 = vmatprep.subr.mxu0 0.0
      %2642 = vmatpush1.xpose.msra.mxu0 0.0
      %2643 = vmatprep.subr.mxu0 0.0
      %2644 = vmatpush1.xpose.msra.mxu0 0.0
      %2645 = vmatprep.subr.mxu0 0.0
      %2646 = vmatpush1.xpose.msra.mxu0 0.0
      %2647 = vmatprep.subr.mxu0 0.0
      %2648 = vmatpush1.xpose.msra.mxu0 0.0
      %2649 = vmatprep.subr.mxu0 0.0
      %2650 = vmatpush1.xpose.msra.mxu0 0.0
      %2651 = vmatprep.subr.mxu0 0.0
      %2652 = vmatpush1.xpose.msra.mxu0 0.0
      %2653 = vmatprep.subr.mxu0 0.0
      %2654 = vmatpush1.xpose.msra.mxu0 0.0
      %2655 = vmatprep.subr.mxu0 0.0
      %2656 = vmatpush1.xpose.msra.mxu0 %v2623
      %2657 = vmatprep.subr.mxu0 0.0
      %2658 = vmatpush2.xpose.msra.mxu0 0.0
      %2659 = vmatprep.subr.mxu0 0.0
      %2660 = vmatpush2.xpose.msra.mxu0 0.0
      %2661 = vmatprep.subr.mxu0 0.0
      %2662 = vmatpush2.xpose.msra.mxu0 0.0
      %2663 = vmatprep.subr.mxu0 0.0
      %2664 = vmatpush2.xpose.msra.mxu0 0.0
      %2665 = vmatprep.subr.mxu0 0.0
      %2666 = vmatpush2.xpose.msra.mxu0 0.0
      %2667 = vmatprep.subr.mxu0 0.0
      %2668 = vmatpush2.xpose.msra.mxu0 0.0
      %2669 = vmatprep.subr.mxu0 0.0
      %2670 = vmatpush2.xpose.msra.mxu0 0.0
      %2671 = vmatprep.subr.mxu0 0.0
      %2672 = vmatpush2.xpose.msra.mxu0 0.0
      %2673 = vmatprep.subr.mxu0 0.0
      %2674 = vmatpush2.xpose.msra.mxu0 0.0
      %2675 = vmatprep.subr.mxu0 0.0
      %2676 = vmatpush2.xpose.msra.mxu0 0.0
      %2677 = vmatprep.subr.mxu0 0.0
      %2678 = vmatpush2.xpose.msra.mxu0 0.0
      %2679 = vmatprep.subr.mxu0 0.0
      %2680 = vmatpush2.xpose.msra.mxu0 0.0
      %2681 = vmatprep.subr.mxu0 0.0
      %2682 = vmatpush2.xpose.msra.mxu0 0.0
      %2683 = vmatprep.subr.mxu0 0.0
      %2684 = vmatpush2.xpose.msra.mxu0 0.0
      %2685 = vmatprep.subr.mxu0 0.0
      %2686 = vmatpush2.xpose.msra.mxu0 0.0
      %2687 = vmatprep.subr.mxu0 0.0
      %2688 = vmatpush2.xpose.msra.mxu0 0.0
      %2689 = vmatprep.mubr.f32.mxu0 0.0
      %2690 = vmatmul.mubr.f32.gmra.mxu0 %v2621
      %v2691 = vpop.f32.mrf.mxu0
      %v2692 = vadd.f32 0.0, %v2691
      %v2693 = vpop.f32.mrf.mxu0
      %2694 = vdwg.mxu0
      %v2695 = vsel %vm916, %v2692, -inf
      %2696 = vmax.xlane.f32.xlu0 %v2695
      %v2697 = vpop.xlane.xlu0 %2696
      %v2698 = vsub.f32 %v2692, %v2697
      %v2699 = vmul.f32 %v2698, 1.442695
      %v2700 = vpow.pop %v2699
      %v2701 = vsel %vm916, %v2700, 0.0
      %2702 = vadd.xlane.f32.xlu0 %v2701
      %v2703 = vpop.xlane.xlu0 %2702
      %v2704 = vrcp.pop %v2703
      %v2705 = vmul.f32 %v2700, %v2704
      %2706 = vrot.lane.b32.xlu0 %v2130, 48
      %v2707 = vpop.permute.xlu0 %2706
      %v2709 = vsel %vm930, %v2705, 0
      %v2711 = vsel %vm934, %v2707, 0
      %2713 = vmatprep.subr.mxu0 0.0
      %2714 = vmatpush1.msra.mxu0 0.0
      %2715 = vmatprep.subr.mxu0 0.0
      %2716 = vmatpush1.msra.mxu0 0.0
      %2717 = vmatprep.subr.mxu0 0.0
      %2718 = vmatpush1.msra.mxu0 0.0
      %2719 = vmatprep.subr.mxu0 0.0
      %2720 = vmatpush1.msra.mxu0 0.0
      %2721 = vmatprep.subr.mxu0 0.0
      %2722 = vmatpush1.msra.mxu0 0.0
      %2723 = vmatprep.subr.mxu0 0.0
      %2724 = vmatpush1.msra.mxu0 0.0
      %2725 = vmatprep.subr.mxu0 0.0
      %2726 = vmatpush1.msra.mxu0 0.0
      %2727 = vmatprep.subr.mxu0 0.0
      %2728 = vmatpush1.msra.mxu0 0.0
      %2729 = vmatprep.subr.mxu0 0.0
      %2730 = vmatpush1.msra.mxu0 0.0
      %2731 = vmatprep.subr.mxu0 0.0
      %2732 = vmatpush1.msra.mxu0 0.0
      %2733 = vmatprep.subr.mxu0 0.0
      %2734 = vmatpush1.msra.mxu0 0.0
      %2735 = vmatprep.subr.mxu0 0.0
      %2736 = vmatpush1.msra.mxu0 0.0
      %2737 = vmatprep.subr.mxu0 0.0
      %2738 = vmatpush1.msra.mxu0 0.0
      %2739 = vmatprep.subr.mxu0 0.0
      %2740 = vmatpush1.msra.mxu0 0.0
      %2741 = vmatprep.subr.mxu0 0.0
      %2742 = vmatpush1.msra.mxu0 0.0
      %2743 = vmatprep.subr.mxu0 0.0
      %2744 = vmatpush1.msra.mxu0 %v2711
      %2745 = vmatprep.subr.mxu0 0.0
      %2746 = vmatpush2.msra.mxu0 0.0
      %2747 = vmatprep.subr.mxu0 0.0
      %2748 = vmatpush2.msra.mxu0 0.0
      %2749 = vmatprep.subr.mxu0 0.0
      %2750 = vmatpush2.msra.mxu0 0.0
      %2751 = vmatprep.subr.mxu0 0.0
      %2752 = vmatpush2.msra.mxu0 0.0
      %2753 = vmatprep.subr.mxu0 0.0
      %2754 = vmatpush2.msra.mxu0 0.0
      %2755 = vmatprep.subr.mxu0 0.0
      %2756 = vmatpush2.msra.mxu0 0.0
      %2757 = vmatprep.subr.mxu0 0.0
      %2758 = vmatpush2.msra.mxu0 0.0
      %2759 = vmatprep.subr.mxu0 0.0
      %2760 = vmatpush2.msra.mxu0 0.0
      %2761 = vmatprep.subr.mxu0 0.0
      %2762 = vmatpush2.msra.mxu0 0.0
      %2763 = vmatprep.subr.mxu0 0.0
      %2764 = vmatpush2.msra.mxu0 0.0
      %2765 = vmatprep.subr.mxu0 0.0
      %2766 = vmatpush2.msra.mxu0 0.0
      %2767 = vmatprep.subr.mxu0 0.0
      %2768 = vmatpush2.msra.mxu0 0.0
      %2769 = vmatprep.subr.mxu0 0.0
      %2770 = vmatpush2.msra.mxu0 0.0
      %2771 = vmatprep.subr.mxu0 0.0
      %2772 = vmatpush2.msra.mxu0 0.0
      %2773 = vmatprep.subr.mxu0 0.0
      %2774 = vmatpush2.msra.mxu0 0.0
      %2775 = vmatprep.subr.mxu0 0.0
      %2776 = vmatpush2.msra.mxu0 0.0
      %2777 = vmatprep.mubr.f32.mxu0 0.0
      %2778 = vmatmul.mubr.f32.gmra.mxu0 %v2709
      %v2779 = vpop.f32.mrf.mxu0
      %v2780 = vadd.f32 0.0, %v2779
      %v2781 = vpop.f32.mrf.mxu0
      %2782 = vdwg.mxu0
      %v2784 = vsel %vm840, %v2780, 0
      %2786 = vmatprep.subr.mxu0 0.0
      %2787 = vmatpush1.msra.mxu0 0.0
      %2788 = vmatprep.subr.mxu0 0.0
      %2789 = vmatpush1.msra.mxu0 0.0
      %2790 = vmatprep.subr.mxu0 0.0
      %2791 = vmatpush1.msra.mxu0 0.0
      %2792 = vmatprep.subr.mxu0 0.0
      %2793 = vmatpush1.msra.mxu0 0.0
      %2794 = vmatprep.subr.mxu0 0.0
      %2795 = vmatpush1.msra.mxu0 0.0
      %2796 = vmatprep.subr.mxu0 0.0
      %2797 = vmatpush1.msra.mxu0 0.0
      %2798 = vmatprep.subr.mxu0 0.0
      %2799 = vmatpush1.msra.mxu0 0.0
      %2800 = vmatprep.subr.mxu0 0.0
      %2801 = vmatpush1.msra.mxu0 0.0
      %2802 = vmatprep.subr.mxu0 0.0
      %2803 = vmatpush1.msra.mxu0 0.0
      %2804 = vmatprep.subr.mxu0 0.0
      %2805 = vmatpush1.msra.mxu0 0.0
      %2806 = vmatprep.subr.mxu0 0.0
      %2807 = vmatpush1.msra.mxu0 0.0
      %2808 = vmatprep.subr.mxu0 0.0
      %2809 = vmatpush1.msra.mxu0 0.0
      %2810 = vmatprep.subr.mxu0 0.0
      %2811 = vmatpush1.msra.mxu0 0.0
      %2812 = vmatprep.subr.mxu0 0.0
      %2813 = vmatpush1.msra.mxu0 0.0
      %2814 = vmatprep.subr.mxu0 0.0
      %2815 = vmatpush1.msra.mxu0 0.0
      %2816 = vmatprep.subr.mxu0 0.0
      %2817 = vmatpush1.msra.mxu0 %v2136
      %2818 = vmatprep.subr.mxu0 0.0
      %2819 = vmatpush2.msra.mxu0 0.0
      %2820 = vmatprep.subr.mxu0 0.0
      %2821 = vmatpush2.msra.mxu0 0.0
      %2822 = vmatprep.subr.mxu0 0.0
      %2823 = vmatpush2.msra.mxu0 0.0
      %2824 = vmatprep.subr.mxu0 0.0
      %2825 = vmatpush2.msra.mxu0 0.0
      %2826 = vmatprep.subr.mxu0 0.0
      %2827 = vmatpush2.msra.mxu0 0.0
      %2828 = vmatprep.subr.mxu0 0.0
      %2829 = vmatpush2.msra.mxu0 0.0
      %2830 = vmatprep.subr.mxu0 0.0
      %2831 = vmatpush2.msra.mxu0 0.0
      %2832 = vmatprep.subr.mxu0 0.0
      %2833 = vmatpush2.msra.mxu0 0.0
      %2834 = vmatprep.subr.mxu0 0.0
      %2835 = vmatpush2.msra.mxu0 0.0
      %2836 = vmatprep.subr.mxu0 0.0
      %2837 = vmatpush2.msra.mxu0 0.0
      %2838 = vmatprep.subr.mxu0 0.0
      %2839 = vmatpush2.msra.mxu0 0.0
      %2840 = vmatprep.subr.mxu0 0.0
      %2841 = vmatpush2.msra.mxu0 0.0
      %2842 = vmatprep.subr.mxu0 0.0
      %2843 = vmatpush2.msra.mxu0 0.0
      %2844 = vmatprep.subr.mxu0 0.0
      %2845 = vmatpush2.msra.mxu0 0.0
      %2846 = vmatprep.subr.mxu0 0.0
      %2847 = vmatpush2.msra.mxu0 0.0
      %2848 = vmatprep.subr.mxu0 0.0
      %2849 = vmatpush2.msra.mxu0 0.0
      %2850 = vmatprep.mubr.f32.mxu0 0.0
      %2851 = vmatmul.mubr.f32.gmra.mxu0 %v2784
      %v2852 = vpop.f32.mrf.mxu0
      %v2853 = vadd.f32 0.0, %v2852
      %v2854 = vpop.f32.mrf.mxu0
      %2855 = vdwg.mxu0
      %v2856 = vadd.f32 %v2614, %v2853
      %2857 = vrot.lane.b32.xlu0 %v2138, 104
      %v2858 = vpop.permute.xlu0 %2857
      %2859 = vrot.lane.b32.xlu0 %v2130, 72
      %v2860 = vpop.permute.xlu0 %2859
      %v2861 = vsel %vm840, %v2858, 0
      %v2863 = vsel %vm840, %v2860, 0
      %2865 = vmatprep.subr.mxu0 0.0
      %2866 = vmatpush1.xpose.msra.mxu0 0.0
      %2867 = vmatprep.subr.mxu0 0.0
      %2868 = vmatpush1.xpose.msra.mxu0 0.0
      %2869 = vmatprep.subr.mxu0 0.0
      %2870 = vmatpush1.xpose.msra.mxu0 0.0
      %2871 = vmatprep.subr.mxu0 0.0
      %2872 = vmatpush1.xpose.msra.mxu0 0.0
      %2873 = vmatprep.subr.mxu0 0.0
      %2874 = vmatpush1.xpose.msra.mxu0 0.0
      %2875 = vmatprep.subr.mxu0 0.0
      %2876 = vmatpush1.xpose.msra.mxu0 0.0
      %2877 = vmatprep.subr.mxu0 0.0
      %2878 = vmatpush1.xpose.msra.mxu0 0.0
      %2879 = vmatprep.subr.mxu0 0.0
      %2880 = vmatpush1.xpose.msra.mxu0 0.0
      %2881 = vmatprep.subr.mxu0 0.0
      %2882 = vmatpush1.xpose.msra.mxu0 0.0
      %2883 = vmatprep.subr.mxu0 0.0
      %2884 = vmatpush1.xpose.msra.mxu0 0.0
      %2885 = vmatprep.subr.mxu0 0.0
      %2886 = vmatpush1.xpose.msra.mxu0 0.0
      %2887 = vmatprep.subr.mxu0 0.0
      %2888 = vmatpush1.xpose.msra.mxu0 0.0
      %2889 = vmatprep.subr.mxu0 0.0
      %2890 = vmatpush1.xpose.msra.mxu0 0.0
      %2891 = vmatprep.subr.mxu0 0.0
      %2892 = vmatpush1.xpose.msra.mxu0 0.0
      %2893 = vmatprep.subr.mxu0 0.0
      %2894 = vmatpush1.xpose.msra.mxu0 0.0
      %2895 = vmatprep.subr.mxu0 0.0
      %2896 = vmatpush1.xpose.msra.mxu0 %v2863
      %2897 = vmatprep.subr.mxu0 0.0
      %2898 = vmatpush2.xpose.msra.mxu0 0.0
      %2899 = vmatprep.subr.mxu0 0.0
      %2900 = vmatpush2.xpose.msra.mxu0 0.0
      %2901 = vmatprep.subr.mxu0 0.0
      %2902 = vmatpush2.xpose.msra.mxu0 0.0
      %2903 = vmatprep.subr.mxu0 0.0
      %2904 = vmatpush2.xpose.msra.mxu0 0.0
      %2905 = vmatprep.subr.mxu0 0.0
      %2906 = vmatpush2.xpose.msra.mxu0 0.0
      %2907 = vmatprep.subr.mxu0 0.0
      %2908 = vmatpush2.xpose.msra.mxu0 0.0
      %2909 = vmatprep.subr.mxu0 0.0
      %2910 = vmatpush2.xpose.msra.mxu0 0.0
      %2911 = vmatprep.subr.mxu0 0.0
      %2912 = vmatpush2.xpose.msra.mxu0 0.0
      %2913 = vmatprep.subr.mxu0 0.0
      %2914 = vmatpush2.xpose.msra.mxu0 0.0
      %2915 = vmatprep.subr.mxu0 0.0
      %2916 = vmatpush2.xpose.msra.mxu0 0.0
      %2917 = vmatprep.subr.mxu0 0.0
      %2918 = vmatpush2.xpose.msra.mxu0 0.0
      %2919 = vmatprep.subr.mxu0 0.0
      %2920 = vmatpush2.xpose.msra.mxu0 0.0
      %2921 = vmatprep.subr.mxu0 0.0
      %2922 = vmatpush2.xpose.msra.mxu0 0.0
      %2923 = vmatprep.subr.mxu0 0.0
      %2924 = vmatpush2.xpose.msra.mxu0 0.0
      %2925 = vmatprep.subr.mxu0 0.0
      %2926 = vmatpush2.xpose.msra.mxu0 0.0
      %2927 = vmatprep.subr.mxu0 0.0
      %2928 = vmatpush2.xpose.msra.mxu0 0.0
      %2929 = vmatprep.mubr.f32.mxu0 0.0
      %2930 = vmatmul.mubr.f32.gmra.mxu0 %v2861
      %v2931 = vpop.f32.mrf.mxu0
      %v2932 = vadd.f32 0.0, %v2931
      %v2933 = vpop.f32.mrf.mxu0
      %2934 = vdwg.mxu0
      %v2935 = vsel %vm916, %v2932, -inf
      %2936 = vmax.xlane.f32.xlu0 %v2935
      %v2937 = vpop.xlane.xlu0 %2936
      %v2938 = vsub.f32 %v2932, %v2937
      %v2939 = vmul.f32 %v2938, 1.442695
      %v2940 = vpow.pop %v2939
      %v2941 = vsel %vm916, %v2940, 0.0
      %2942 = vadd.xlane.f32.xlu0 %v2941
      %v2943 = vpop.xlane.xlu0 %2942
      %v2944 = vrcp.pop %v2943
      %v2945 = vmul.f32 %v2940, %v2944
      %2946 = vrot.lane.b32.xlu0 %v2130, 40
      %v2947 = vpop.permute.xlu0 %2946
      %v2949 = vsel %vm930, %v2945, 0
      %v2951 = vsel %vm934, %v2947, 0
      %2953 = vmatprep.subr.mxu0 0.0
      %2954 = vmatpush1.msra.mxu0 0.0
      %2955 = vmatprep.subr.mxu0 0.0
      %2956 = vmatpush1.msra.mxu0 0.0
      %2957 = vmatprep.subr.mxu0 0.0
      %2958 = vmatpush1.msra.mxu0 0.0
      %2959 = vmatprep.subr.mxu0 0.0
      %2960 = vmatpush1.msra.mxu0 0.0
      %2961 = vmatprep.subr.mxu0 0.0
      %2962 = vmatpush1.msra.mxu0 0.0
      %2963 = vmatprep.subr.mxu0 0.0
      %2964 = vmatpush1.msra.mxu0 0.0
      %2965 = vmatprep.subr.mxu0 0.0
      %2966 = vmatpush1.msra.mxu0 0.0
      %2967 = vmatprep.subr.mxu0 0.0
      %2968 = vmatpush1.msra.mxu0 0.0
      %2969 = vmatprep.subr.mxu0 0.0
      %2970 = vmatpush1.msra.mxu0 0.0
      %2971 = vmatprep.subr.mxu0 0.0
      %2972 = vmatpush1.msra.mxu0 0.0
      %2973 = vmatprep.subr.mxu0 0.0
      %2974 = vmatpush1.msra.mxu0 0.0
      %2975 = vmatprep.subr.mxu0 0.0
      %2976 = vmatpush1.msra.mxu0 0.0
      %2977 = vmatprep.subr.mxu0 0.0
      %2978 = vmatpush1.msra.mxu0 0.0
      %2979 = vmatprep.subr.mxu0 0.0
      %2980 = vmatpush1.msra.mxu0 0.0
      %2981 = vmatprep.subr.mxu0 0.0
      %2982 = vmatpush1.msra.mxu0 0.0
      %2983 = vmatprep.subr.mxu0 0.0
      %2984 = vmatpush1.msra.mxu0 %v2951
      %2985 = vmatprep.subr.mxu0 0.0
      %2986 = vmatpush2.msra.mxu0 0.0
      %2987 = vmatprep.subr.mxu0 0.0
      %2988 = vmatpush2.msra.mxu0 0.0
      %2989 = vmatprep.subr.mxu0 0.0
      %2990 = vmatpush2.msra.mxu0 0.0
      %2991 = vmatprep.subr.mxu0 0.0
      %2992 = vmatpush2.msra.mxu0 0.0
      %2993 = vmatprep.subr.mxu0 0.0
      %2994 = vmatpush2.msra.mxu0 0.0
      %2995 = vmatprep.subr.mxu0 0.0
      %2996 = vmatpush2.msra.mxu0 0.0
      %2997 = vmatprep.subr.mxu0 0.0
      %2998 = vmatpush2.msra.mxu0 0.0
      %2999 = vmatprep.subr.mxu0 0.0
      %3000 = vmatpush2.msra.mxu0 0.0
      %3001 = vmatprep.subr.mxu0 0.0
      %3002 = vmatpush2.msra.mxu0 0.0
      %3003 = vmatprep.subr.mxu0 0.0
      %3004 = vmatpush2.msra.mxu0 0.0
      %3005 = vmatprep.subr.mxu0 0.0
      %3006 = vmatpush2.msra.mxu0 0.0
      %3007 = vmatprep.subr.mxu0 0.0
      %3008 = vmatpush2.msra.mxu0 0.0
      %3009 = vmatprep.subr.mxu0 0.0
      %3010 = vmatpush2.msra.mxu0 0.0
      %3011 = vmatprep.subr.mxu0 0.0
      %3012 = vmatpush2.msra.mxu0 0.0
      %3013 = vmatprep.subr.mxu0 0.0
      %3014 = vmatpush2.msra.mxu0 0.0
      %3015 = vmatprep.subr.mxu0 0.0
      %3016 = vmatpush2.msra.mxu0 0.0
      %3017 = vmatprep.mubr.f32.mxu0 0.0
      %3018 = vmatmul.mubr.f32.gmra.mxu0 %v2949
      %v3019 = vpop.f32.mrf.mxu0
      %v3020 = vadd.f32 0.0, %v3019
      %v3021 = vpop.f32.mrf.mxu0
      %3022 = vdwg.mxu0
      %v3024 = vsel %vm840, %v3020, 0
      %3026 = vmatprep.subr.mxu0 0.0
      %3027 = vmatpush1.msra.mxu0 0.0
      %3028 = vmatprep.subr.mxu0 0.0
      %3029 = vmatpush1.msra.mxu0 0.0
      %3030 = vmatprep.subr.mxu0 0.0
      %3031 = vmatpush1.msra.mxu0 0.0
      %3032 = vmatprep.subr.mxu0 0.0
      %3033 = vmatpush1.msra.mxu0 0.0
      %3034 = vmatprep.subr.mxu0 0.0
      %3035 = vmatpush1.msra.mxu0 0.0
      %3036 = vmatprep.subr.mxu0 0.0
      %3037 = vmatpush1.msra.mxu0 0.0
      %3038 = vmatprep.subr.mxu0 0.0
      %3039 = vmatpush1.msra.mxu0 0.0
      %3040 = vmatprep.subr.mxu0 0.0
      %3041 = vmatpush1.msra.mxu0 0.0
      %3042 = vmatprep.subr.mxu0 0.0
      %3043 = vmatpush1.msra.mxu0 0.0
      %3044 = vmatprep.subr.mxu0 0.0
      %3045 = vmatpush1.msra.mxu0 0.0
      %3046 = vmatprep.subr.mxu0 0.0
      %3047 = vmatpush1.msra.mxu0 0.0
      %3048 = vmatprep.subr.mxu0 0.0
      %3049 = vmatpush1.msra.mxu0 0.0
      %3050 = vmatprep.subr.mxu0 0.0
      %3051 = vmatpush1.msra.mxu0 0.0
      %3052 = vmatprep.subr.mxu0 0.0
      %3053 = vmatpush1.msra.mxu0 0.0
      %3054 = vmatprep.subr.mxu0 0.0
      %3055 = vmatpush1.msra.mxu0 0.0
      %3056 = vmatprep.subr.mxu0 0.0
      %3057 = vmatpush1.msra.mxu0 %v2137
      %3058 = vmatprep.subr.mxu0 0.0
      %3059 = vmatpush2.msra.mxu0 0.0
      %3060 = vmatprep.subr.mxu0 0.0
      %3061 = vmatpush2.msra.mxu0 0.0
      %3062 = vmatprep.subr.mxu0 0.0
      %3063 = vmatpush2.msra.mxu0 0.0
      %3064 = vmatprep.subr.mxu0 0.0
      %3065 = vmatpush2.msra.mxu0 0.0
      %3066 = vmatprep.subr.mxu0 0.0
      %3067 = vmatpush2.msra.mxu0 0.0
      %3068 = vmatprep.subr.mxu0 0.0
      %3069 = vmatpush2.msra.mxu0 0.0
      %3070 = vmatprep.subr.mxu0 0.0
      %3071 = vmatpush2.msra.mxu0 0.0
      %3072 = vmatprep.subr.mxu0 0.0
      %3073 = vmatpush2.msra.mxu0 0.0
      %3074 = vmatprep.subr.mxu0 0.0
      %3075 = vmatpush2.msra.mxu0 0.0
      %3076 = vmatprep.subr.mxu0 0.0
      %3077 = vmatpush2.msra.mxu0 0.0
      %3078 = vmatprep.subr.mxu0 0.0
      %3079 = vmatpush2.msra.mxu0 0.0
      %3080 = vmatprep.subr.mxu0 0.0
      %3081 = vmatpush2.msra.mxu0 0.0
      %3082 = vmatprep.subr.mxu0 0.0
      %3083 = vmatpush2.msra.mxu0 0.0
      %3084 = vmatprep.subr.mxu0 0.0
      %3085 = vmatpush2.msra.mxu0 0.0
      %3086 = vmatprep.subr.mxu0 0.0
      %3087 = vmatpush2.msra.mxu0 0.0
      %3088 = vmatprep.subr.mxu0 0.0
      %3089 = vmatpush2.msra.mxu0 0.0
      %3090 = vmatprep.mubr.f32.mxu0 0.0
      %3091 = vmatmul.mubr.f32.gmra.mxu0 %v3024
      %v3092 = vpop.f32.mrf.mxu0
      %v3093 = vadd.f32 0.0, %v3092
      %v3094 = vpop.f32.mrf.mxu0
      %3095 = vdwg.mxu0
      %v3096 = vadd.f32 %v2856, %v3093
      %v3097 = vadd.f32 %v2015, %v3096
      %s3098 = scalar_lea.vmem %s10, 1
      %v3099 = vld [vmem:[%s3098] sm:$0x1]
      %v3101 = vlaneseq
      %v3102 = vshrl.u32 %v3101, 7
      %v3103 = vsub.s32 0, %v3102
      %v3104 = vrot.slane %v3099, %v3103
      %v3106 = vadd.f32 %v3097, %v3104
      %s3107 = scalar_lea.vmem %s11, 1
      %v3108 = vld [vmem:[%s3107] sm:$0x1]
      %s3109 = scalar_lea.vmem %s12, 1
      %v3110 = vld [vmem:[%s3109] sm:$0x1]
      %v3111 = vsel %vm718, %v3106, 0.0
      %3112 = vadd.xlane.f32.xlu0 %v3111
      %v3113 = vpop.xlane.xlu0 %3112
      %v3114 = vmul.f32 %v3113, %v722
      %v3115 = vsub.f32 %v3106, %v3114
      %v3116 = vmul.f32 %v3115, %v3115
      %v3117 = vsel %vm718, %v3116, 0.0
      %3118 = vadd.xlane.f32.xlu0 %v3117
      %v3119 = vpop.xlane.xlu0 %3118
      %v3120 = vmul.f32 %v3119, %v722
      %v3121 = vadd.f32 %v3120, 1e-12
      %v3122 = vrsqrt.pop %v3121
      %v3123 = vmul.f32 %v3115, %v3122
      %v3125 = vlaneseq
      %v3126 = vshrl.u32 %v3125, 7
      %v3127 = vsub.s32 0, %v3126
      %v3128 = vrot.slane %v3108, %v3127
      %v3130 = vmul.f32 %v3123, %v3128
      %v3132 = vlaneseq
      %v3133 = vshrl.u32 %v3132, 7
      %v3134 = vsub.s32 0, %v3133
      %v3135 = vrot.slane %v3110, %v3134
      %v3137 = vadd.f32 %v3130, %v3135
      %s3138 = scalar_lea.vmem %s13, 32
      %v3139 = vld [vmem:[%s3138] sm:$0xff]
      %v3140 = vld [vmem:[%s3138 + $0x8] sm:$0xff]
      %v3141 = vld [vmem:[%s3138 + $0x10] sm:$0xff]
      %v3142 = vld [vmem:[%s3138 + $0x18] sm:$0xff]
      %s3143 = scalar_lea.vmem %s14, 1
      %v3144 = vld [vmem:[%s3143] sm:$0x1]
      %v3146 = vlaneseq
      %v3147 = vshrl.u32 %v3146, 7
      %v3148 = vsub.s32 0, %v3147
      %v3149 = vrot.slane %v3144, %v3148
      %v3152 = vsel %vm758, %v3137, 0
      %3154 = vmatprep.subr.mxu0 0.0
      %3155 = vmatpush1.msra.mxu0 0.0
      %3156 = vmatprep.subr.mxu0 0.0
      %3157 = vmatpush1.msra.mxu0 0.0
      %3158 = vmatprep.subr.mxu0 0.0
      %3159 = vmatpush1.msra.mxu0 0.0
      %3160 = vmatprep.subr.mxu0 0.0
      %3161 = vmatpush1.msra.mxu0 0.0
      %3162 = vmatprep.subr.mxu0 0.0
      %3163 = vmatpush1.msra.mxu0 0.0
      %3164 = vmatprep.subr.mxu0 0.0
      %3165 = vmatpush1.msra.mxu0 0.0
      %3166 = vmatprep.subr.mxu0 0.0
      %3167 = vmatpush1.msra.mxu0 0.0
      %3168 = vmatprep.subr.mxu0 0.0
      %3169 = vmatpush1.msra.mxu0 0.0
      %3170 = vmatprep.subr.mxu0 0.0
      %3171 = vmatpush1.msra.mxu0 0.0
      %3172 = vmatprep.subr.mxu0 0.0
      %3173 = vmatpush1.msra.mxu0 0.0
      %3174 = vmatprep.subr.mxu0 0.0
      %3175 = vmatpush1.msra.mxu0 0.0
      %3176 = vmatprep.subr.mxu0 0.0
      %3177 = vmatpush1.msra.mxu0 0.0
      %3178 = vmatprep.subr.mxu0 0.0
      %3179 = vmatpush1.msra.mxu0 %v3142
      %3180 = vmatprep.subr.mxu0 0.0
      %3181 = vmatpush1.msra.mxu0 %v3141
      %3182 = vmatprep.subr.mxu0 0.0
      %3183 = vmatpush1.msra.mxu0 %v3140
      %3184 = vmatprep.subr.mxu0 0.0
      %3185 = vmatpush1.msra.mxu0 %v3139
      %3186 = vmatprep.subr.mxu0 0.0
      %3187 = vmatpush2.msra.mxu0 0.0
      %3188 = vmatprep.subr.mxu0 0.0
      %3189 = vmatpush2.msra.mxu0 0.0
      %3190 = vmatprep.subr.mxu0 0.0
      %3191 = vmatpush2.msra.mxu0 0.0
      %3192 = vmatprep.subr.mxu0 0.0
      %3193 = vmatpush2.msra.mxu0 0.0
      %3194 = vmatprep.subr.mxu0 0.0
      %3195 = vmatpush2.msra.mxu0 0.0
      %3196 = vmatprep.subr.mxu0 0.0
      %3197 = vmatpush2.msra.mxu0 0.0
      %3198 = vmatprep.subr.mxu0 0.0
      %3199 = vmatpush2.msra.mxu0 0.0
      %3200 = vmatprep.subr.mxu0 0.0
      %3201 = vmatpush2.msra.mxu0 0.0
      %3202 = vmatprep.subr.mxu0 0.0
      %3203 = vmatpush2.msra.mxu0 0.0
      %3204 = vmatprep.subr.mxu0 0.0
      %3205 = vmatpush2.msra.mxu0 0.0
      %3206 = vmatprep.subr.mxu0 0.0
      %3207 = vmatpush2.msra.mxu0 0.0
      %3208 = vmatprep.subr.mxu0 0.0
      %3209 = vmatpush2.msra.mxu0 0.0
      %3210 = vmatprep.subr.mxu0 0.0
      %3211 = vmatpush2.msra.mxu0 0.0
      %3212 = vmatprep.subr.mxu0 0.0
      %3213 = vmatpush2.msra.mxu0 0.0
      %3214 = vmatprep.subr.mxu0 0.0
      %3215 = vmatpush2.msra.mxu0 0.0
      %3216 = vmatprep.subr.mxu0 0.0
      %3217 = vmatpush2.msra.mxu0 0.0
      %3218 = vmatprep.mubr.f32.mxu0 0.0
      %3219 = vmatmul.mubr.f32.gmra.mxu0 %v3152
      %v3220 = vpop.f32.mrf.mxu0
      %v3221 = vadd.f32 %v3149, %v3220
      %v3222 = vpop.f32.mrf.mxu0
      %3223 = vdwg.mxu0
      %v3224 = vmul.f32 %v3221, 0.5
      %v3225 = vmul.f32 %v3221, 0.70710677
      %v3226 = verf.f32.pop %v3225
      %v3227 = vadd.f32 %v3226, 1.0
      %v3228 = vmul.f32 %v3224, %v3227
      %s3229 = scalar_lea.vmem %s15, 64
      %v3230 = vld [vmem:[%s3229] sm:$0xff]
      %v3231 = vld [vmem:[%s3229 + $0x8] sm:$0xff]
      %v3232 = vld [vmem:[%s3229 + $0x10] sm:$0xff]
      %v3233 = vld [vmem:[%s3229 + $0x18] sm:$0xff]
      %v3234 = vld [vmem:[%s3229 + $0x20] sm:$0xff]
      %v3235 = vld [vmem:[%s3229 + $0x28] sm:$0xff]
      %v3236 = vld [vmem:[%s3229 + $0x30] sm:$0xff]
      %v3237 = vld [vmem:[%s3229 + $0x38] sm:$0xff]
      %v3239 = vsel %vm635, %v3228, 0
      %3241 = vmatprep.subr.mxu0 0.0
      %3242 = vmatpush1.msra.mxu0 0.0
      %3243 = vmatprep.subr.mxu0 0.0
      %3244 = vmatpush1.msra.mxu0 0.0
      %3245 = vmatprep.subr.mxu0 0.0
      %3246 = vmatpush1.msra.mxu0 0.0
      %3247 = vmatprep.subr.mxu0 0.0
      %3248 = vmatpush1.msra.mxu0 0.0
      %3249 = vmatprep.subr.mxu0 0.0
      %3250 = vmatpush1.msra.mxu0 0.0
      %3251 = vmatprep.subr.mxu0 0.0
      %3252 = vmatpush1.msra.mxu0 0.0
      %3253 = vmatprep.subr.mxu0 0.0
      %3254 = vmatpush1.msra.mxu0 0.0
      %3255 = vmatprep.subr.mxu0 0.0
      %3256 = vmatpush1.msra.mxu0 0.0
      %3257 = vmatprep.subr.mxu0 0.0
      %3258 = vmatpush1.msra.mxu0 %v3237
      %3259 = vmatprep.subr.mxu0 0.0
      %3260 = vmatpush1.msra.mxu0 %v3236
      %3261 = vmatprep.subr.mxu0 0.0
      %3262 = vmatpush1.msra.mxu0 %v3235
      %3263 = vmatprep.subr.mxu0 0.0
      %3264 = vmatpush1.msra.mxu0 %v3234
      %3265 = vmatprep.subr.mxu0 0.0
      %3266 = vmatpush1.msra.mxu0 %v3233
      %3267 = vmatprep.subr.mxu0 0.0
      %3268 = vmatpush1.msra.mxu0 %v3232
      %3269 = vmatprep.subr.mxu0 0.0
      %3270 = vmatpush1.msra.mxu0 %v3231
      %3271 = vmatprep.subr.mxu0 0.0
      %3272 = vmatpush1.msra.mxu0 %v3230
      %3273 = vmatprep.subr.mxu0 0.0
      %3274 = vmatpush2.msra.mxu0 0.0
      %3275 = vmatprep.subr.mxu0 0.0
      %3276 = vmatpush2.msra.mxu0 0.0
      %3277 = vmatprep.subr.mxu0 0.0
      %3278 = vmatpush2.msra.mxu0 0.0
      %3279 = vmatprep.subr.mxu0 0.0
      %3280 = vmatpush2.msra.mxu0 0.0
      %3281 = vmatprep.subr.mxu0 0.0
      %3282 = vmatpush2.msra.mxu0 0.0
      %3283 = vmatprep.subr.mxu0 0.0
      %3284 = vmatpush2.msra.mxu0 0.0
      %3285 = vmatprep.subr.mxu0 0.0
      %3286 = vmatpush2.msra.mxu0 0.0
      %3287 = vmatprep.subr.mxu0 0.0
      %3288 = vmatpush2.msra.mxu0 0.0
      %3289 = vmatprep.subr.mxu0 0.0
      %3290 = vmatpush2.msra.mxu0 0.0
      %3291 = vmatprep.subr.mxu0 0.0
      %3292 = vmatpush2.msra.mxu0 0.0
      %3293 = vmatprep.subr.mxu0 0.0
      %3294 = vmatpush2.msra.mxu0 0.0
      %3295 = vmatprep.subr.mxu0 0.0
      %3296 = vmatpush2.msra.mxu0 0.0
      %3297 = vmatprep.subr.mxu0 0.0
      %3298 = vmatpush2.msra.mxu0 0.0
      %3299 = vmatprep.subr.mxu0 0.0
      %3300 = vmatpush2.msra.mxu0 0.0
      %3301 = vmatprep.subr.mxu0 0.0
      %3302 = vmatpush2.msra.mxu0 0.0
      %3303 = vmatprep.subr.mxu0 0.0
      %3304 = vmatpush2.msra.mxu0 0.0
      %3305 = vmatprep.mubr.f32.mxu0 0.0
      %3306 = vmatmul.mubr.f32.gmra.mxu0 %v3239
      %v3307 = vpop.f32.mrf.mxu0
      %v3308 = vadd.f32 0.0, %v3307
      %v3309 = vpop.f32.mrf.mxu0
      %3310 = vdwg.mxu0
      %v3311 = vadd.f32 %v3106, %v3308
      %s3312 = scalar_lea.vmem %s16, 1
      %v3313 = vld [vmem:[%s3312] sm:$0x1]
      %v3315 = vlaneseq
      %v3316 = vshrl.u32 %v3315, 7
      %v3317 = vsub.s32 0, %v3316
      %v3318 = vrot.slane %v3313, %v3317
      %v3320 = vadd.f32 %v3311, %v3318
      %v3321 = vld [vmem:[%s17] sm:$0x1]
      %v3322 = vld [vmem:[%s18] sm:$0x1]
      %v3323 = vsel %vm718, %v3320, 0.0
      %3324 = vadd.xlane.f32.xlu0 %v3323
      %v3325 = vpop.xlane.xlu0 %3324
      %v3326 = vmul.f32 %v3325, %v722
      %v3327 = vsub.f32 %v3320, %v3326
      %v3328 = vmul.f32 %v3327, %v3327
      %v3329 = vsel %vm718, %v3328, 0.0
      %3330 = vadd.xlane.f32.xlu0 %v3329
      %v3331 = vpop.xlane.xlu0 %3330
      %v3332 = vmul.f32 %v3331, %v722
      %v3333 = vadd.f32 %v3332, 1e-12
      %v3334 = vrsqrt.pop %v3333
      %v3335 = vmul.f32 %v3327, %v3334
      %v3337 = vlaneseq
      %v3338 = vshrl.u32 %v3337, 7
      %v3339 = vsub.s32 0, %v3338
      %v3340 = vrot.slane %v3321, %v3339
      %v3342 = vmul.f32 %v3335, %v3340
      %v3344 = vlaneseq
      %v3345 = vshrl.u32 %v3344, 7
      %v3346 = vsub.s32 0, %v3345
      %v3347 = vrot.slane %v3322, %v3346
      %v3349 = vadd.f32 %v3342, %v3347
      %3350 = vst.msk [vmem:[%s600] sm:$0x1f] %vm718, %v3349
      %p3351 = scmp.lt.s32.totalorder %s30, 1
      %s3352 = scalar_select %p3351, %s30, 1
      %s3353 = smul.addr %s3352, 8
      %s3354 = scalar_lea.vmem %s19, %s3353
      // Predicated region
      $region97: #{vit_backbone_forward.1} parent=95 // pred_check
        %p3355 = pneg %p452
      $region98: #{vit_backbone_forward.1} parent=95 // pred_check_branch
        %3357 = sbr.rel (%p3355) target = $region100
      $region99: #{vit_backbone_forward.1} parent=95 // pred_region
        _
      $region100: #{vit_backbone_forward.1} parent=95 // pred_fallthru
        _
    $region96: #{vit_backbone_forward.1} parent=5 // pred_fallthru
      _
    %p3358 = scmp.le.s32.totalorder 2, %s25
    // Predicated region
    $region101: #{vit_backbone_forward.1} parent=5 // pred_check
      %p3359 = pneg %p3358
    $region102: #{vit_backbone_forward.1} parent=5 // pred_check_branch
      %3361 = sbr.rel (%p3359) target = $region104
    $region103: #{vit_backbone_forward.1} parent=5 // pred_region
      %s3362 = ssub.s32 %s25, 2
      // Predicated region
      $region105: #{vit_backbone_forward.1} parent=103 // pred_check
        %p3363 = pneg %p458
      $region106: #{vit_backbone_forward.1} parent=103 // pred_check_branch
        %3365 = sbr.rel (%p3363) target = $region108
      $region107: #{vit_backbone_forward.1} parent=103 // pred_region
        %p3366 = scmp.lt.s32.totalorder %s31, 1
        %s3367 = scalar_select %p3366, %s31, 1
        %s3368 = smul.addr %s3367, 8
        %s3369 = scalar_lea.vmem %s19, %s3368
      $region108: #{vit_backbone_forward.1} parent=103 // pred_fallthru
        _
    $region104: #{vit_backbone_forward.1} parent=5 // pred_fallthru
      _
  $region6: #{vit_backbone_forward.1} parent=0 // loop_footer
    %s29 = sadd.s32 1, %s25
  $region7: #{vit_backbone_forward.1} parent=0 // loop_footer_branch
    %24 = sbr.rel target = $region3
  $region8: #{vit_backbone_forward.1} parent=0 // loop_exit
    _

</llo_original>
